<compile_context>
chip_gen: v5e
topology: v5e:2x2
jax: 0.10.0
libtpu: 0.0.40
codegen_flags: <defaults>
</compile_context>

<pallas_src>
import functools

import jax
import jax.numpy as jnp
from jax.experimental import pallas as pl
from jax.experimental.pallas import tpu as pltpu

LN_EPS = 1e-5  # torch.nn.LayerNorm default eps


def _round_up(a: int, b: int) -> int:
    return (a + b - 1) // b * b


def resblock_kernel(x_ref, wcat_ref, b_ref, gamma_ref, beta_ref, o_ref, *,
                    dim_out: int, p: int, has_skip: bool):
    """One (tm, dim_in) row tile -> one (tm, dim_out) output tile.

    wcat = [W_dense | W_skip] (projection skip) or just W_dense (identity skip),
    each column-padded with zeros to lane-aligned width P, so a single wide MXU
    matmul produces the dense pre-activation (first P lanes) and, if present, the
    skip projection (last P lanes).
    """
    x = x_ref[...]                                             # (tm, dim_in), input dtype
    cat = jnp.dot(x, wcat_ref[...],
                  preferred_element_type=jnp.float32)          # (tm, P or 2P) f32 accum
    dense = cat[:, :p] + b_ref[...]                            # (tm, P) dense pre-act

    # LayerNorm over the real dim_out features.  Padded columns of `dense` are
    # exactly zero (zero-padded weights AND bias), so the sum is already correct
    # for the mean; only the variance needs a lane mask.
    inv_d = 1.0 / dim_out
    mean = jnp.sum(dense, axis=-1, keepdims=True) * inv_d
    centered = dense - mean
    if p != dim_out:  # static Python check: mask padded lanes out of the variance
        lane = jax.lax.broadcasted_iota(jnp.int32, centered.shape, 1)
        c_for_var = jnp.where(lane < dim_out, centered, 0.0)
    else:
        c_for_var = centered
    var = jnp.sum(c_for_var * c_for_var, axis=-1, keepdims=True) * inv_d
    inv_std = jax.lax.rsqrt(var + LN_EPS)                      # EUP
    normed = centered * inv_std * gamma_ref[...] + beta_ref[...]

    # Residual add, narrowed to the real dim_out width before SiLU + store.
    if has_skip:
        y = normed + cat[:, p:]                                # lane-aligned slice at P
        if p != dim_out:
            y = y[:, :dim_out]
    else:
        # Identity skip: add x directly (no eye-matrix matmul).
        y = (normed[:, :dim_out] if p != dim_out else normed) + x.astype(jnp.float32)

    # SiLU.  (pl.reciprocal(approx=True) could shave the VALU divide, but costs
    # ~1e-3 relative error; kept exact since this kernel is DMA/overhead bound.)
    o_ref[...] = (y * jax.nn.sigmoid(y)).astype(o_ref.dtype)


def prepack_resblock_params(w_dense, b_dense, w_skip, gamma, beta):
    """One-time parameter prepack (pad/concat), hoisted out of the per-call path."""
    dim_in, dim_out = w_dense.shape
    p = _round_up(dim_out, 128)
    pad_c = p - dim_out
    has_skip = w_skip is not None

    if b_dense is None:                     # bias=False case
        b_dense = jnp.zeros((dim_out,), dtype=w_dense.dtype)

    if has_skip:
        w_cat = jnp.concatenate(
            [jnp.pad(w_dense, ((0, 0), (0, pad_c))),
             jnp.pad(w_skip, ((0, 0), (0, pad_c)))], axis=1)   # (dim_in, 2P)
    else:
        # Identity skip: only W_dense; the kernel adds x after LayerNorm.
        w_cat = jnp.pad(w_dense, ((0, 0), (0, pad_c)))         # (dim_in, P)

    b = jnp.pad(jnp.reshape(b_dense, (1, dim_out)), ((0, 0), (0, pad_c)))
    g = jnp.pad(jnp.reshape(gamma, (1, dim_out)), ((0, 0), (0, pad_c)))
    bt = jnp.pad(jnp.reshape(beta, (1, dim_out)), ((0, 0), (0, pad_c)))
    return dict(w_cat=w_cat, b=b, gamma=g, beta=bt,
                dim_in=dim_in, dim_out=dim_out, p=p, has_skip=has_skip)


@functools.partial(jax.jit, static_argnames=("dim_out", "p", "has_skip", "tm"))
def _resblock_call(x, w_cat, b, gamma, beta, *, dim_out, p, has_skip, tm):
    n, dim_in = x.shape
    w_cols = w_cat.shape[1]

    # Big row tiles (amortize ~0.35us/step pipeline overhead), clamped for tiny n.
    # No padding of x and no epilogue slice: Pallas masks the ragged last tile.
    tm_eff = max(8, min(tm, _round_up(n, 8)))
    grid = (pl.cdiv(n, tm_eff),)

    kernel = functools.partial(resblock_kernel, dim_out=dim_out, p=p,
                               has_skip=has_skip)

    return pl.pallas_call(
        kernel,
        out_shape=jax.ShapeDtypeStruct((n, dim_out), x.dtype),
        grid_spec=pltpu.PrefetchScalarGridSpec(
            num_scalar_prefetch=0,
            grid=grid,
            in_specs=[
                pl.BlockSpec((tm_eff, dim_in), lambda i: (i, 0)),   # x row tile
                # Constant-index parameter blocks stay VMEM-resident across the
                # grid (~33 KiB here).  For very large dim_in*dim_out they could
                # be single-buffered (pipeline_mode=pl.Buffered(1)) or tiled over
                # the P axis with a second grid dimension on v7x.
                pl.BlockSpec((dim_in, w_cols), lambda i: (0, 0)),   # [Wd | Ws] / Wd
                pl.BlockSpec((1, p), lambda i: (0, 0)),             # dense bias
                pl.BlockSpec((1, p), lambda i: (0, 0)),             # LN gamma
                pl.BlockSpec((1, p), lambda i: (0, 0)),             # LN beta
            ],
            # Output block's last dim equals the full array dim: the kernel emits
            # exactly (n, dim_out), so no padded columns ever hit HBM and there is
            # no epilogue slice (masked vst when dim_out < 128, which is cheaper
            # than an extra full HBM pass on all generations).
            out_specs=pl.BlockSpec((tm_eff, dim_out), lambda i: (i, 0)),
        ),
        compiler_params=pltpu.CompilerParams(
            dimension_semantics=("parallel",),   # row tiles shard across v7x's 2 TCs
            vmem_limit_bytes=48 * 1024 * 1024,   # headroom under v7x's 64 MiB VMEM
        ),
    )(x, w_cat, b, gamma, beta)


def resblock_pallas(x, packed, *, tm=512):
    """Apply a prepacked ResBlock to x of shape (n, dim_in)."""
    return _resblock_call(x, packed["w_cat"], packed["b"], packed["gamma"],
                          packed["beta"], dim_out=packed["dim_out"],
                          p=packed["p"], has_skip=packed["has_skip"], tm=tm)


def resblock_ref(x, w_dense, b_dense, w_skip, gamma, beta):
    """Pure-JAX reference mirroring the PyTorch forward."""
    out = x @ w_dense
    if b_dense is not None:
        out = out + b_dense
    mean = jnp.mean(out, axis=-1, keepdims=True)
    var = jnp.mean((out - mean) ** 2, axis=-1, keepdims=True)
    out = (out - mean) / jnp.sqrt(var + LN_EPS) * gamma + beta
    identity = x if w_skip is None else x @ w_skip
    y = out + identity
    return y * jax.nn.sigmoid(y)


if __name__ == "__main__":
    key = jax.random.PRNGKey(0)

    # Case A: ResBlock(dim_in=32, dim_out=64) -> projection skip, 2-step row grid.
    N, DIM_IN, DIM_OUT = 1024, 32, 64
    kx, kwd, kbd, kws, kg, kb, key = jax.random.split(key, 7)
    x = jax.random.normal(kx, (N, DIM_IN), dtype=jnp.float32)
    bound = 1.0 / (DIM_IN ** 0.5)
    w_dense = jax.random.uniform(kwd, (DIM_IN, DIM_OUT), jnp.float32, -bound, bound)
    b_dense = jax.random.uniform(kbd, (DIM_OUT,), jnp.float32, -bound, bound)
    w_skip = jax.random.uniform(kws, (DIM_IN, DIM_OUT), jnp.float32, -bound, bound)
    gamma = 1.0 + 0.1 * jax.random.normal(kg, (DIM_OUT,), dtype=jnp.float32)
    beta = 0.1 * jax.random.normal(kb, (DIM_OUT,), dtype=jnp.float32)

    packed = prepack_resblock_params(w_dense, b_dense, w_skip, gamma, beta)  # once
    out = jax.block_until_ready(resblock_pallas(x, packed, tm=512))
    ref = resblock_ref(x, w_dense, b_dense, w_skip, gamma, beta)
    assert out.shape == (N, DIM_OUT)
    assert jnp.allclose(out, ref, atol=2e-5, rtol=2e-5), "case A mismatch vs reference"

    # Case B: ResBlock(dim_in=64, dim_out=64) -> identity skip + ragged last row tile.
    N2, DIM2 = 300, 64
    kx2, kwd2, kbd2, kg2, kb2, key = jax.random.split(key, 6)
    x2 = jax.random.normal(kx2, (N2, DIM2), dtype=jnp.float32)
    bound2 = 1.0 / (DIM2 ** 0.5)
    w_dense2 = jax.random.uniform(kwd2, (DIM2, DIM2), jnp.float32, -bound2, bound2)
    b_dense2 = jax.random.uniform(kbd2, (DIM2,), jnp.float32, -bound2, bound2)
    gamma2 = 1.0 + 0.1 * jax.random.normal(kg2, (DIM2,), dtype=jnp.float32)
    beta2 = 0.1 * jax.random.normal(kb2, (DIM2,), dtype=jnp.float32)

    packed2 = prepack_resblock_params(w_dense2, b_dense2, None, gamma2, beta2)
    out2 = jax.block_until_ready(resblock_pallas(x2, packed2, tm=512))
    ref2 = resblock_ref(x2, w_dense2, b_dense2, None, gamma2, beta2)
    assert out2.shape == (N2, DIM2)
    assert jnp.allclose(out2, ref2, atol=2e-5, rtol=2e-5), "case B mismatch vs reference"

    print("KERNEL_OK")
</pallas_src>

<mosaic_0001>
module attributes {stable_mosaic.version = 11 : i64} {
  func.func @resblock_kernel(%arg0: i32, %arg1: memref<512x32xf32, #tpu.memory_space<vmem>>, %arg2: memref<32x256xf32, #tpu.memory_space<vmem>>, %arg3: memref<1x128xf32, #tpu.memory_space<vmem>>, %arg4: memref<1x128xf32, #tpu.memory_space<vmem>>, %arg5: memref<1x128xf32, #tpu.memory_space<vmem>>, %arg6: memref<512x64xf32, #tpu.memory_space<vmem>>) attributes {dimension_semantics = [#tpu.dimension_semantics<parallel>], iteration_bounds = array<i64: 2>, scalar_prefetch = 0 : i64, scratch_operands = 0 : i64, tpu.core_type = #tpu.core_type<tc>, window_params = [{transform_indices = @transform_0, window_bounds = array<i64: 512, 32>}, {pipeline_mode = #tpu.pipeline_mode<synchronous>, transform_indices = @transform_1, window_bounds = array<i64: 32, 256>}, {pipeline_mode = #tpu.pipeline_mode<synchronous>, transform_indices = @transform_2, window_bounds = array<i64: 1, 128>}, {pipeline_mode = #tpu.pipeline_mode<synchronous>, transform_indices = @transform_3, window_bounds = array<i64: 1, 128>}, {pipeline_mode = #tpu.pipeline_mode<synchronous>, transform_indices = @transform_4, window_bounds = array<i64: 1, 128>}, {transform_indices = @transform_5, window_bounds = array<i64: 512, 64>}]} {
    %c0 = arith.constant 0 : index
    %c0_0 = arith.constant 0 : index
    %0 = vector.load %arg1[%c0, %c0_0] : memref<512x32xf32, #tpu.memory_space<vmem>>, vector<512x32xf32>
    %c0_1 = arith.constant 0 : index
    %c0_2 = arith.constant 0 : index
    %1 = vector.load %arg2[%c0_1, %c0_2] : memref<32x256xf32, #tpu.memory_space<vmem>>, vector<32x256xf32>
    %cst = arith.constant dense<0.000000e+00> : vector<512x256xf32>
    %2 = tpu.matmul %0, %1, %cst {dimension_numbers = #tpu.dot_dimension_numbers<[1], [0], [0], [1], [0, 0, 1, 1], [], []>} : vector<512x32xf32>, vector<32x256xf32>, vector<512x256xf32> -> vector<512x256xf32>
    %3 = vector.extract_strided_slice %2 {offsets = [0, 0], sizes = [512, 128], strides = [1, 1]} : vector<512x256xf32> to vector<512x128xf32>
    %c0_3 = arith.constant 0 : index
    %c0_4 = arith.constant 0 : index
    %4 = vector.load %arg3[%c0_3, %c0_4] : memref<1x128xf32, #tpu.memory_space<vmem>>, vector<1x128xf32>
    %5 = vector.broadcast %4 : vector<1x128xf32> to vector<512x128xf32>
    %6 = arith.addf %3, %5 : vector<512x128xf32>
    %cst_5 = arith.constant dense<0.000000e+00> : vector<512xf32>
    %7 = vector.multi_reduction <add>, %6, %cst_5 [1] : vector<512x128xf32> to vector<512xf32>
    %8 = vector.shape_cast %7 : vector<512xf32> to vector<512x1xf32>
    %cst_6 = arith.constant 1.562500e-02 : f32
    %9 = vector.broadcast %cst_6 : f32 to vector<512x1xf32>
    %10 = arith.mulf %8, %9 : vector<512x1xf32>
    %11 = vector.broadcast %10 : vector<512x1xf32> to vector<512x128xf32>
    %12 = arith.subf %6, %11 : vector<512x128xf32>
    %13 = tpu.iota {dimensions = array<i32: 1>} : vector<512x128xi32>
    %c64_i32 = arith.constant 64 : i32
    %14 = vector.broadcast %c64_i32 : i32 to vector<512x128xi32>
    %15 = arith.cmpi slt, %13, %14 : vector<512x128xi32>
    %cst_7 = arith.constant 0.000000e+00 : f32
    %16 = vector.broadcast %cst_7 : f32 to vector<512x128xf32>
    %17 = arith.select %15, %12, %16 : vector<512x128xi1>, vector<512x128xf32>
    %18 = arith.mulf %17, %17 : vector<512x128xf32>
    %cst_8 = arith.constant dense<0.000000e+00> : vector<512xf32>
    %19 = vector.multi_reduction <add>, %18, %cst_8 [1] : vector<512x128xf32> to vector<512xf32>
    %20 = vector.shape_cast %19 : vector<512xf32> to vector<512x1xf32>
    %cst_9 = arith.constant 1.562500e-02 : f32
    %21 = vector.broadcast %cst_9 : f32 to vector<512x1xf32>
    %22 = arith.mulf %20, %21 : vector<512x1xf32>
    %cst_10 = arith.constant 9.99999974E-6 : f32
    %23 = vector.broadcast %cst_10 : f32 to vector<512x1xf32>
    %24 = arith.addf %22, %23 : vector<512x1xf32>
    %25 = math.rsqrt %24 : vector<512x1xf32>
    %26 = vector.broadcast %25 : vector<512x1xf32> to vector<512x128xf32>
    %27 = arith.mulf %12, %26 : vector<512x128xf32>
    %c0_11 = arith.constant 0 : index
    %c0_12 = arith.constant 0 : index
    %28 = vector.load %arg4[%c0_11, %c0_12] : memref<1x128xf32, #tpu.memory_space<vmem>>, vector<1x128xf32>
    %29 = vector.broadcast %28 : vector<1x128xf32> to vector<512x128xf32>
    %30 = arith.mulf %27, %29 : vector<512x128xf32>
    %c0_13 = arith.constant 0 : index
    %c0_14 = arith.constant 0 : index
    %31 = vector.load %arg5[%c0_13, %c0_14] : memref<1x128xf32, #tpu.memory_space<vmem>>, vector<1x128xf32>
    %32 = vector.broadcast %31 : vector<1x128xf32> to vector<512x128xf32>
    %33 = arith.addf %30, %32 : vector<512x128xf32>
    %34 = vector.extract_strided_slice %2 {offsets = [0, 128], sizes = [512, 128], strides = [1, 1]} : vector<512x256xf32> to vector<512x128xf32>
    %35 = arith.addf %33, %34 : vector<512x128xf32>
    %36 = vector.extract_strided_slice %35 {offsets = [0, 0], sizes = [512, 64], strides = [1, 1]} : vector<512x128xf32> to vector<512x64xf32>
    %37 = arith.negf %36 : vector<512x64xf32>
    %38 = math.exp %37 : vector<512x64xf32>
    %cst_15 = arith.constant 1.000000e+00 : f32
    %39 = vector.broadcast %cst_15 : f32 to vector<512x64xf32>
    %40 = arith.addf %39, %38 : vector<512x64xf32>
    %41 = arith.divf %39, %40 : vector<512x64xf32>
    %42 = arith.mulf %36, %41 : vector<512x64xf32>
    %c0_16 = arith.constant 0 : index
    %c0_17 = arith.constant 0 : index
    %43 = vector.load %arg6[%c0_16, %c0_17] : memref<512x64xf32, #tpu.memory_space<vmem>>, vector<512x64xf32>
    tpu.vector_store %arg6[%c0_16, %c0_17], %42 {strides = array<i32>} : memref<512x64xf32, #tpu.memory_space<vmem>>, vector<512x64xf32>,
    return
  }
  func.func @transform_0(%arg0: i32) -> (i32, i32) {
    %c0_i32 = arith.constant 0 : i32
    %c0_i32_0 = arith.constant 0 : i32
    return %arg0, %c0_i32 : i32, i32
  }
  func.func @transform_1(%arg0: i32) -> (i32, i32) {
    %c0_i32 = arith.constant 0 : i32
    %c0_i32_0 = arith.constant 0 : i32
    %c0_i32_1 = arith.constant 0 : i32
    return %c0_i32, %c0_i32_0 : i32, i32
  }
  func.func @transform_2(%arg0: i32) -> (i32, i32) {
    %c0_i32 = arith.constant 0 : i32
    %c0_i32_0 = arith.constant 0 : i32
    %c0_i32_1 = arith.constant 0 : i32
    return %c0_i32, %c0_i32_0 : i32, i32
  }
  func.func @transform_3(%arg0: i32) -> (i32, i32) {
    %c0_i32 = arith.constant 0 : i32
    %c0_i32_0 = arith.constant 0 : i32
    %c0_i32_1 = arith.constant 0 : i32
    return %c0_i32, %c0_i32_0 : i32, i32
  }
  func.func @transform_4(%arg0: i32) -> (i32, i32) {
    %c0_i32 = arith.constant 0 : i32
    %c0_i32_0 = arith.constant 0 : i32
    %c0_i32_1 = arith.constant 0 : i32
    return %c0_i32, %c0_i32_0 : i32, i32
  }
  func.func @transform_5(%arg0: i32) -> (i32, i32) {
    %c0_i32 = arith.constant 0 : i32
    %c0_i32_0 = arith.constant 0 : i32
    return %arg0, %c0_i32 : i32, i32
  }
}

</mosaic_0001>

<llo_original>
// kernel: _resblock_call.1
$region0: #{_resblock_call.1}
  #allocation0 [shape = 'u32[]', space=smem, size = 0x4, offset = 0x4, fixed_abs, tag = 'smem constant byte address 0x4 - core index']
  #allocation1 [shape = 'u32[72,128]{1,0:T(1,128)}', space=vmem, size = 0x9000, scoped, tag = 'internal scratch']
  %s0 = inlined_call_operand.vmem [shape: f32[1024,32], index: 0, kind: input, shape index: {}]
  %s1 = inlined_call_operand.vmem [shape: f32[32,256], index: 1, kind: input, shape index: {}]
  %s2 = inlined_call_operand.vmem [shape: f32[1,128], index: 2, kind: input, shape index: {}]
  %s3 = inlined_call_operand.vmem [shape: f32[1,128], index: 3, kind: input, shape index: {}]
  %s4 = inlined_call_operand.vmem [shape: f32[1,128], index: 4, kind: input, shape index: {}]
  %s5 = inlined_call_operand.vmem [shape: f32[1024,64], index: 5, kind: output, shape index: {}]
  %s6 = sld [smem:[#allocation0]]
  $region53: #{_resblock_call.1} parent=0
    _
  %s8 = ssub.s32 1, %s6
  %s9 = scalar_select 0, %s8, %s6
  loop: start=0, step=1, limit=4
  $region2: #{_resblock_call.1} parent=0 // loop_pre_header
    _
  $region3: #{_resblock_call.1} parent=0 // loop_header
    %s11 = sphi 0, %s15
    %p12 = scmp.ge.s32.totalorder %s11, 4
    %s21 = sphi 0, %s23
    %s24 = sphi 0, %s21
    %s25 = sphi 0, %s24
    %s41 = sphi 0, %s25
    %s45 = sphi 0, %s45
    %s47 = sphi 0, %s45
    %s48 = sphi 0, %s47
    %s62 = sphi 0, %s48
    %s66 = sphi 0, %s66
    %s68 = sphi 0, %s66
    %s69 = sphi 0, %s68
    %s83 = sphi 0, %s69
    %s87 = sphi 0, %s87
    %s89 = sphi 0, %s87
    %s90 = sphi 0, %s89
    %s104 = sphi 0, %s90
    %s108 = sphi 0, %s108
    %s110 = sphi 0, %s108
    %s111 = sphi 0, %s110
    %s125 = sphi 0, %s111
    %s131 = sphi 0, %s133
    %s134 = sphi 0, %s131
    %s135 = sphi 0, %s134
    %s151 = sphi 0, %s135
  $region4: #{_resblock_call.1} parent=0 // loop_header_branch
    %14 = sbr.rel (%p12) target = $region8
  $region5: #{_resblock_call.1} parent=0 // loop_body
    %s16 = ssub.s32 %s11, 1
    %s17 = ssub.s32 %s11, 2
    %s18 = sadd.s32 %s11, 1
    %s19 = ssub.s32 %s11, %s18
    %p20 = scmp.eq.s32.totalorder %s19, 0
    %s22 = sadd.s32 %s21, 1
    %s23 = scalar_select %p20, %s21, %s22
    %p26 = pneg %p20
    %p27 = scmp.eq.s32.totalorder %s11, 1
    %p28 = por %p26, %p27
    %p29 = scmp.ne.s32.totalorder %s21, %s24
    %p30 = scmp.eq.s32.totalorder %s11, 0
    %p31 = por %p29, %p30
    %p32 = scmp.ne.s32.totalorder %s21, %s24
    %p33 = scmp.eq.s32.totalorder %s16, 1
    %p34 = por %p32, %p33
    %p35 = scmp.ne.s32.totalorder %s24, %s25
    %p36 = scmp.eq.s32.totalorder %s16, 0
    %p37 = por %p35, %p36
    %p38 = scmp.ne.s32.totalorder %s24, %s25
    %p39 = scmp.eq.s32.totalorder %s17, 1
    %p40 = por %p38, %p39
    %p42 = scmp.ne.s32.totalorder %s25, %s41
    %p43 = scmp.eq.s32.totalorder %s17, 0
    %p44 = por %p42, %p43
    %s46 = sadd.s32 %s45, 1
    %p49 = scmp.eq.s32.totalorder %s11, 1
    %p50 = scmp.ne.s32.totalorder %s45, %s47
    %p51 = scmp.eq.s32.totalorder %s11, 0
    %p52 = por %p50, %p51
    %p53 = scmp.ne.s32.totalorder %s45, %s47
    %p54 = scmp.eq.s32.totalorder %s16, 1
    %p55 = por %p53, %p54
    %p56 = scmp.ne.s32.totalorder %s47, %s48
    %p57 = scmp.eq.s32.totalorder %s16, 0
    %p58 = por %p56, %p57
    %p59 = scmp.ne.s32.totalorder %s47, %s48
    %p60 = scmp.eq.s32.totalorder %s17, 1
    %p61 = por %p59, %p60
    %p63 = scmp.ne.s32.totalorder %s48, %s62
    %p64 = scmp.eq.s32.totalorder %s17, 0
    %p65 = por %p63, %p64
    %s67 = sadd.s32 %s66, 1
    %p70 = scmp.eq.s32.totalorder %s11, 1
    %p71 = scmp.ne.s32.totalorder %s66, %s68
    %p72 = scmp.eq.s32.totalorder %s11, 0
    %p73 = por %p71, %p72
    %p74 = scmp.ne.s32.totalorder %s66, %s68
    %p75 = scmp.eq.s32.totalorder %s16, 1
    %p76 = por %p74, %p75
    %p77 = scmp.ne.s32.totalorder %s68, %s69
    %p78 = scmp.eq.s32.totalorder %s16, 0
    %p79 = por %p77, %p78
    %p80 = scmp.ne.s32.totalorder %s68, %s69
    %p81 = scmp.eq.s32.totalorder %s17, 1
    %p82 = por %p80, %p81
    %p84 = scmp.ne.s32.totalorder %s69, %s83
    %p85 = scmp.eq.s32.totalorder %s17, 0
    %p86 = por %p84, %p85
    %s88 = sadd.s32 %s87, 1
    %p91 = scmp.eq.s32.totalorder %s11, 1
    %p92 = scmp.ne.s32.totalorder %s87, %s89
    %p93 = scmp.eq.s32.totalorder %s11, 0
    %p94 = por %p92, %p93
    %p95 = scmp.ne.s32.totalorder %s87, %s89
    %p96 = scmp.eq.s32.totalorder %s16, 1
    %p97 = por %p95, %p96
    %p98 = scmp.ne.s32.totalorder %s89, %s90
    %p99 = scmp.eq.s32.totalorder %s16, 0
    %p100 = por %p98, %p99
    %p101 = scmp.ne.s32.totalorder %s89, %s90
    %p102 = scmp.eq.s32.totalorder %s17, 1
    %p103 = por %p101, %p102
    %p105 = scmp.ne.s32.totalorder %s90, %s104
    %p106 = scmp.eq.s32.totalorder %s17, 0
    %p107 = por %p105, %p106
    %s109 = sadd.s32 %s108, 1
    %p112 = scmp.eq.s32.totalorder %s11, 1
    %p113 = scmp.ne.s32.totalorder %s108, %s110
    %p114 = scmp.eq.s32.totalorder %s11, 0
    %p115 = por %p113, %p114
    %p116 = scmp.ne.s32.totalorder %s108, %s110
    %p117 = scmp.eq.s32.totalorder %s16, 1
    %p118 = por %p116, %p117
    %p119 = scmp.ne.s32.totalorder %s110, %s111
    %p120 = scmp.eq.s32.totalorder %s16, 0
    %p121 = por %p119, %p120
    %p122 = scmp.ne.s32.totalorder %s110, %s111
    %p123 = scmp.eq.s32.totalorder %s17, 1
    %p124 = por %p122, %p123
    %p126 = scmp.ne.s32.totalorder %s111, %s125
    %p127 = scmp.eq.s32.totalorder %s17, 0
    %p128 = por %p126, %p127
    %s129 = ssub.s32 %s11, %s18
    %p130 = scmp.eq.s32.totalorder %s129, 0
    %s132 = sadd.s32 %s131, 1
    %s133 = scalar_select %p130, %s131, %s132
    %p136 = pneg %p130
    %p137 = scmp.eq.s32.totalorder %s11, 1
    %p138 = por %p136, %p137
    %p139 = scmp.ne.s32.totalorder %s131, %s134
    %p140 = scmp.eq.s32.totalorder %s11, 0
    %p141 = por %p139, %p140
    %p142 = scmp.ne.s32.totalorder %s131, %s134
    %p143 = scmp.eq.s32.totalorder %s16, 1
    %p144 = por %p142, %p143
    %p145 = scmp.ne.s32.totalorder %s134, %s135
    %p146 = scmp.eq.s32.totalorder %s16, 0
    %p147 = por %p145, %p146
    %p148 = scmp.ne.s32.totalorder %s134, %s135
    %p149 = scmp.eq.s32.totalorder %s17, 1
    %p150 = por %p148, %p149
    %p152 = scmp.ne.s32.totalorder %s135, %s151
    %p153 = scmp.eq.s32.totalorder %s17, 0
    %p154 = por %p152, %p153
    %p155 = scmp.le.s32.totalorder 1, %s11
    %p156 = scmp.lt.s32.totalorder %s11, 3
    %p157 = pnand %p155, %p156
    %p158 = pneg %p157
    // Predicated region
    $region9: #{_resblock_call.1} parent=5 // pred_check
      _
    $region10: #{_resblock_call.1} parent=5 // pred_check_branch
      %160 = sbr.rel (%p157) target = $region12
    $region11: #{_resblock_call.1} parent=5 // pred_region
      %s161 = ssub.s32 %s11, 1
      // Predicated region
      $region13: #{_resblock_call.1} parent=11 // pred_check
        %p162 = pneg %p58
      $region14: #{_resblock_call.1} parent=11 // pred_check_branch
        %164 = sbr.rel (%p162) target = $region16
      $region15: #{_resblock_call.1} parent=11 // pred_region
        _
      $region16: #{_resblock_call.1} parent=11 // pred_fallthru
        _
      // Predicated region
      $region17: #{_resblock_call.1} parent=11 // pred_check
        %p165 = pneg %p79
      $region18: #{_resblock_call.1} parent=11 // pred_check_branch
        %167 = sbr.rel (%p165) target = $region20
      $region19: #{_resblock_call.1} parent=11 // pred_region
        _
      $region20: #{_resblock_call.1} parent=11 // pred_fallthru
        _
      // Predicated region
      $region21: #{_resblock_call.1} parent=11 // pred_check
        %p168 = pneg %p100
      $region22: #{_resblock_call.1} parent=11 // pred_check_branch
        %170 = sbr.rel (%p168) target = $region24
      $region23: #{_resblock_call.1} parent=11 // pred_region
        _
      $region24: #{_resblock_call.1} parent=11 // pred_fallthru
        _
      // Predicated region
      $region25: #{_resblock_call.1} parent=11 // pred_check
        %p171 = pneg %p121
      $region26: #{_resblock_call.1} parent=11 // pred_check_branch
        %173 = sbr.rel (%p171) target = $region28
      $region27: #{_resblock_call.1} parent=11 // pred_region
        _
      $region28: #{_resblock_call.1} parent=11 // pred_fallthru
        _
    $region12: #{_resblock_call.1} parent=5 // pred_fallthru
      _
    %p174 = scmp.lt.s32.totalorder %s11, 2
    // Predicated region
    $region29: #{_resblock_call.1} parent=5 // pred_check
      %p175 = pneg %p174
    $region30: #{_resblock_call.1} parent=5 // pred_check_branch
      %177 = sbr.rel (%p175) target = $region32
    $region31: #{_resblock_call.1} parent=5 // pred_region
      // Predicated region
      $region33: #{_resblock_call.1} parent=31 // pred_check
        %p178 = pneg %p31
      $region34: #{_resblock_call.1} parent=31 // pred_check_branch
        %180 = sbr.rel (%p178) target = $region36
      $region35: #{_resblock_call.1} parent=31 // pred_region
        %s181 = smul.u32 64, %s11
        %p182 = scmp.lt.s32.totalorder %s181, 127
        %s183 = scalar_select %p182, %s181, 127
        %s184 = smul.addr %s183, 8
        %s185 = scalar_lea.vmem %s0, %s184
        %s186 = smul.u32 64, %s11
      $region36: #{_resblock_call.1} parent=31 // pred_fallthru
        _
    $region32: #{_resblock_call.1} parent=5 // pred_fallthru
      _
    %p187 = scmp.le.s32.totalorder 1, %s11
    %p188 = scmp.lt.s32.totalorder %s11, 3
    %p189 = pnand %p187, %p188
    %p190 = pneg %p189
    // Predicated region
    $region37: #{_resblock_call.1} parent=5 // pred_check
      _
    $region38: #{_resblock_call.1} parent=5 // pred_check_branch
      %192 = sbr.rel (%p189) target = $region40
    $region39: #{_resblock_call.1} parent=5 // pred_region
      %s193 = ssub.s32 %s11, 1
      %s194 = smul.u32 64, %s16
      %p195 = scmp.lt.s32.totalorder %s194, 127
      %s196 = scalar_select %p195, %s194, 127
      %s197 = smul.addr %s196, 8
      %s198 = scalar_lea.vmem %s0, %s197
      %p199 = pneg %p37
      %p200 = pneg %p34
      %p201 = pneg %p58
      %p202 = pneg %p55
      %p203 = pneg %p79
      %p204 = pneg %p76
      %p205 = pneg %p100
      %p206 = pneg %p97
      %p207 = pneg %p121
      %p208 = pneg %p118
      %p209 = pneg %p147
      %p210 = pneg %p144
      %s211 = smul.u32 64, %s16
      %p212 = scmp.lt.s32.totalorder %s211, 127
      %s213 = scalar_select %p212, %s211, 127
      %s214 = smul.addr %s213, 8
      %s215 = scalar_lea.vmem %s5, %s214
      %s216 = smul.u32 64, %s16
      %p217 = scmp.lt.s32.totalorder %s216, 127
      %s218 = scalar_select %p217, %s216, 127
      %s219 = smul.addr %s218, 8
      %s220 = scalar_lea.vmem %s0, %s219
      %s221 = smul.u32 64, %s16
      %s222 = smul.u32 64, %s16
      %p223 = scmp.lt.s32.totalorder %s222, 127
      %s224 = scalar_select %p223, %s222, 127
      %s225 = smul.addr %s224, 8
      %s226 = scalar_lea.vmem %s5, %s225
      %s227 = smul.u32 64, %s16
      %v228 = vld [vmem:[%s220] sm:$0xff]
      %v229 = vld [vmem:[%s220 + $0x8] sm:$0xff]
      %v230 = vld [vmem:[%s220 + $0x10] sm:$0xff]
      %v231 = vld [vmem:[%s220 + $0x18] sm:$0xff]
      %v232 = vld [vmem:[%s220 + $0x20] sm:$0xff]
      %v233 = vld [vmem:[%s220 + $0x28] sm:$0xff]
      %v234 = vld [vmem:[%s220 + $0x30] sm:$0xff]
      %v235 = vld [vmem:[%s220 + $0x38] sm:$0xff]
      %v236 = vld [vmem:[%s220 + $0x40] sm:$0xff]
      %v237 = vld [vmem:[%s220 + $0x48] sm:$0xff]
      %v238 = vld [vmem:[%s220 + $0x50] sm:$0xff]
      %v239 = vld [vmem:[%s220 + $0x58] sm:$0xff]
      %v240 = vld [vmem:[%s220 + $0x60] sm:$0xff]
      %v241 = vld [vmem:[%s220 + $0x68] sm:$0xff]
      %v242 = vld [vmem:[%s220 + $0x70] sm:$0xff]
      %v243 = vld [vmem:[%s220 + $0x78] sm:$0xff]
      %v244 = vld [vmem:[%s220 + $0x80] sm:$0xff]
      %v245 = vld [vmem:[%s220 + $0x88] sm:$0xff]
      %v246 = vld [vmem:[%s220 + $0x90] sm:$0xff]
      %v247 = vld [vmem:[%s220 + $0x98] sm:$0xff]
      %v248 = vld [vmem:[%s220 + $0xa0] sm:$0xff]
      %v249 = vld [vmem:[%s220 + $0xa8] sm:$0xff]
      %v250 = vld [vmem:[%s220 + $0xb0] sm:$0xff]
      %v251 = vld [vmem:[%s220 + $0xb8] sm:$0xff]
      %v252 = vld [vmem:[%s220 + $0xc0] sm:$0xff]
      %v253 = vld [vmem:[%s220 + $0xc8] sm:$0xff]
      %v254 = vld [vmem:[%s220 + $0xd0] sm:$0xff]
      %v255 = vld [vmem:[%s220 + $0xd8] sm:$0xff]
      %v256 = vld [vmem:[%s220 + $0xe0] sm:$0xff]
      %v257 = vld [vmem:[%s220 + $0xe8] sm:$0xff]
      %v258 = vld [vmem:[%s220 + $0xf0] sm:$0xff]
      %v259 = vld [vmem:[%s220 + $0xf8] sm:$0xff]
      %v260 = vld [vmem:[%s220 + $0x100] sm:$0xff]
      %v261 = vld [vmem:[%s220 + $0x108] sm:$0xff]
      %v262 = vld [vmem:[%s220 + $0x110] sm:$0xff]
      %v263 = vld [vmem:[%s220 + $0x118] sm:$0xff]
      %v264 = vld [vmem:[%s220 + $0x120] sm:$0xff]
      %v265 = vld [vmem:[%s220 + $0x128] sm:$0xff]
      %v266 = vld [vmem:[%s220 + $0x130] sm:$0xff]
      %v267 = vld [vmem:[%s220 + $0x138] sm:$0xff]
      %v268 = vld [vmem:[%s220 + $0x140] sm:$0xff]
      %v269 = vld [vmem:[%s220 + $0x148] sm:$0xff]
      %v270 = vld [vmem:[%s220 + $0x150] sm:$0xff]
      %v271 = vld [vmem:[%s220 + $0x158] sm:$0xff]
      %v272 = vld [vmem:[%s220 + $0x160] sm:$0xff]
      %v273 = vld [vmem:[%s220 + $0x168] sm:$0xff]
      %v274 = vld [vmem:[%s220 + $0x170] sm:$0xff]
      %v275 = vld [vmem:[%s220 + $0x178] sm:$0xff]
      %v276 = vld [vmem:[%s220 + $0x180] sm:$0xff]
      %v277 = vld [vmem:[%s220 + $0x188] sm:$0xff]
      %v278 = vld [vmem:[%s220 + $0x190] sm:$0xff]
      %v279 = vld [vmem:[%s220 + $0x198] sm:$0xff]
      %v280 = vld [vmem:[%s220 + $0x1a0] sm:$0xff]
      %v281 = vld [vmem:[%s220 + $0x1a8] sm:$0xff]
      %v282 = vld [vmem:[%s220 + $0x1b0] sm:$0xff]
      %v283 = vld [vmem:[%s220 + $0x1b8] sm:$0xff]
      %v284 = vld [vmem:[%s220 + $0x1c0] sm:$0xff]
      %v285 = vld [vmem:[%s220 + $0x1c8] sm:$0xff]
      %v286 = vld [vmem:[%s220 + $0x1d0] sm:$0xff]
      %v287 = vld [vmem:[%s220 + $0x1d8] sm:$0xff]
      %v288 = vld [vmem:[%s220 + $0x1e0] sm:$0xff]
      %v289 = vld [vmem:[%s220 + $0x1e8] sm:$0xff]
      %v290 = vld [vmem:[%s220 + $0x1f0] sm:$0xff]
      %v291 = vld [vmem:[%s220 + $0x1f8] sm:$0xff]
      %v292 = vld [vmem:[%s1] sm:$0xff]
      %v293 = vld [vmem:[%s1 + $0x8] sm:$0xff]
      %v294 = vld [vmem:[%s1 + $0x10] sm:$0xff]
      %v295 = vld [vmem:[%s1 + $0x18] sm:$0xff]
      %v296 = vld [vmem:[%s1 + $0x20] sm:$0xff]
      %v297 = vld [vmem:[%s1 + $0x28] sm:$0xff]
      %v298 = vld [vmem:[%s1 + $0x30] sm:$0xff]
      %v299 = vld [vmem:[%s1 + $0x38] sm:$0xff]
      %vm300 = vcmask 261120
      %v302 = vsel %vm300, %v228, 0
      %v305 = vsel %vm300, %v229, 0
      %v308 = vsel %vm300, %v230, 0
      %v311 = vsel %vm300, %v231, 0
      %v314 = vsel %vm300, %v232, 0
      %v317 = vsel %vm300, %v233, 0
      %v320 = vsel %vm300, %v234, 0
      %v323 = vsel %vm300, %v235, 0
      %v326 = vsel %vm300, %v236, 0
      %v329 = vsel %vm300, %v237, 0
      %v332 = vsel %vm300, %v238, 0
      %v335 = vsel %vm300, %v239, 0
      %v338 = vsel %vm300, %v240, 0
      %v341 = vsel %vm300, %v241, 0
      %v344 = vsel %vm300, %v242, 0
      %v347 = vsel %vm300, %v243, 0
      %v350 = vsel %vm300, %v244, 0
      %v353 = vsel %vm300, %v245, 0
      %v356 = vsel %vm300, %v246, 0
      %v359 = vsel %vm300, %v247, 0
      %v362 = vsel %vm300, %v248, 0
      %v365 = vsel %vm300, %v249, 0
      %v368 = vsel %vm300, %v250, 0
      %v371 = vsel %vm300, %v251, 0
      %v374 = vsel %vm300, %v252, 0
      %v377 = vsel %vm300, %v253, 0
      %v380 = vsel %vm300, %v254, 0
      %v383 = vsel %vm300, %v255, 0
      %v386 = vsel %vm300, %v256, 0
      %v389 = vsel %vm300, %v257, 0
      %v392 = vsel %vm300, %v258, 0
      %v395 = vsel %vm300, %v259, 0
      %v398 = vsel %vm300, %v260, 0
      %v401 = vsel %vm300, %v261, 0
      %v404 = vsel %vm300, %v262, 0
      %v407 = vsel %vm300, %v263, 0
      %v410 = vsel %vm300, %v264, 0
      %v413 = vsel %vm300, %v265, 0
      %v416 = vsel %vm300, %v266, 0
      %v419 = vsel %vm300, %v267, 0
      %v422 = vsel %vm300, %v268, 0
      %v425 = vsel %vm300, %v269, 0
      %v428 = vsel %vm300, %v270, 0
      %v431 = vsel %vm300, %v271, 0
      %v434 = vsel %vm300, %v272, 0
      %v437 = vsel %vm300, %v273, 0
      %v440 = vsel %vm300, %v274, 0
      %v443 = vsel %vm300, %v275, 0
      %v446 = vsel %vm300, %v276, 0
      %v449 = vsel %vm300, %v277, 0
      %v452 = vsel %vm300, %v278, 0
      %v455 = vsel %vm300, %v279, 0
      %v458 = vsel %vm300, %v280, 0
      %v461 = vsel %vm300, %v281, 0
      %v464 = vsel %vm300, %v282, 0
      %v467 = vsel %vm300, %v283, 0
      %v470 = vsel %vm300, %v284, 0
      %v473 = vsel %vm300, %v285, 0
      %v476 = vsel %vm300, %v286, 0
      %v479 = vsel %vm300, %v287, 0
      %v482 = vsel %vm300, %v288, 0
      %v485 = vsel %vm300, %v289, 0
      %v488 = vsel %vm300, %v290, 0
      %v491 = vsel %vm300, %v291, 0
      %493 = vmatpush.msra.mxu0 0.0
      %494 = vmatpush.msra.mxu0 0.0
      %495 = vmatpush.msra.mxu0 0.0
      %496 = vmatpush.msra.mxu0 0.0
      %497 = vmatpush.msra.mxu0 0.0
      %498 = vmatpush.msra.mxu0 0.0
      %499 = vmatpush.msra.mxu0 0.0
      %500 = vmatpush.msra.mxu0 0.0
      %501 = vmatpush.msra.mxu0 0.0
      %502 = vmatpush.msra.mxu0 0.0
      %503 = vmatpush.msra.mxu0 0.0
      %504 = vmatpush.msra.mxu0 0.0
      %505 = vmatpush.msra.mxu0 %v298
      %506 = vmatpush.msra.mxu0 %v296
      %507 = vmatpush.msra.mxu0 %v294
      %508 = vmatpush.msra.mxu0 %v292
      %509 = vmatmul.f32.gmra.mxu0 %v302
      %v510 = vpop.f32.mrf.mxu0
      %v511 = vadd.f32 0.0, %v510
      %512 = vmatmul.f32.gmra.mxu0 %v305
      %v513 = vpop.f32.mrf.mxu0
      %v514 = vadd.f32 0.0, %v513
      %515 = vmatmul.f32.gmra.mxu0 %v308
      %v516 = vpop.f32.mrf.mxu0
      %v517 = vadd.f32 0.0, %v516
      %518 = vmatmul.f32.gmra.mxu0 %v311
      %v519 = vpop.f32.mrf.mxu0
      %v520 = vadd.f32 0.0, %v519
      %521 = vmatmul.f32.gmra.mxu0 %v314
      %v522 = vpop.f32.mrf.mxu0
      %v523 = vadd.f32 0.0, %v522
      %524 = vmatmul.f32.gmra.mxu0 %v317
      %v525 = vpop.f32.mrf.mxu0
      %v526 = vadd.f32 0.0, %v525
      %527 = vmatmul.f32.gmra.mxu0 %v320
      %v528 = vpop.f32.mrf.mxu0
      %v529 = vadd.f32 0.0, %v528
      %530 = vmatmul.f32.gmra.mxu0 %v323
      %v531 = vpop.f32.mrf.mxu0
      %v532 = vadd.f32 0.0, %v531
      %533 = vmatmul.f32.gmra.mxu0 %v326
      %v534 = vpop.f32.mrf.mxu0
      %v535 = vadd.f32 0.0, %v534
      %536 = vmatmul.f32.gmra.mxu0 %v329
      %v537 = vpop.f32.mrf.mxu0
      %v538 = vadd.f32 0.0, %v537
      %539 = vmatmul.f32.gmra.mxu0 %v332
      %v540 = vpop.f32.mrf.mxu0
      %v541 = vadd.f32 0.0, %v540
      %542 = vmatmul.f32.gmra.mxu0 %v335
      %v543 = vpop.f32.mrf.mxu0
      %v544 = vadd.f32 0.0, %v543
      %545 = vmatmul.f32.gmra.mxu0 %v338
      %v546 = vpop.f32.mrf.mxu0
      %v547 = vadd.f32 0.0, %v546
      %548 = vmatmul.f32.gmra.mxu0 %v341
      %v549 = vpop.f32.mrf.mxu0
      %v550 = vadd.f32 0.0, %v549
      %551 = vmatmul.f32.gmra.mxu0 %v344
      %v552 = vpop.f32.mrf.mxu0
      %v553 = vadd.f32 0.0, %v552
      %554 = vmatmul.f32.gmra.mxu0 %v347
      %v555 = vpop.f32.mrf.mxu0
      %v556 = vadd.f32 0.0, %v555
      %557 = vmatmul.f32.gmra.mxu0 %v350
      %v558 = vpop.f32.mrf.mxu0
      %v559 = vadd.f32 0.0, %v558
      %560 = vmatmul.f32.gmra.mxu0 %v353
      %v561 = vpop.f32.mrf.mxu0
      %v562 = vadd.f32 0.0, %v561
      %563 = vmatmul.f32.gmra.mxu0 %v356
      %v564 = vpop.f32.mrf.mxu0
      %v565 = vadd.f32 0.0, %v564
      %566 = vmatmul.f32.gmra.mxu0 %v359
      %v567 = vpop.f32.mrf.mxu0
      %v568 = vadd.f32 0.0, %v567
      %569 = vmatmul.f32.gmra.mxu0 %v362
      %v570 = vpop.f32.mrf.mxu0
      %v571 = vadd.f32 0.0, %v570
      %572 = vmatmul.f32.gmra.mxu0 %v365
      %v573 = vpop.f32.mrf.mxu0
      %v574 = vadd.f32 0.0, %v573
      %575 = vmatmul.f32.gmra.mxu0 %v368
      %v576 = vpop.f32.mrf.mxu0
      %v577 = vadd.f32 0.0, %v576
      %578 = vmatmul.f32.gmra.mxu0 %v371
      %v579 = vpop.f32.mrf.mxu0
      %v580 = vadd.f32 0.0, %v579
      %581 = vmatmul.f32.gmra.mxu0 %v374
      %v582 = vpop.f32.mrf.mxu0
      %v583 = vadd.f32 0.0, %v582
      %584 = vmatmul.f32.gmra.mxu0 %v377
      %v585 = vpop.f32.mrf.mxu0
      %v586 = vadd.f32 0.0, %v585
      %587 = vmatmul.f32.gmra.mxu0 %v380
      %v588 = vpop.f32.mrf.mxu0
      %v589 = vadd.f32 0.0, %v588
      %590 = vmatmul.f32.gmra.mxu0 %v383
      %v591 = vpop.f32.mrf.mxu0
      %v592 = vadd.f32 0.0, %v591
      %593 = vmatmul.f32.gmra.mxu0 %v386
      %v594 = vpop.f32.mrf.mxu0
      %v595 = vadd.f32 0.0, %v594
      %596 = vmatmul.f32.gmra.mxu0 %v389
      %v597 = vpop.f32.mrf.mxu0
      %v598 = vadd.f32 0.0, %v597
      %599 = vmatmul.f32.gmra.mxu0 %v392
      %v600 = vpop.f32.mrf.mxu0
      %v601 = vadd.f32 0.0, %v600
      %602 = vmatmul.f32.gmra.mxu0 %v395
      %v603 = vpop.f32.mrf.mxu0
      %v604 = vadd.f32 0.0, %v603
      %605 = vmatmul.f32.gmra.mxu0 %v398
      %v606 = vpop.f32.mrf.mxu0
      %v607 = vadd.f32 0.0, %v606
      %608 = vmatmul.f32.gmra.mxu0 %v401
      %v609 = vpop.f32.mrf.mxu0
      %v610 = vadd.f32 0.0, %v609
      %611 = vmatmul.f32.gmra.mxu0 %v404
      %v612 = vpop.f32.mrf.mxu0
      %v613 = vadd.f32 0.0, %v612
      %614 = vmatmul.f32.gmra.mxu0 %v407
      %v615 = vpop.f32.mrf.mxu0
      %v616 = vadd.f32 0.0, %v615
      %617 = vmatmul.f32.gmra.mxu0 %v410
      %v618 = vpop.f32.mrf.mxu0
      %v619 = vadd.f32 0.0, %v618
      %620 = vmatmul.f32.gmra.mxu0 %v413
      %v621 = vpop.f32.mrf.mxu0
      %v622 = vadd.f32 0.0, %v621
      %623 = vmatmul.f32.gmra.mxu0 %v416
      %v624 = vpop.f32.mrf.mxu0
      %v625 = vadd.f32 0.0, %v624
      %626 = vmatmul.f32.gmra.mxu0 %v419
      %v627 = vpop.f32.mrf.mxu0
      %v628 = vadd.f32 0.0, %v627
      %629 = vmatmul.f32.gmra.mxu0 %v422
      %v630 = vpop.f32.mrf.mxu0
      %v631 = vadd.f32 0.0, %v630
      %632 = vmatmul.f32.gmra.mxu0 %v425
      %v633 = vpop.f32.mrf.mxu0
      %v634 = vadd.f32 0.0, %v633
      %635 = vmatmul.f32.gmra.mxu0 %v428
      %v636 = vpop.f32.mrf.mxu0
      %v637 = vadd.f32 0.0, %v636
      %638 = vmatmul.f32.gmra.mxu0 %v431
      %v639 = vpop.f32.mrf.mxu0
      %v640 = vadd.f32 0.0, %v639
      %641 = vmatmul.f32.gmra.mxu0 %v434
      %v642 = vpop.f32.mrf.mxu0
      %v643 = vadd.f32 0.0, %v642
      %644 = vmatmul.f32.gmra.mxu0 %v437
      %v645 = vpop.f32.mrf.mxu0
      %v646 = vadd.f32 0.0, %v645
      %647 = vmatmul.f32.gmra.mxu0 %v440
      %v648 = vpop.f32.mrf.mxu0
      %v649 = vadd.f32 0.0, %v648
      %650 = vmatmul.f32.gmra.mxu0 %v443
      %v651 = vpop.f32.mrf.mxu0
      %v652 = vadd.f32 0.0, %v651
      %653 = vmatmul.f32.gmra.mxu0 %v446
      %v654 = vpop.f32.mrf.mxu0
      %v655 = vadd.f32 0.0, %v654
      %656 = vmatmul.f32.gmra.mxu0 %v449
      %v657 = vpop.f32.mrf.mxu0
      %v658 = vadd.f32 0.0, %v657
      %659 = vmatmul.f32.gmra.mxu0 %v452
      %v660 = vpop.f32.mrf.mxu0
      %v661 = vadd.f32 0.0, %v660
      %662 = vmatmul.f32.gmra.mxu0 %v455
      %v663 = vpop.f32.mrf.mxu0
      %v664 = vadd.f32 0.0, %v663
      %665 = vmatmul.f32.gmra.mxu0 %v458
      %v666 = vpop.f32.mrf.mxu0
      %v667 = vadd.f32 0.0, %v666
      %668 = vmatmul.f32.gmra.mxu0 %v461
      %v669 = vpop.f32.mrf.mxu0
      %v670 = vadd.f32 0.0, %v669
      %671 = vmatmul.f32.gmra.mxu0 %v464
      %v672 = vpop.f32.mrf.mxu0
      %v673 = vadd.f32 0.0, %v672
      %674 = vmatmul.f32.gmra.mxu0 %v467
      %v675 = vpop.f32.mrf.mxu0
      %v676 = vadd.f32 0.0, %v675
      %677 = vmatmul.f32.gmra.mxu0 %v470
      %v678 = vpop.f32.mrf.mxu0
      %v679 = vadd.f32 0.0, %v678
      %680 = vmatmul.f32.gmra.mxu0 %v473
      %v681 = vpop.f32.mrf.mxu0
      %v682 = vadd.f32 0.0, %v681
      %683 = vmatmul.f32.gmra.mxu0 %v476
      %v684 = vpop.f32.mrf.mxu0
      %v685 = vadd.f32 0.0, %v684
      %686 = vmatmul.f32.gmra.mxu0 %v479
      %v687 = vpop.f32.mrf.mxu0
      %v688 = vadd.f32 0.0, %v687
      %689 = vmatmul.f32.gmra.mxu0 %v482
      %v690 = vpop.f32.mrf.mxu0
      %v691 = vadd.f32 0.0, %v690
      %692 = vmatmul.f32.gmra.mxu0 %v485
      %v693 = vpop.f32.mrf.mxu0
      %v694 = vadd.f32 0.0, %v693
      %695 = vmatmul.f32.gmra.mxu0 %v488
      %v696 = vpop.f32.mrf.mxu0
      %v697 = vadd.f32 0.0, %v696
      %698 = vmatmul.f32.gmra.mxu0 %v491
      %v699 = vpop.f32.mrf.mxu0
      %v700 = vadd.f32 0.0, %v699
      %701 = vdwg.mxu0
      %702 = vmatpush.msra.mxu0 0.0
      %703 = vmatpush.msra.mxu0 0.0
      %704 = vmatpush.msra.mxu0 0.0
      %705 = vmatpush.msra.mxu0 0.0
      %706 = vmatpush.msra.mxu0 0.0
      %707 = vmatpush.msra.mxu0 0.0
      %708 = vmatpush.msra.mxu0 0.0
      %709 = vmatpush.msra.mxu0 0.0
      %710 = vmatpush.msra.mxu0 0.0
      %711 = vmatpush.msra.mxu0 0.0
      %712 = vmatpush.msra.mxu0 0.0
      %713 = vmatpush.msra.mxu0 0.0
      %714 = vmatpush.msra.mxu0 %v299
      %715 = vmatpush.msra.mxu0 %v297
      %716 = vmatpush.msra.mxu0 %v295
      %717 = vmatpush.msra.mxu0 %v293
      %718 = vmatmul.f32.gmra.mxu0 %v302
      %v719 = vpop.f32.mrf.mxu0
      %v720 = vadd.f32 0.0, %v719
      %721 = vmatmul.f32.gmra.mxu0 %v305
      %v722 = vpop.f32.mrf.mxu0
      %v723 = vadd.f32 0.0, %v722
      %724 = vmatmul.f32.gmra.mxu0 %v308
      %v725 = vpop.f32.mrf.mxu0
      %v726 = vadd.f32 0.0, %v725
      %727 = vmatmul.f32.gmra.mxu0 %v311
      %v728 = vpop.f32.mrf.mxu0
      %v729 = vadd.f32 0.0, %v728
      %730 = vmatmul.f32.gmra.mxu0 %v314
      %v731 = vpop.f32.mrf.mxu0
      %v732 = vadd.f32 0.0, %v731
      %733 = vmatmul.f32.gmra.mxu0 %v317
      %v734 = vpop.f32.mrf.mxu0
      %v735 = vadd.f32 0.0, %v734
      %736 = vmatmul.f32.gmra.mxu0 %v320
      %v737 = vpop.f32.mrf.mxu0
      %v738 = vadd.f32 0.0, %v737
      %739 = vmatmul.f32.gmra.mxu0 %v323
      %v740 = vpop.f32.mrf.mxu0
      %v741 = vadd.f32 0.0, %v740
      %742 = vmatmul.f32.gmra.mxu0 %v326
      %v743 = vpop.f32.mrf.mxu0
      %v744 = vadd.f32 0.0, %v743
      %745 = vmatmul.f32.gmra.mxu0 %v329
      %v746 = vpop.f32.mrf.mxu0
      %v747 = vadd.f32 0.0, %v746
      %748 = vmatmul.f32.gmra.mxu0 %v332
      %v749 = vpop.f32.mrf.mxu0
      %v750 = vadd.f32 0.0, %v749
      %751 = vmatmul.f32.gmra.mxu0 %v335
      %v752 = vpop.f32.mrf.mxu0
      %v753 = vadd.f32 0.0, %v752
      %754 = vmatmul.f32.gmra.mxu0 %v338
      %v755 = vpop.f32.mrf.mxu0
      %v756 = vadd.f32 0.0, %v755
      %757 = vmatmul.f32.gmra.mxu0 %v341
      %v758 = vpop.f32.mrf.mxu0
      %v759 = vadd.f32 0.0, %v758
      %760 = vmatmul.f32.gmra.mxu0 %v344
      %v761 = vpop.f32.mrf.mxu0
      %v762 = vadd.f32 0.0, %v761
      %763 = vmatmul.f32.gmra.mxu0 %v347
      %v764 = vpop.f32.mrf.mxu0
      %v765 = vadd.f32 0.0, %v764
      %766 = vmatmul.f32.gmra.mxu0 %v350
      %v767 = vpop.f32.mrf.mxu0
      %v768 = vadd.f32 0.0, %v767
      %769 = vmatmul.f32.gmra.mxu0 %v353
      %v770 = vpop.f32.mrf.mxu0
      %v771 = vadd.f32 0.0, %v770
      %772 = vmatmul.f32.gmra.mxu0 %v356
      %v773 = vpop.f32.mrf.mxu0
      %v774 = vadd.f32 0.0, %v773
      %775 = vmatmul.f32.gmra.mxu0 %v359
      %v776 = vpop.f32.mrf.mxu0
      %v777 = vadd.f32 0.0, %v776
      %778 = vmatmul.f32.gmra.mxu0 %v362
      %v779 = vpop.f32.mrf.mxu0
      %v780 = vadd.f32 0.0, %v779
      %781 = vmatmul.f32.gmra.mxu0 %v365
      %v782 = vpop.f32.mrf.mxu0
      %v783 = vadd.f32 0.0, %v782
      %784 = vmatmul.f32.gmra.mxu0 %v368
      %v785 = vpop.f32.mrf.mxu0
      %v786 = vadd.f32 0.0, %v785
      %787 = vmatmul.f32.gmra.mxu0 %v371
      %v788 = vpop.f32.mrf.mxu0
      %v789 = vadd.f32 0.0, %v788
      %790 = vmatmul.f32.gmra.mxu0 %v374
      %v791 = vpop.f32.mrf.mxu0
      %v792 = vadd.f32 0.0, %v791
      %793 = vmatmul.f32.gmra.mxu0 %v377
      %v794 = vpop.f32.mrf.mxu0
      %v795 = vadd.f32 0.0, %v794
      %796 = vmatmul.f32.gmra.mxu0 %v380
      %v797 = vpop.f32.mrf.mxu0
      %v798 = vadd.f32 0.0, %v797
      %799 = vmatmul.f32.gmra.mxu0 %v383
      %v800 = vpop.f32.mrf.mxu0
      %v801 = vadd.f32 0.0, %v800
      %802 = vmatmul.f32.gmra.mxu0 %v386
      %v803 = vpop.f32.mrf.mxu0
      %v804 = vadd.f32 0.0, %v803
      %805 = vmatmul.f32.gmra.mxu0 %v389
      %v806 = vpop.f32.mrf.mxu0
      %v807 = vadd.f32 0.0, %v806
      %808 = vmatmul.f32.gmra.mxu0 %v392
      %v809 = vpop.f32.mrf.mxu0
      %v810 = vadd.f32 0.0, %v809
      %811 = vmatmul.f32.gmra.mxu0 %v395
      %v812 = vpop.f32.mrf.mxu0
      %v813 = vadd.f32 0.0, %v812
      %814 = vmatmul.f32.gmra.mxu0 %v398
      %v815 = vpop.f32.mrf.mxu0
      %v816 = vadd.f32 0.0, %v815
      %817 = vmatmul.f32.gmra.mxu0 %v401
      %v818 = vpop.f32.mrf.mxu0
      %v819 = vadd.f32 0.0, %v818
      %820 = vmatmul.f32.gmra.mxu0 %v404
      %v821 = vpop.f32.mrf.mxu0
      %v822 = vadd.f32 0.0, %v821
      %823 = vmatmul.f32.gmra.mxu0 %v407
      %v824 = vpop.f32.mrf.mxu0
      %v825 = vadd.f32 0.0, %v824
      %826 = vmatmul.f32.gmra.mxu0 %v410
      %v827 = vpop.f32.mrf.mxu0
      %v828 = vadd.f32 0.0, %v827
      %829 = vmatmul.f32.gmra.mxu0 %v413
      %v830 = vpop.f32.mrf.mxu0
      %v831 = vadd.f32 0.0, %v830
      %832 = vmatmul.f32.gmra.mxu0 %v416
      %v833 = vpop.f32.mrf.mxu0
      %v834 = vadd.f32 0.0, %v833
      %835 = vmatmul.f32.gmra.mxu0 %v419
      %v836 = vpop.f32.mrf.mxu0
      %v837 = vadd.f32 0.0, %v836
      %838 = vmatmul.f32.gmra.mxu0 %v422
      %v839 = vpop.f32.mrf.mxu0
      %v840 = vadd.f32 0.0, %v839
      %841 = vmatmul.f32.gmra.mxu0 %v425
      %v842 = vpop.f32.mrf.mxu0
      %v843 = vadd.f32 0.0, %v842
      %844 = vmatmul.f32.gmra.mxu0 %v428
      %v845 = vpop.f32.mrf.mxu0
      %v846 = vadd.f32 0.0, %v845
      %847 = vmatmul.f32.gmra.mxu0 %v431
      %v848 = vpop.f32.mrf.mxu0
      %v849 = vadd.f32 0.0, %v848
      %850 = vmatmul.f32.gmra.mxu0 %v434
      %v851 = vpop.f32.mrf.mxu0
      %v852 = vadd.f32 0.0, %v851
      %853 = vmatmul.f32.gmra.mxu0 %v437
      %v854 = vpop.f32.mrf.mxu0
      %v855 = vadd.f32 0.0, %v854
      %856 = vmatmul.f32.gmra.mxu0 %v440
      %v857 = vpop.f32.mrf.mxu0
      %v858 = vadd.f32 0.0, %v857
      %859 = vmatmul.f32.gmra.mxu0 %v443
      %v860 = vpop.f32.mrf.mxu0
      %v861 = vadd.f32 0.0, %v860
      %862 = vmatmul.f32.gmra.mxu0 %v446
      %v863 = vpop.f32.mrf.mxu0
      %v864 = vadd.f32 0.0, %v863
      %865 = vmatmul.f32.gmra.mxu0 %v449
      %v866 = vpop.f32.mrf.mxu0
      %v867 = vadd.f32 0.0, %v866
      %868 = vmatmul.f32.gmra.mxu0 %v452
      %v869 = vpop.f32.mrf.mxu0
      %v870 = vadd.f32 0.0, %v869
      %871 = vmatmul.f32.gmra.mxu0 %v455
      %v872 = vpop.f32.mrf.mxu0
      %v873 = vadd.f32 0.0, %v872
      %874 = vmatmul.f32.gmra.mxu0 %v458
      %v875 = vpop.f32.mrf.mxu0
      %v876 = vadd.f32 0.0, %v875
      %877 = vmatmul.f32.gmra.mxu0 %v461
      %v878 = vpop.f32.mrf.mxu0
      %v879 = vadd.f32 0.0, %v878
      %880 = vmatmul.f32.gmra.mxu0 %v464
      %v881 = vpop.f32.mrf.mxu0
      %v882 = vadd.f32 0.0, %v881
      %883 = vmatmul.f32.gmra.mxu0 %v467
      %v884 = vpop.f32.mrf.mxu0
      %v885 = vadd.f32 0.0, %v884
      %886 = vmatmul.f32.gmra.mxu0 %v470
      %v887 = vpop.f32.mrf.mxu0
      %v888 = vadd.f32 0.0, %v887
      %889 = vmatmul.f32.gmra.mxu0 %v473
      %v890 = vpop.f32.mrf.mxu0
      %v891 = vadd.f32 0.0, %v890
      %892 = vmatmul.f32.gmra.mxu0 %v476
      %v893 = vpop.f32.mrf.mxu0
      %v894 = vadd.f32 0.0, %v893
      %895 = vmatmul.f32.gmra.mxu0 %v479
      %v896 = vpop.f32.mrf.mxu0
      %v897 = vadd.f32 0.0, %v896
      %898 = vmatmul.f32.gmra.mxu0 %v482
      %v899 = vpop.f32.mrf.mxu0
      %v900 = vadd.f32 0.0, %v899
      %901 = vmatmul.f32.gmra.mxu0 %v485
      %v902 = vpop.f32.mrf.mxu0
      %v903 = vadd.f32 0.0, %v902
      %904 = vmatmul.f32.gmra.mxu0 %v488
      %v905 = vpop.f32.mrf.mxu0
      %v906 = vadd.f32 0.0, %v905
      %907 = vmatmul.f32.gmra.mxu0 %v491
      %v908 = vpop.f32.mrf.mxu0
      %v909 = vadd.f32 0.0, %v908
      %910 = vdwg.mxu0
      %v911 = vld [vmem:[%s2] sm:$0x1]
      %v913 = vperm.slane %v911, 0
      %v915 = vadd.f32 %v511, %v913
      %v916 = vadd.f32 %v514, %v913
      %v917 = vadd.f32 %v517, %v913
      %v918 = vadd.f32 %v520, %v913
      %v919 = vadd.f32 %v523, %v913
      %v920 = vadd.f32 %v526, %v913
      %v921 = vadd.f32 %v529, %v913
      %v922 = vadd.f32 %v532, %v913
      %v923 = vadd.f32 %v535, %v913
      %v924 = vadd.f32 %v538, %v913
      %v925 = vadd.f32 %v541, %v913
      %v926 = vadd.f32 %v544, %v913
      %v927 = vadd.f32 %v547, %v913
      %v928 = vadd.f32 %v550, %v913
      %v929 = vadd.f32 %v553, %v913
      %v930 = vadd.f32 %v556, %v913
      %v931 = vadd.f32 %v559, %v913
      %v932 = vadd.f32 %v562, %v913
      %v933 = vadd.f32 %v565, %v913
      %v934 = vadd.f32 %v568, %v913
      %v935 = vadd.f32 %v571, %v913
      %v936 = vadd.f32 %v574, %v913
      %v937 = vadd.f32 %v577, %v913
      %v938 = vadd.f32 %v580, %v913
      %v939 = vadd.f32 %v583, %v913
      %v940 = vadd.f32 %v586, %v913
      %v941 = vadd.f32 %v589, %v913
      %v942 = vadd.f32 %v592, %v913
      %v943 = vadd.f32 %v595, %v913
      %v944 = vadd.f32 %v598, %v913
      %v945 = vadd.f32 %v601, %v913
      %v946 = vadd.f32 %v604, %v913
      %v947 = vadd.f32 %v607, %v913
      %v948 = vadd.f32 %v610, %v913
      %v949 = vadd.f32 %v613, %v913
      %v950 = vadd.f32 %v616, %v913
      %v951 = vadd.f32 %v619, %v913
      %v952 = vadd.f32 %v622, %v913
      %v953 = vadd.f32 %v625, %v913
      %v954 = vadd.f32 %v628, %v913
      %v955 = vadd.f32 %v631, %v913
      %v956 = vadd.f32 %v634, %v913
      %v957 = vadd.f32 %v637, %v913
      %v958 = vadd.f32 %v640, %v913
      %v959 = vadd.f32 %v643, %v913
      %v960 = vadd.f32 %v646, %v913
      %v961 = vadd.f32 %v649, %v913
      %v962 = vadd.f32 %v652, %v913
      %v963 = vadd.f32 %v655, %v913
      %v964 = vadd.f32 %v658, %v913
      %v965 = vadd.f32 %v661, %v913
      %v966 = vadd.f32 %v664, %v913
      %v967 = vadd.f32 %v667, %v913
      %v968 = vadd.f32 %v670, %v913
      %v969 = vadd.f32 %v673, %v913
      %v970 = vadd.f32 %v676, %v913
      %v971 = vadd.f32 %v679, %v913
      %v972 = vadd.f32 %v682, %v913
      %v973 = vadd.f32 %v685, %v913
      %v974 = vadd.f32 %v688, %v913
      %v975 = vadd.f32 %v691, %v913
      %v976 = vadd.f32 %v694, %v913
      %v977 = vadd.f32 %v697, %v913
      %v978 = vadd.f32 %v700, %v913
      %979 = vadd.xlane.f32.xlu0 %v915
      %v980 = vpop.xlane.xlu0 %979
      %981 = vadd.xlane.f32.xlu0 %v916
      %v982 = vpop.xlane.xlu0 %981
      %983 = vadd.xlane.f32.xlu0 %v917
      %v984 = vpop.xlane.xlu0 %983
      %985 = vadd.xlane.f32.xlu0 %v918
      %v986 = vpop.xlane.xlu0 %985
      %987 = vadd.xlane.f32.xlu0 %v919
      %v988 = vpop.xlane.xlu0 %987
      %989 = vadd.xlane.f32.xlu0 %v920
      %v990 = vpop.xlane.xlu0 %989
      %991 = vadd.xlane.f32.xlu0 %v921
      %v992 = vpop.xlane.xlu0 %991
      %993 = vadd.xlane.f32.xlu0 %v922
      %v994 = vpop.xlane.xlu0 %993
      %995 = vadd.xlane.f32.xlu0 %v923
      %v996 = vpop.xlane.xlu0 %995
      %997 = vadd.xlane.f32.xlu0 %v924
      %v998 = vpop.xlane.xlu0 %997
      %999 = vadd.xlane.f32.xlu0 %v925
      %v1000 = vpop.xlane.xlu0 %999
      %1001 = vadd.xlane.f32.xlu0 %v926
      %v1002 = vpop.xlane.xlu0 %1001
      %1003 = vadd.xlane.f32.xlu0 %v927
      %v1004 = vpop.xlane.xlu0 %1003
      %1005 = vadd.xlane.f32.xlu0 %v928
      %v1006 = vpop.xlane.xlu0 %1005
      %1007 = vadd.xlane.f32.xlu0 %v929
      %v1008 = vpop.xlane.xlu0 %1007
      %1009 = vadd.xlane.f32.xlu0 %v930
      %v1010 = vpop.xlane.xlu0 %1009
      %1011 = vadd.xlane.f32.xlu0 %v931
      %v1012 = vpop.xlane.xlu0 %1011
      %1013 = vadd.xlane.f32.xlu0 %v932
      %v1014 = vpop.xlane.xlu0 %1013
      %1015 = vadd.xlane.f32.xlu0 %v933
      %v1016 = vpop.xlane.xlu0 %1015
      %1017 = vadd.xlane.f32.xlu0 %v934
      %v1018 = vpop.xlane.xlu0 %1017
      %1019 = vadd.xlane.f32.xlu0 %v935
      %v1020 = vpop.xlane.xlu0 %1019
      %1021 = vadd.xlane.f32.xlu0 %v936
      %v1022 = vpop.xlane.xlu0 %1021
      %1023 = vadd.xlane.f32.xlu0 %v937
      %v1024 = vpop.xlane.xlu0 %1023
      %1025 = vadd.xlane.f32.xlu0 %v938
      %v1026 = vpop.xlane.xlu0 %1025
      %1027 = vadd.xlane.f32.xlu0 %v939
      %v1028 = vpop.xlane.xlu0 %1027
      %1029 = vadd.xlane.f32.xlu0 %v940
      %v1030 = vpop.xlane.xlu0 %1029
      %1031 = vadd.xlane.f32.xlu0 %v941
      %v1032 = vpop.xlane.xlu0 %1031
      %1033 = vadd.xlane.f32.xlu0 %v942
      %v1034 = vpop.xlane.xlu0 %1033
      %1035 = vadd.xlane.f32.xlu0 %v943
      %v1036 = vpop.xlane.xlu0 %1035
      %1037 = vadd.xlane.f32.xlu0 %v944
      %v1038 = vpop.xlane.xlu0 %1037
      %1039 = vadd.xlane.f32.xlu0 %v945
      %v1040 = vpop.xlane.xlu0 %1039
      %1041 = vadd.xlane.f32.xlu0 %v946
      %v1042 = vpop.xlane.xlu0 %1041
      %1043 = vadd.xlane.f32.xlu0 %v947
      %v1044 = vpop.xlane.xlu0 %1043
      %1045 = vadd.xlane.f32.xlu0 %v948
      %v1046 = vpop.xlane.xlu0 %1045
      %1047 = vadd.xlane.f32.xlu0 %v949
      %v1048 = vpop.xlane.xlu0 %1047
      %1049 = vadd.xlane.f32.xlu0 %v950
      %v1050 = vpop.xlane.xlu0 %1049
      %1051 = vadd.xlane.f32.xlu0 %v951
      %v1052 = vpop.xlane.xlu0 %1051
      %1053 = vadd.xlane.f32.xlu0 %v952
      %v1054 = vpop.xlane.xlu0 %1053
      %1055 = vadd.xlane.f32.xlu0 %v953
      %v1056 = vpop.xlane.xlu0 %1055
      %1057 = vadd.xlane.f32.xlu0 %v954
      %v1058 = vpop.xlane.xlu0 %1057
      %1059 = vadd.xlane.f32.xlu0 %v955
      %v1060 = vpop.xlane.xlu0 %1059
      %1061 = vadd.xlane.f32.xlu0 %v956
      %v1062 = vpop.xlane.xlu0 %1061
      %1063 = vadd.xlane.f32.xlu0 %v957
      %v1064 = vpop.xlane.xlu0 %1063
      %1065 = vadd.xlane.f32.xlu0 %v958
      %v1066 = vpop.xlane.xlu0 %1065
      %1067 = vadd.xlane.f32.xlu0 %v959
      %v1068 = vpop.xlane.xlu0 %1067
      %1069 = vadd.xlane.f32.xlu0 %v960
      %v1070 = vpop.xlane.xlu0 %1069
      %1071 = vadd.xlane.f32.xlu0 %v961
      %v1072 = vpop.xlane.xlu0 %1071
      %1073 = vadd.xlane.f32.xlu0 %v962
      %v1074 = vpop.xlane.xlu0 %1073
      %1075 = vadd.xlane.f32.xlu0 %v963
      %v1076 = vpop.xlane.xlu0 %1075
      %1077 = vadd.xlane.f32.xlu0 %v964
      %v1078 = vpop.xlane.xlu0 %1077
      %1079 = vadd.xlane.f32.xlu0 %v965
      %v1080 = vpop.xlane.xlu0 %1079
      %1081 = vadd.xlane.f32.xlu0 %v966
      %v1082 = vpop.xlane.xlu0 %1081
      %1083 = vadd.xlane.f32.xlu0 %v967
      %v1084 = vpop.xlane.xlu0 %1083
      %1085 = vadd.xlane.f32.xlu0 %v968
      %v1086 = vpop.xlane.xlu0 %1085
      %1087 = vadd.xlane.f32.xlu0 %v969
      %v1088 = vpop.xlane.xlu0 %1087
      %1089 = vadd.xlane.f32.xlu0 %v970
      %v1090 = vpop.xlane.xlu0 %1089
      %1091 = vadd.xlane.f32.xlu0 %v971
      %v1092 = vpop.xlane.xlu0 %1091
      %1093 = vadd.xlane.f32.xlu0 %v972
      %v1094 = vpop.xlane.xlu0 %1093
      %1095 = vadd.xlane.f32.xlu0 %v973
      %v1096 = vpop.xlane.xlu0 %1095
      %1097 = vadd.xlane.f32.xlu0 %v974
      %v1098 = vpop.xlane.xlu0 %1097
      %1099 = vadd.xlane.f32.xlu0 %v975
      %v1100 = vpop.xlane.xlu0 %1099
      %1101 = vadd.xlane.f32.xlu0 %v976
      %v1102 = vpop.xlane.xlu0 %1101
      %1103 = vadd.xlane.f32.xlu0 %v977
      %v1104 = vpop.xlane.xlu0 %1103
      %1105 = vadd.xlane.f32.xlu0 %v978
      %v1106 = vpop.xlane.xlu0 %1105
      %v1107 = vmul.f32 %v980, 0.015625
      %v1108 = vmul.f32 %v982, 0.015625
      %v1109 = vmul.f32 %v984, 0.015625
      %v1110 = vmul.f32 %v986, 0.015625
      %v1111 = vmul.f32 %v988, 0.015625
      %v1112 = vmul.f32 %v990, 0.015625
      %v1113 = vmul.f32 %v992, 0.015625
      %v1114 = vmul.f32 %v994, 0.015625
      %v1115 = vmul.f32 %v996, 0.015625
      %v1116 = vmul.f32 %v998, 0.015625
      %v1117 = vmul.f32 %v1000, 0.015625
      %v1118 = vmul.f32 %v1002, 0.015625
      %v1119 = vmul.f32 %v1004, 0.015625
      %v1120 = vmul.f32 %v1006, 0.015625
      %v1121 = vmul.f32 %v1008, 0.015625
      %v1122 = vmul.f32 %v1010, 0.015625
      %v1123 = vmul.f32 %v1012, 0.015625
      %v1124 = vmul.f32 %v1014, 0.015625
      %v1125 = vmul.f32 %v1016, 0.015625
      %v1126 = vmul.f32 %v1018, 0.015625
      %v1127 = vmul.f32 %v1020, 0.015625
      %v1128 = vmul.f32 %v1022, 0.015625
      %v1129 = vmul.f32 %v1024, 0.015625
      %v1130 = vmul.f32 %v1026, 0.015625
      %v1131 = vmul.f32 %v1028, 0.015625
      %v1132 = vmul.f32 %v1030, 0.015625
      %v1133 = vmul.f32 %v1032, 0.015625
      %v1134 = vmul.f32 %v1034, 0.015625
      %v1135 = vmul.f32 %v1036, 0.015625
      %v1136 = vmul.f32 %v1038, 0.015625
      %v1137 = vmul.f32 %v1040, 0.015625
      %v1138 = vmul.f32 %v1042, 0.015625
      %v1139 = vmul.f32 %v1044, 0.015625
      %v1140 = vmul.f32 %v1046, 0.015625
      %v1141 = vmul.f32 %v1048, 0.015625
      %v1142 = vmul.f32 %v1050, 0.015625
      %v1143 = vmul.f32 %v1052, 0.015625
      %v1144 = vmul.f32 %v1054, 0.015625
      %v1145 = vmul.f32 %v1056, 0.015625
      %v1146 = vmul.f32 %v1058, 0.015625
      %v1147 = vmul.f32 %v1060, 0.015625
      %v1148 = vmul.f32 %v1062, 0.015625
      %v1149 = vmul.f32 %v1064, 0.015625
      %v1150 = vmul.f32 %v1066, 0.015625
      %v1151 = vmul.f32 %v1068, 0.015625
      %v1152 = vmul.f32 %v1070, 0.015625
      %v1153 = vmul.f32 %v1072, 0.015625
      %v1154 = vmul.f32 %v1074, 0.015625
      %v1155 = vmul.f32 %v1076, 0.015625
      %v1156 = vmul.f32 %v1078, 0.015625
      %v1157 = vmul.f32 %v1080, 0.015625
      %v1158 = vmul.f32 %v1082, 0.015625
      %v1159 = vmul.f32 %v1084, 0.015625
      %v1160 = vmul.f32 %v1086, 0.015625
      %v1161 = vmul.f32 %v1088, 0.015625
      %v1162 = vmul.f32 %v1090, 0.015625
      %v1163 = vmul.f32 %v1092, 0.015625
      %v1164 = vmul.f32 %v1094, 0.015625
      %v1165 = vmul.f32 %v1096, 0.015625
      %v1166 = vmul.f32 %v1098, 0.015625
      %v1167 = vmul.f32 %v1100, 0.015625
      %v1168 = vmul.f32 %v1102, 0.015625
      %v1169 = vmul.f32 %v1104, 0.015625
      %v1170 = vmul.f32 %v1106, 0.015625
      %v1171 = vsub.f32 %v915, %v1107
      %v1172 = vsub.f32 %v916, %v1108
      %v1173 = vsub.f32 %v917, %v1109
      %v1174 = vsub.f32 %v918, %v1110
      %v1175 = vsub.f32 %v919, %v1111
      %v1176 = vsub.f32 %v920, %v1112
      %v1177 = vsub.f32 %v921, %v1113
      %v1178 = vsub.f32 %v922, %v1114
      %v1179 = vsub.f32 %v923, %v1115
      %v1180 = vsub.f32 %v924, %v1116
      %v1181 = vsub.f32 %v925, %v1117
      %v1182 = vsub.f32 %v926, %v1118
      %v1183 = vsub.f32 %v927, %v1119
      %v1184 = vsub.f32 %v928, %v1120
      %v1185 = vsub.f32 %v929, %v1121
      %v1186 = vsub.f32 %v930, %v1122
      %v1187 = vsub.f32 %v931, %v1123
      %v1188 = vsub.f32 %v932, %v1124
      %v1189 = vsub.f32 %v933, %v1125
      %v1190 = vsub.f32 %v934, %v1126
      %v1191 = vsub.f32 %v935, %v1127
      %v1192 = vsub.f32 %v936, %v1128
      %v1193 = vsub.f32 %v937, %v1129
      %v1194 = vsub.f32 %v938, %v1130
      %v1195 = vsub.f32 %v939, %v1131
      %v1196 = vsub.f32 %v940, %v1132
      %v1197 = vsub.f32 %v941, %v1133
      %v1198 = vsub.f32 %v942, %v1134
      %v1199 = vsub.f32 %v943, %v1135
      %v1200 = vsub.f32 %v944, %v1136
      %v1201 = vsub.f32 %v945, %v1137
      %v1202 = vsub.f32 %v946, %v1138
      %v1203 = vsub.f32 %v947, %v1139
      %v1204 = vsub.f32 %v948, %v1140
      %v1205 = vsub.f32 %v949, %v1141
      %v1206 = vsub.f32 %v950, %v1142
      %v1207 = vsub.f32 %v951, %v1143
      %v1208 = vsub.f32 %v952, %v1144
      %v1209 = vsub.f32 %v953, %v1145
      %v1210 = vsub.f32 %v954, %v1146
      %v1211 = vsub.f32 %v955, %v1147
      %v1212 = vsub.f32 %v956, %v1148
      %v1213 = vsub.f32 %v957, %v1149
      %v1214 = vsub.f32 %v958, %v1150
      %v1215 = vsub.f32 %v959, %v1151
      %v1216 = vsub.f32 %v960, %v1152
      %v1217 = vsub.f32 %v961, %v1153
      %v1218 = vsub.f32 %v962, %v1154
      %v1219 = vsub.f32 %v963, %v1155
      %v1220 = vsub.f32 %v964, %v1156
      %v1221 = vsub.f32 %v965, %v1157
      %v1222 = vsub.f32 %v966, %v1158
      %v1223 = vsub.f32 %v967, %v1159
      %v1224 = vsub.f32 %v968, %v1160
      %v1225 = vsub.f32 %v969, %v1161
      %v1226 = vsub.f32 %v970, %v1162
      %v1227 = vsub.f32 %v971, %v1163
      %v1228 = vsub.f32 %v972, %v1164
      %v1229 = vsub.f32 %v973, %v1165
      %v1230 = vsub.f32 %v974, %v1166
      %v1231 = vsub.f32 %v975, %v1167
      %v1232 = vsub.f32 %v976, %v1168
      %v1233 = vsub.f32 %v977, %v1169
      %v1234 = vsub.f32 %v978, %v1170
      %v1235 = vlaneseq
      %v1236 = vand.u32 %v1235, 127
      %vm1237 = vcmp.lt.s32.totalorder %v1236, 64
      %v1238 = vsel %vm1237, %v1171, 0.0
      %v1239 = vsel %vm1237, %v1172, 0.0
      %v1240 = vsel %vm1237, %v1173, 0.0
      %v1241 = vsel %vm1237, %v1174, 0.0
      %v1242 = vsel %vm1237, %v1175, 0.0
      %v1243 = vsel %vm1237, %v1176, 0.0
      %v1244 = vsel %vm1237, %v1177, 0.0
      %v1245 = vsel %vm1237, %v1178, 0.0
      %v1246 = vsel %vm1237, %v1179, 0.0
      %v1247 = vsel %vm1237, %v1180, 0.0
      %v1248 = vsel %vm1237, %v1181, 0.0
      %v1249 = vsel %vm1237, %v1182, 0.0
      %v1250 = vsel %vm1237, %v1183, 0.0
      %v1251 = vsel %vm1237, %v1184, 0.0
      %v1252 = vsel %vm1237, %v1185, 0.0
      %v1253 = vsel %vm1237, %v1186, 0.0
      %v1254 = vsel %vm1237, %v1187, 0.0
      %v1255 = vsel %vm1237, %v1188, 0.0
      %v1256 = vsel %vm1237, %v1189, 0.0
      %v1257 = vsel %vm1237, %v1190, 0.0
      %v1258 = vsel %vm1237, %v1191, 0.0
      %v1259 = vsel %vm1237, %v1192, 0.0
      %v1260 = vsel %vm1237, %v1193, 0.0
      %v1261 = vsel %vm1237, %v1194, 0.0
      %v1262 = vsel %vm1237, %v1195, 0.0
      %v1263 = vsel %vm1237, %v1196, 0.0
      %v1264 = vsel %vm1237, %v1197, 0.0
      %v1265 = vsel %vm1237, %v1198, 0.0
      %v1266 = vsel %vm1237, %v1199, 0.0
      %v1267 = vsel %vm1237, %v1200, 0.0
      %v1268 = vsel %vm1237, %v1201, 0.0
      %v1269 = vsel %vm1237, %v1202, 0.0
      %v1270 = vsel %vm1237, %v1203, 0.0
      %v1271 = vsel %vm1237, %v1204, 0.0
      %v1272 = vsel %vm1237, %v1205, 0.0
      %v1273 = vsel %vm1237, %v1206, 0.0
      %v1274 = vsel %vm1237, %v1207, 0.0
      %v1275 = vsel %vm1237, %v1208, 0.0
      %v1276 = vsel %vm1237, %v1209, 0.0
      %v1277 = vsel %vm1237, %v1210, 0.0
      %v1278 = vsel %vm1237, %v1211, 0.0
      %v1279 = vsel %vm1237, %v1212, 0.0
      %v1280 = vsel %vm1237, %v1213, 0.0
      %v1281 = vsel %vm1237, %v1214, 0.0
      %v1282 = vsel %vm1237, %v1215, 0.0
      %v1283 = vsel %vm1237, %v1216, 0.0
      %v1284 = vsel %vm1237, %v1217, 0.0
      %v1285 = vsel %vm1237, %v1218, 0.0
      %v1286 = vsel %vm1237, %v1219, 0.0
      %v1287 = vsel %vm1237, %v1220, 0.0
      %v1288 = vsel %vm1237, %v1221, 0.0
      %v1289 = vsel %vm1237, %v1222, 0.0
      %v1290 = vsel %vm1237, %v1223, 0.0
      %v1291 = vsel %vm1237, %v1224, 0.0
      %v1292 = vsel %vm1237, %v1225, 0.0
      %v1293 = vsel %vm1237, %v1226, 0.0
      %v1294 = vsel %vm1237, %v1227, 0.0
      %v1295 = vsel %vm1237, %v1228, 0.0
      %v1296 = vsel %vm1237, %v1229, 0.0
      %v1297 = vsel %vm1237, %v1230, 0.0
      %v1298 = vsel %vm1237, %v1231, 0.0
      %v1299 = vsel %vm1237, %v1232, 0.0
      %v1300 = vsel %vm1237, %v1233, 0.0
      %v1301 = vsel %vm1237, %v1234, 0.0
      %v1302 = vmul.f32 %v1238, %v1238
      %v1303 = vmul.f32 %v1239, %v1239
      %v1304 = vmul.f32 %v1240, %v1240
      %v1305 = vmul.f32 %v1241, %v1241
      %v1306 = vmul.f32 %v1242, %v1242
      %v1307 = vmul.f32 %v1243, %v1243
      %v1308 = vmul.f32 %v1244, %v1244
      %v1309 = vmul.f32 %v1245, %v1245
      %v1310 = vmul.f32 %v1246, %v1246
      %v1311 = vmul.f32 %v1247, %v1247
      %v1312 = vmul.f32 %v1248, %v1248
      %v1313 = vmul.f32 %v1249, %v1249
      %v1314 = vmul.f32 %v1250, %v1250
      %v1315 = vmul.f32 %v1251, %v1251
      %v1316 = vmul.f32 %v1252, %v1252
      %v1317 = vmul.f32 %v1253, %v1253
      %v1318 = vmul.f32 %v1254, %v1254
      %v1319 = vmul.f32 %v1255, %v1255
      %v1320 = vmul.f32 %v1256, %v1256
      %v1321 = vmul.f32 %v1257, %v1257
      %v1322 = vmul.f32 %v1258, %v1258
      %v1323 = vmul.f32 %v1259, %v1259
      %v1324 = vmul.f32 %v1260, %v1260
      %v1325 = vmul.f32 %v1261, %v1261
      %v1326 = vmul.f32 %v1262, %v1262
      %v1327 = vmul.f32 %v1263, %v1263
      %v1328 = vmul.f32 %v1264, %v1264
      %v1329 = vmul.f32 %v1265, %v1265
      %v1330 = vmul.f32 %v1266, %v1266
      %v1331 = vmul.f32 %v1267, %v1267
      %v1332 = vmul.f32 %v1268, %v1268
      %v1333 = vmul.f32 %v1269, %v1269
      %v1334 = vmul.f32 %v1270, %v1270
      %v1335 = vmul.f32 %v1271, %v1271
      %v1336 = vmul.f32 %v1272, %v1272
      %v1337 = vmul.f32 %v1273, %v1273
      %v1338 = vmul.f32 %v1274, %v1274
      %v1339 = vmul.f32 %v1275, %v1275
      %v1340 = vmul.f32 %v1276, %v1276
      %v1341 = vmul.f32 %v1277, %v1277
      %v1342 = vmul.f32 %v1278, %v1278
      %v1343 = vmul.f32 %v1279, %v1279
      %v1344 = vmul.f32 %v1280, %v1280
      %v1345 = vmul.f32 %v1281, %v1281
      %v1346 = vmul.f32 %v1282, %v1282
      %v1347 = vmul.f32 %v1283, %v1283
      %v1348 = vmul.f32 %v1284, %v1284
      %v1349 = vmul.f32 %v1285, %v1285
      %v1350 = vmul.f32 %v1286, %v1286
      %v1351 = vmul.f32 %v1287, %v1287
      %v1352 = vmul.f32 %v1288, %v1288
      %v1353 = vmul.f32 %v1289, %v1289
      %v1354 = vmul.f32 %v1290, %v1290
      %v1355 = vmul.f32 %v1291, %v1291
      %v1356 = vmul.f32 %v1292, %v1292
      %v1357 = vmul.f32 %v1293, %v1293
      %v1358 = vmul.f32 %v1294, %v1294
      %v1359 = vmul.f32 %v1295, %v1295
      %v1360 = vmul.f32 %v1296, %v1296
      %v1361 = vmul.f32 %v1297, %v1297
      %v1362 = vmul.f32 %v1298, %v1298
      %v1363 = vmul.f32 %v1299, %v1299
      %v1364 = vmul.f32 %v1300, %v1300
      %v1365 = vmul.f32 %v1301, %v1301
      %1366 = vadd.xlane.f32.xlu0 %v1302
      %v1367 = vpop.xlane.xlu0 %1366
      %1368 = vadd.xlane.f32.xlu0 %v1303
      %v1369 = vpop.xlane.xlu0 %1368
      %1370 = vadd.xlane.f32.xlu0 %v1304
      %v1371 = vpop.xlane.xlu0 %1370
      %1372 = vadd.xlane.f32.xlu0 %v1305
      %v1373 = vpop.xlane.xlu0 %1372
      %1374 = vadd.xlane.f32.xlu0 %v1306
      %v1375 = vpop.xlane.xlu0 %1374
      %1376 = vadd.xlane.f32.xlu0 %v1307
      %v1377 = vpop.xlane.xlu0 %1376
      %1378 = vadd.xlane.f32.xlu0 %v1308
      %v1379 = vpop.xlane.xlu0 %1378
      %1380 = vadd.xlane.f32.xlu0 %v1309
      %v1381 = vpop.xlane.xlu0 %1380
      %1382 = vadd.xlane.f32.xlu0 %v1310
      %v1383 = vpop.xlane.xlu0 %1382
      %1384 = vadd.xlane.f32.xlu0 %v1311
      %v1385 = vpop.xlane.xlu0 %1384
      %1386 = vadd.xlane.f32.xlu0 %v1312
      %v1387 = vpop.xlane.xlu0 %1386
      %1388 = vadd.xlane.f32.xlu0 %v1313
      %v1389 = vpop.xlane.xlu0 %1388
      %1390 = vadd.xlane.f32.xlu0 %v1314
      %v1391 = vpop.xlane.xlu0 %1390
      %1392 = vadd.xlane.f32.xlu0 %v1315
      %v1393 = vpop.xlane.xlu0 %1392
      %1394 = vadd.xlane.f32.xlu0 %v1316
      %v1395 = vpop.xlane.xlu0 %1394
      %1396 = vadd.xlane.f32.xlu0 %v1317
      %v1397 = vpop.xlane.xlu0 %1396
      %1398 = vadd.xlane.f32.xlu0 %v1318
      %v1399 = vpop.xlane.xlu0 %1398
      %1400 = vadd.xlane.f32.xlu0 %v1319
      %v1401 = vpop.xlane.xlu0 %1400
      %1402 = vadd.xlane.f32.xlu0 %v1320
      %v1403 = vpop.xlane.xlu0 %1402
      %1404 = vadd.xlane.f32.xlu0 %v1321
      %v1405 = vpop.xlane.xlu0 %1404
      %1406 = vadd.xlane.f32.xlu0 %v1322
      %v1407 = vpop.xlane.xlu0 %1406
      %1408 = vadd.xlane.f32.xlu0 %v1323
      %v1409 = vpop.xlane.xlu0 %1408
      %1410 = vadd.xlane.f32.xlu0 %v1324
      %v1411 = vpop.xlane.xlu0 %1410
      %1412 = vadd.xlane.f32.xlu0 %v1325
      %v1413 = vpop.xlane.xlu0 %1412
      %1414 = vadd.xlane.f32.xlu0 %v1326
      %v1415 = vpop.xlane.xlu0 %1414
      %1416 = vadd.xlane.f32.xlu0 %v1327
      %v1417 = vpop.xlane.xlu0 %1416
      %1418 = vadd.xlane.f32.xlu0 %v1328
      %v1419 = vpop.xlane.xlu0 %1418
      %1420 = vadd.xlane.f32.xlu0 %v1329
      %v1421 = vpop.xlane.xlu0 %1420
      %1422 = vadd.xlane.f32.xlu0 %v1330
      %v1423 = vpop.xlane.xlu0 %1422
      %1424 = vadd.xlane.f32.xlu0 %v1331
      %v1425 = vpop.xlane.xlu0 %1424
      %1426 = vadd.xlane.f32.xlu0 %v1332
      %v1427 = vpop.xlane.xlu0 %1426
      %1428 = vadd.xlane.f32.xlu0 %v1333
      %v1429 = vpop.xlane.xlu0 %1428
      %1430 = vadd.xlane.f32.xlu0 %v1334
      %v1431 = vpop.xlane.xlu0 %1430
      %1432 = vadd.xlane.f32.xlu0 %v1335
      %v1433 = vpop.xlane.xlu0 %1432
      %1434 = vadd.xlane.f32.xlu0 %v1336
      %v1435 = vpop.xlane.xlu0 %1434
      %1436 = vadd.xlane.f32.xlu0 %v1337
      %v1437 = vpop.xlane.xlu0 %1436
      %1438 = vadd.xlane.f32.xlu0 %v1338
      %v1439 = vpop.xlane.xlu0 %1438
      %1440 = vadd.xlane.f32.xlu0 %v1339
      %v1441 = vpop.xlane.xlu0 %1440
      %1442 = vadd.xlane.f32.xlu0 %v1340
      %v1443 = vpop.xlane.xlu0 %1442
      %1444 = vadd.xlane.f32.xlu0 %v1341
      %v1445 = vpop.xlane.xlu0 %1444
      %1446 = vadd.xlane.f32.xlu0 %v1342
      %v1447 = vpop.xlane.xlu0 %1446
      %1448 = vadd.xlane.f32.xlu0 %v1343
      %v1449 = vpop.xlane.xlu0 %1448
      %1450 = vadd.xlane.f32.xlu0 %v1344
      %v1451 = vpop.xlane.xlu0 %1450
      %1452 = vadd.xlane.f32.xlu0 %v1345
      %v1453 = vpop.xlane.xlu0 %1452
      %1454 = vadd.xlane.f32.xlu0 %v1346
      %v1455 = vpop.xlane.xlu0 %1454
      %1456 = vadd.xlane.f32.xlu0 %v1347
      %v1457 = vpop.xlane.xlu0 %1456
      %1458 = vadd.xlane.f32.xlu0 %v1348
      %v1459 = vpop.xlane.xlu0 %1458
      %1460 = vadd.xlane.f32.xlu0 %v1349
      %v1461 = vpop.xlane.xlu0 %1460
      %1462 = vadd.xlane.f32.xlu0 %v1350
      %v1463 = vpop.xlane.xlu0 %1462
      %1464 = vadd.xlane.f32.xlu0 %v1351
      %v1465 = vpop.xlane.xlu0 %1464
      %1466 = vadd.xlane.f32.xlu0 %v1352
      %v1467 = vpop.xlane.xlu0 %1466
      %1468 = vadd.xlane.f32.xlu0 %v1353
      %v1469 = vpop.xlane.xlu0 %1468
      %1470 = vadd.xlane.f32.xlu0 %v1354
      %v1471 = vpop.xlane.xlu0 %1470
      %1472 = vadd.xlane.f32.xlu0 %v1355
      %v1473 = vpop.xlane.xlu0 %1472
      %1474 = vadd.xlane.f32.xlu0 %v1356
      %v1475 = vpop.xlane.xlu0 %1474
      %1476 = vadd.xlane.f32.xlu0 %v1357
      %v1477 = vpop.xlane.xlu0 %1476
      %1478 = vadd.xlane.f32.xlu0 %v1358
      %v1479 = vpop.xlane.xlu0 %1478
      %1480 = vadd.xlane.f32.xlu0 %v1359
      %v1481 = vpop.xlane.xlu0 %1480
      %1482 = vadd.xlane.f32.xlu0 %v1360
      %v1483 = vpop.xlane.xlu0 %1482
      %1484 = vadd.xlane.f32.xlu0 %v1361
      %v1485 = vpop.xlane.xlu0 %1484
      %1486 = vadd.xlane.f32.xlu0 %v1362
      %v1487 = vpop.xlane.xlu0 %1486
      %1488 = vadd.xlane.f32.xlu0 %v1363
      %v1489 = vpop.xlane.xlu0 %1488
      %1490 = vadd.xlane.f32.xlu0 %v1364
      %v1491 = vpop.xlane.xlu0 %1490
      %1492 = vadd.xlane.f32.xlu0 %v1365
      %v1493 = vpop.xlane.xlu0 %1492
      %v1494 = vmul.f32 %v1367, 0.015625
      %v1495 = vmul.f32 %v1369, 0.015625
      %v1496 = vmul.f32 %v1371, 0.015625
      %v1497 = vmul.f32 %v1373, 0.015625
      %v1498 = vmul.f32 %v1375, 0.015625
      %v1499 = vmul.f32 %v1377, 0.015625
      %v1500 = vmul.f32 %v1379, 0.015625
      %v1501 = vmul.f32 %v1381, 0.015625
      %v1502 = vmul.f32 %v1383, 0.015625
      %v1503 = vmul.f32 %v1385, 0.015625
      %v1504 = vmul.f32 %v1387, 0.015625
      %v1505 = vmul.f32 %v1389, 0.015625
      %v1506 = vmul.f32 %v1391, 0.015625
      %v1507 = vmul.f32 %v1393, 0.015625
      %v1508 = vmul.f32 %v1395, 0.015625
      %v1509 = vmul.f32 %v1397, 0.015625
      %v1510 = vmul.f32 %v1399, 0.015625
      %v1511 = vmul.f32 %v1401, 0.015625
      %v1512 = vmul.f32 %v1403, 0.015625
      %v1513 = vmul.f32 %v1405, 0.015625
      %v1514 = vmul.f32 %v1407, 0.015625
      %v1515 = vmul.f32 %v1409, 0.015625
      %v1516 = vmul.f32 %v1411, 0.015625
      %v1517 = vmul.f32 %v1413, 0.015625
      %v1518 = vmul.f32 %v1415, 0.015625
      %v1519 = vmul.f32 %v1417, 0.015625
      %v1520 = vmul.f32 %v1419, 0.015625
      %v1521 = vmul.f32 %v1421, 0.015625
      %v1522 = vmul.f32 %v1423, 0.015625
      %v1523 = vmul.f32 %v1425, 0.015625
      %v1524 = vmul.f32 %v1427, 0.015625
      %v1525 = vmul.f32 %v1429, 0.015625
      %v1526 = vmul.f32 %v1431, 0.015625
      %v1527 = vmul.f32 %v1433, 0.015625
      %v1528 = vmul.f32 %v1435, 0.015625
      %v1529 = vmul.f32 %v1437, 0.015625
      %v1530 = vmul.f32 %v1439, 0.015625
      %v1531 = vmul.f32 %v1441, 0.015625
      %v1532 = vmul.f32 %v1443, 0.015625
      %v1533 = vmul.f32 %v1445, 0.015625
      %v1534 = vmul.f32 %v1447, 0.015625
      %v1535 = vmul.f32 %v1449, 0.015625
      %v1536 = vmul.f32 %v1451, 0.015625
      %v1537 = vmul.f32 %v1453, 0.015625
      %v1538 = vmul.f32 %v1455, 0.015625
      %v1539 = vmul.f32 %v1457, 0.015625
      %v1540 = vmul.f32 %v1459, 0.015625
      %v1541 = vmul.f32 %v1461, 0.015625
      %v1542 = vmul.f32 %v1463, 0.015625
      %v1543 = vmul.f32 %v1465, 0.015625
      %v1544 = vmul.f32 %v1467, 0.015625
      %v1545 = vmul.f32 %v1469, 0.015625
      %v1546 = vmul.f32 %v1471, 0.015625
      %v1547 = vmul.f32 %v1473, 0.015625
      %v1548 = vmul.f32 %v1475, 0.015625
      %v1549 = vmul.f32 %v1477, 0.015625
      %v1550 = vmul.f32 %v1479, 0.015625
      %v1551 = vmul.f32 %v1481, 0.015625
      %v1552 = vmul.f32 %v1483, 0.015625
      %v1553 = vmul.f32 %v1485, 0.015625
      %v1554 = vmul.f32 %v1487, 0.015625
      %v1555 = vmul.f32 %v1489, 0.015625
      %v1556 = vmul.f32 %v1491, 0.015625
      %v1557 = vmul.f32 %v1493, 0.015625
      %v1558 = vadd.f32 %v1494, 1e-05
      %v1559 = vadd.f32 %v1495, 1e-05
      %v1560 = vadd.f32 %v1496, 1e-05
      %v1561 = vadd.f32 %v1497, 1e-05
      %v1562 = vadd.f32 %v1498, 1e-05
      %v1563 = vadd.f32 %v1499, 1e-05
      %v1564 = vadd.f32 %v1500, 1e-05
      %v1565 = vadd.f32 %v1501, 1e-05
      %v1566 = vadd.f32 %v1502, 1e-05
      %v1567 = vadd.f32 %v1503, 1e-05
      %v1568 = vadd.f32 %v1504, 1e-05
      %v1569 = vadd.f32 %v1505, 1e-05
      %v1570 = vadd.f32 %v1506, 1e-05
      %v1571 = vadd.f32 %v1507, 1e-05
      %v1572 = vadd.f32 %v1508, 1e-05
      %v1573 = vadd.f32 %v1509, 1e-05
      %v1574 = vadd.f32 %v1510, 1e-05
      %v1575 = vadd.f32 %v1511, 1e-05
      %v1576 = vadd.f32 %v1512, 1e-05
      %v1577 = vadd.f32 %v1513, 1e-05
      %v1578 = vadd.f32 %v1514, 1e-05
      %v1579 = vadd.f32 %v1515, 1e-05
      %v1580 = vadd.f32 %v1516, 1e-05
      %v1581 = vadd.f32 %v1517, 1e-05
      %v1582 = vadd.f32 %v1518, 1e-05
      %v1583 = vadd.f32 %v1519, 1e-05
      %v1584 = vadd.f32 %v1520, 1e-05
      %v1585 = vadd.f32 %v1521, 1e-05
      %v1586 = vadd.f32 %v1522, 1e-05
      %v1587 = vadd.f32 %v1523, 1e-05
      %v1588 = vadd.f32 %v1524, 1e-05
      %v1589 = vadd.f32 %v1525, 1e-05
      %v1590 = vadd.f32 %v1526, 1e-05
      %v1591 = vadd.f32 %v1527, 1e-05
      %v1592 = vadd.f32 %v1528, 1e-05
      %v1593 = vadd.f32 %v1529, 1e-05
      %v1594 = vadd.f32 %v1530, 1e-05
      %v1595 = vadd.f32 %v1531, 1e-05
      %v1596 = vadd.f32 %v1532, 1e-05
      %v1597 = vadd.f32 %v1533, 1e-05
      %v1598 = vadd.f32 %v1534, 1e-05
      %v1599 = vadd.f32 %v1535, 1e-05
      %v1600 = vadd.f32 %v1536, 1e-05
      %v1601 = vadd.f32 %v1537, 1e-05
      %v1602 = vadd.f32 %v1538, 1e-05
      %v1603 = vadd.f32 %v1539, 1e-05
      %v1604 = vadd.f32 %v1540, 1e-05
      %v1605 = vadd.f32 %v1541, 1e-05
      %v1606 = vadd.f32 %v1542, 1e-05
      %v1607 = vadd.f32 %v1543, 1e-05
      %v1608 = vadd.f32 %v1544, 1e-05
      %v1609 = vadd.f32 %v1545, 1e-05
      %v1610 = vadd.f32 %v1546, 1e-05
      %v1611 = vadd.f32 %v1547, 1e-05
      %v1612 = vadd.f32 %v1548, 1e-05
      %v1613 = vadd.f32 %v1549, 1e-05
      %v1614 = vadd.f32 %v1550, 1e-05
      %v1615 = vadd.f32 %v1551, 1e-05
      %v1616 = vadd.f32 %v1552, 1e-05
      %v1617 = vadd.f32 %v1553, 1e-05
      %v1618 = vadd.f32 %v1554, 1e-05
      %v1619 = vadd.f32 %v1555, 1e-05
      %v1620 = vadd.f32 %v1556, 1e-05
      %v1621 = vadd.f32 %v1557, 1e-05
      %v1622 = vrsqrt.pop %v1558
      %v1623 = vmul.f32 %v1622, %v1558
      %v1624 = vmul.f32 %v1623, %v1622
      %v1625 = vmul.f32 0.5, %v1624
      %v1626 = vsub.f32 1.5, %v1625
      %v1627 = vmul.f32 %v1622, %v1626
      %vm1628 = vweird.f32 %v1558
      %vm1629 = vweird.f32 %v1622
      %vm1630 = vmor %vm1628, %vm1629
      %v1631 = vsel %vm1630, %v1622, %v1627
      %v1632 = vrsqrt.pop %v1559
      %v1633 = vmul.f32 %v1632, %v1559
      %v1634 = vmul.f32 %v1633, %v1632
      %v1635 = vmul.f32 0.5, %v1634
      %v1636 = vsub.f32 1.5, %v1635
      %v1637 = vmul.f32 %v1632, %v1636
      %vm1638 = vweird.f32 %v1559
      %vm1639 = vweird.f32 %v1632
      %vm1640 = vmor %vm1638, %vm1639
      %v1641 = vsel %vm1640, %v1632, %v1637
      %v1642 = vrsqrt.pop %v1560
      %v1643 = vmul.f32 %v1642, %v1560
      %v1644 = vmul.f32 %v1643, %v1642
      %v1645 = vmul.f32 0.5, %v1644
      %v1646 = vsub.f32 1.5, %v1645
      %v1647 = vmul.f32 %v1642, %v1646
      %vm1648 = vweird.f32 %v1560
      %vm1649 = vweird.f32 %v1642
      %vm1650 = vmor %vm1648, %vm1649
      %v1651 = vsel %vm1650, %v1642, %v1647
      %v1652 = vrsqrt.pop %v1561
      %v1653 = vmul.f32 %v1652, %v1561
      %v1654 = vmul.f32 %v1653, %v1652
      %v1655 = vmul.f32 0.5, %v1654
      %v1656 = vsub.f32 1.5, %v1655
      %v1657 = vmul.f32 %v1652, %v1656
      %vm1658 = vweird.f32 %v1561
      %vm1659 = vweird.f32 %v1652
      %vm1660 = vmor %vm1658, %vm1659
      %v1661 = vsel %vm1660, %v1652, %v1657
      %v1662 = vrsqrt.pop %v1562
      %v1663 = vmul.f32 %v1662, %v1562
      %v1664 = vmul.f32 %v1663, %v1662
      %v1665 = vmul.f32 0.5, %v1664
      %v1666 = vsub.f32 1.5, %v1665
      %v1667 = vmul.f32 %v1662, %v1666
      %vm1668 = vweird.f32 %v1562
      %vm1669 = vweird.f32 %v1662
      %vm1670 = vmor %vm1668, %vm1669
      %v1671 = vsel %vm1670, %v1662, %v1667
      %v1672 = vrsqrt.pop %v1563
      %v1673 = vmul.f32 %v1672, %v1563
      %v1674 = vmul.f32 %v1673, %v1672
      %v1675 = vmul.f32 0.5, %v1674
      %v1676 = vsub.f32 1.5, %v1675
      %v1677 = vmul.f32 %v1672, %v1676
      %vm1678 = vweird.f32 %v1563
      %vm1679 = vweird.f32 %v1672
      %vm1680 = vmor %vm1678, %vm1679
      %v1681 = vsel %vm1680, %v1672, %v1677
      %v1682 = vrsqrt.pop %v1564
      %v1683 = vmul.f32 %v1682, %v1564
      %v1684 = vmul.f32 %v1683, %v1682
      %v1685 = vmul.f32 0.5, %v1684
      %v1686 = vsub.f32 1.5, %v1685
      %v1687 = vmul.f32 %v1682, %v1686
      %vm1688 = vweird.f32 %v1564
      %vm1689 = vweird.f32 %v1682
      %vm1690 = vmor %vm1688, %vm1689
      %v1691 = vsel %vm1690, %v1682, %v1687
      %v1692 = vrsqrt.pop %v1565
      %v1693 = vmul.f32 %v1692, %v1565
      %v1694 = vmul.f32 %v1693, %v1692
      %v1695 = vmul.f32 0.5, %v1694
      %v1696 = vsub.f32 1.5, %v1695
      %v1697 = vmul.f32 %v1692, %v1696
      %vm1698 = vweird.f32 %v1565
      %vm1699 = vweird.f32 %v1692
      %vm1700 = vmor %vm1698, %vm1699
      %v1701 = vsel %vm1700, %v1692, %v1697
      %v1702 = vrsqrt.pop %v1566
      %v1703 = vmul.f32 %v1702, %v1566
      %v1704 = vmul.f32 %v1703, %v1702
      %v1705 = vmul.f32 0.5, %v1704
      %v1706 = vsub.f32 1.5, %v1705
      %v1707 = vmul.f32 %v1702, %v1706
      %vm1708 = vweird.f32 %v1566
      %vm1709 = vweird.f32 %v1702
      %vm1710 = vmor %vm1708, %vm1709
      %v1711 = vsel %vm1710, %v1702, %v1707
      %v1712 = vrsqrt.pop %v1567
      %v1713 = vmul.f32 %v1712, %v1567
      %v1714 = vmul.f32 %v1713, %v1712
      %v1715 = vmul.f32 0.5, %v1714
      %v1716 = vsub.f32 1.5, %v1715
      %v1717 = vmul.f32 %v1712, %v1716
      %vm1718 = vweird.f32 %v1567
      %vm1719 = vweird.f32 %v1712
      %vm1720 = vmor %vm1718, %vm1719
      %v1721 = vsel %vm1720, %v1712, %v1717
      %v1722 = vrsqrt.pop %v1568
      %v1723 = vmul.f32 %v1722, %v1568
      %v1724 = vmul.f32 %v1723, %v1722
      %v1725 = vmul.f32 0.5, %v1724
      %v1726 = vsub.f32 1.5, %v1725
      %v1727 = vmul.f32 %v1722, %v1726
      %vm1728 = vweird.f32 %v1568
      %vm1729 = vweird.f32 %v1722
      %vm1730 = vmor %vm1728, %vm1729
      %v1731 = vsel %vm1730, %v1722, %v1727
      %v1732 = vrsqrt.pop %v1569
      %v1733 = vmul.f32 %v1732, %v1569
      %v1734 = vmul.f32 %v1733, %v1732
      %v1735 = vmul.f32 0.5, %v1734
      %v1736 = vsub.f32 1.5, %v1735
      %v1737 = vmul.f32 %v1732, %v1736
      %vm1738 = vweird.f32 %v1569
      %vm1739 = vweird.f32 %v1732
      %vm1740 = vmor %vm1738, %vm1739
      %v1741 = vsel %vm1740, %v1732, %v1737
      %v1742 = vrsqrt.pop %v1570
      %v1743 = vmul.f32 %v1742, %v1570
      %v1744 = vmul.f32 %v1743, %v1742
      %v1745 = vmul.f32 0.5, %v1744
      %v1746 = vsub.f32 1.5, %v1745
      %v1747 = vmul.f32 %v1742, %v1746
      %vm1748 = vweird.f32 %v1570
      %vm1749 = vweird.f32 %v1742
      %vm1750 = vmor %vm1748, %vm1749
      %v1751 = vsel %vm1750, %v1742, %v1747
      %v1752 = vrsqrt.pop %v1571
      %v1753 = vmul.f32 %v1752, %v1571
      %v1754 = vmul.f32 %v1753, %v1752
      %v1755 = vmul.f32 0.5, %v1754
      %v1756 = vsub.f32 1.5, %v1755
      %v1757 = vmul.f32 %v1752, %v1756
      %vm1758 = vweird.f32 %v1571
      %vm1759 = vweird.f32 %v1752
      %vm1760 = vmor %vm1758, %vm1759
      %v1761 = vsel %vm1760, %v1752, %v1757
      %v1762 = vrsqrt.pop %v1572
      %v1763 = vmul.f32 %v1762, %v1572
      %v1764 = vmul.f32 %v1763, %v1762
      %v1765 = vmul.f32 0.5, %v1764
      %v1766 = vsub.f32 1.5, %v1765
      %v1767 = vmul.f32 %v1762, %v1766
      %vm1768 = vweird.f32 %v1572
      %vm1769 = vweird.f32 %v1762
      %vm1770 = vmor %vm1768, %vm1769
      %v1771 = vsel %vm1770, %v1762, %v1767
      %v1772 = vrsqrt.pop %v1573
      %v1773 = vmul.f32 %v1772, %v1573
      %v1774 = vmul.f32 %v1773, %v1772
      %v1775 = vmul.f32 0.5, %v1774
      %v1776 = vsub.f32 1.5, %v1775
      %v1777 = vmul.f32 %v1772, %v1776
      %vm1778 = vweird.f32 %v1573
      %vm1779 = vweird.f32 %v1772
      %vm1780 = vmor %vm1778, %vm1779
      %v1781 = vsel %vm1780, %v1772, %v1777
      %v1782 = vrsqrt.pop %v1574
      %v1783 = vmul.f32 %v1782, %v1574
      %v1784 = vmul.f32 %v1783, %v1782
      %v1785 = vmul.f32 0.5, %v1784
      %v1786 = vsub.f32 1.5, %v1785
      %v1787 = vmul.f32 %v1782, %v1786
      %vm1788 = vweird.f32 %v1574
      %vm1789 = vweird.f32 %v1782
      %vm1790 = vmor %vm1788, %vm1789
      %v1791 = vsel %vm1790, %v1782, %v1787
      %v1792 = vrsqrt.pop %v1575
      %v1793 = vmul.f32 %v1792, %v1575
      %v1794 = vmul.f32 %v1793, %v1792
      %v1795 = vmul.f32 0.5, %v1794
      %v1796 = vsub.f32 1.5, %v1795
      %v1797 = vmul.f32 %v1792, %v1796
      %vm1798 = vweird.f32 %v1575
      %vm1799 = vweird.f32 %v1792
      %vm1800 = vmor %vm1798, %vm1799
      %v1801 = vsel %vm1800, %v1792, %v1797
      %v1802 = vrsqrt.pop %v1576
      %v1803 = vmul.f32 %v1802, %v1576
      %v1804 = vmul.f32 %v1803, %v1802
      %v1805 = vmul.f32 0.5, %v1804
      %v1806 = vsub.f32 1.5, %v1805
      %v1807 = vmul.f32 %v1802, %v1806
      %vm1808 = vweird.f32 %v1576
      %vm1809 = vweird.f32 %v1802
      %vm1810 = vmor %vm1808, %vm1809
      %v1811 = vsel %vm1810, %v1802, %v1807
      %v1812 = vrsqrt.pop %v1577
      %v1813 = vmul.f32 %v1812, %v1577
      %v1814 = vmul.f32 %v1813, %v1812
      %v1815 = vmul.f32 0.5, %v1814
      %v1816 = vsub.f32 1.5, %v1815
      %v1817 = vmul.f32 %v1812, %v1816
      %vm1818 = vweird.f32 %v1577
      %vm1819 = vweird.f32 %v1812
      %vm1820 = vmor %vm1818, %vm1819
      %v1821 = vsel %vm1820, %v1812, %v1817
      %v1822 = vrsqrt.pop %v1578
      %v1823 = vmul.f32 %v1822, %v1578
      %v1824 = vmul.f32 %v1823, %v1822
      %v1825 = vmul.f32 0.5, %v1824
      %v1826 = vsub.f32 1.5, %v1825
      %v1827 = vmul.f32 %v1822, %v1826
      %vm1828 = vweird.f32 %v1578
      %vm1829 = vweird.f32 %v1822
      %vm1830 = vmor %vm1828, %vm1829
      %v1831 = vsel %vm1830, %v1822, %v1827
      %v1832 = vrsqrt.pop %v1579
      %v1833 = vmul.f32 %v1832, %v1579
      %v1834 = vmul.f32 %v1833, %v1832
      %v1835 = vmul.f32 0.5, %v1834
      %v1836 = vsub.f32 1.5, %v1835
      %v1837 = vmul.f32 %v1832, %v1836
      %vm1838 = vweird.f32 %v1579
      %vm1839 = vweird.f32 %v1832
      %vm1840 = vmor %vm1838, %vm1839
      %v1841 = vsel %vm1840, %v1832, %v1837
      %v1842 = vrsqrt.pop %v1580
      %v1843 = vmul.f32 %v1842, %v1580
      %v1844 = vmul.f32 %v1843, %v1842
      %v1845 = vmul.f32 0.5, %v1844
      %v1846 = vsub.f32 1.5, %v1845
      %v1847 = vmul.f32 %v1842, %v1846
      %vm1848 = vweird.f32 %v1580
      %vm1849 = vweird.f32 %v1842
      %vm1850 = vmor %vm1848, %vm1849
      %v1851 = vsel %vm1850, %v1842, %v1847
      %v1852 = vrsqrt.pop %v1581
      %v1853 = vmul.f32 %v1852, %v1581
      %v1854 = vmul.f32 %v1853, %v1852
      %v1855 = vmul.f32 0.5, %v1854
      %v1856 = vsub.f32 1.5, %v1855
      %v1857 = vmul.f32 %v1852, %v1856
      %vm1858 = vweird.f32 %v1581
      %vm1859 = vweird.f32 %v1852
      %vm1860 = vmor %vm1858, %vm1859
      %v1861 = vsel %vm1860, %v1852, %v1857
      %v1862 = vrsqrt.pop %v1582
      %v1863 = vmul.f32 %v1862, %v1582
      %v1864 = vmul.f32 %v1863, %v1862
      %v1865 = vmul.f32 0.5, %v1864
      %v1866 = vsub.f32 1.5, %v1865
      %v1867 = vmul.f32 %v1862, %v1866
      %vm1868 = vweird.f32 %v1582
      %vm1869 = vweird.f32 %v1862
      %vm1870 = vmor %vm1868, %vm1869
      %v1871 = vsel %vm1870, %v1862, %v1867
      %v1872 = vrsqrt.pop %v1583
      %v1873 = vmul.f32 %v1872, %v1583
      %v1874 = vmul.f32 %v1873, %v1872
      %v1875 = vmul.f32 0.5, %v1874
      %v1876 = vsub.f32 1.5, %v1875
      %v1877 = vmul.f32 %v1872, %v1876
      %vm1878 = vweird.f32 %v1583
      %vm1879 = vweird.f32 %v1872
      %vm1880 = vmor %vm1878, %vm1879
      %v1881 = vsel %vm1880, %v1872, %v1877
      %v1882 = vrsqrt.pop %v1584
      %v1883 = vmul.f32 %v1882, %v1584
      %v1884 = vmul.f32 %v1883, %v1882
      %v1885 = vmul.f32 0.5, %v1884
      %v1886 = vsub.f32 1.5, %v1885
      %v1887 = vmul.f32 %v1882, %v1886
      %vm1888 = vweird.f32 %v1584
      %vm1889 = vweird.f32 %v1882
      %vm1890 = vmor %vm1888, %vm1889
      %v1891 = vsel %vm1890, %v1882, %v1887
      %v1892 = vrsqrt.pop %v1585
      %v1893 = vmul.f32 %v1892, %v1585
      %v1894 = vmul.f32 %v1893, %v1892
      %v1895 = vmul.f32 0.5, %v1894
      %v1896 = vsub.f32 1.5, %v1895
      %v1897 = vmul.f32 %v1892, %v1896
      %vm1898 = vweird.f32 %v1585
      %vm1899 = vweird.f32 %v1892
      %vm1900 = vmor %vm1898, %vm1899
      %v1901 = vsel %vm1900, %v1892, %v1897
      %v1902 = vrsqrt.pop %v1586
      %v1903 = vmul.f32 %v1902, %v1586
      %v1904 = vmul.f32 %v1903, %v1902
      %v1905 = vmul.f32 0.5, %v1904
      %v1906 = vsub.f32 1.5, %v1905
      %v1907 = vmul.f32 %v1902, %v1906
      %vm1908 = vweird.f32 %v1586
      %vm1909 = vweird.f32 %v1902
      %vm1910 = vmor %vm1908, %vm1909
      %v1911 = vsel %vm1910, %v1902, %v1907
      %v1912 = vrsqrt.pop %v1587
      %v1913 = vmul.f32 %v1912, %v1587
      %v1914 = vmul.f32 %v1913, %v1912
      %v1915 = vmul.f32 0.5, %v1914
      %v1916 = vsub.f32 1.5, %v1915
      %v1917 = vmul.f32 %v1912, %v1916
      %vm1918 = vweird.f32 %v1587
      %vm1919 = vweird.f32 %v1912
      %vm1920 = vmor %vm1918, %vm1919
      %v1921 = vsel %vm1920, %v1912, %v1917
      %v1922 = vrsqrt.pop %v1588
      %v1923 = vmul.f32 %v1922, %v1588
      %v1924 = vmul.f32 %v1923, %v1922
      %v1925 = vmul.f32 0.5, %v1924
      %v1926 = vsub.f32 1.5, %v1925
      %v1927 = vmul.f32 %v1922, %v1926
      %vm1928 = vweird.f32 %v1588
      %vm1929 = vweird.f32 %v1922
      %vm1930 = vmor %vm1928, %vm1929
      %v1931 = vsel %vm1930, %v1922, %v1927
      %v1932 = vrsqrt.pop %v1589
      %v1933 = vmul.f32 %v1932, %v1589
      %v1934 = vmul.f32 %v1933, %v1932
      %v1935 = vmul.f32 0.5, %v1934
      %v1936 = vsub.f32 1.5, %v1935
      %v1937 = vmul.f32 %v1932, %v1936
      %vm1938 = vweird.f32 %v1589
      %vm1939 = vweird.f32 %v1932
      %vm1940 = vmor %vm1938, %vm1939
      %v1941 = vsel %vm1940, %v1932, %v1937
      %v1942 = vrsqrt.pop %v1590
      %v1943 = vmul.f32 %v1942, %v1590
      %v1944 = vmul.f32 %v1943, %v1942
      %v1945 = vmul.f32 0.5, %v1944
      %v1946 = vsub.f32 1.5, %v1945
      %v1947 = vmul.f32 %v1942, %v1946
      %vm1948 = vweird.f32 %v1590
      %vm1949 = vweird.f32 %v1942
      %vm1950 = vmor %vm1948, %vm1949
      %v1951 = vsel %vm1950, %v1942, %v1947
      %v1952 = vrsqrt.pop %v1591
      %v1953 = vmul.f32 %v1952, %v1591
      %v1954 = vmul.f32 %v1953, %v1952
      %v1955 = vmul.f32 0.5, %v1954
      %v1956 = vsub.f32 1.5, %v1955
      %v1957 = vmul.f32 %v1952, %v1956
      %vm1958 = vweird.f32 %v1591
      %vm1959 = vweird.f32 %v1952
      %vm1960 = vmor %vm1958, %vm1959
      %v1961 = vsel %vm1960, %v1952, %v1957
      %v1962 = vrsqrt.pop %v1592
      %v1963 = vmul.f32 %v1962, %v1592
      %v1964 = vmul.f32 %v1963, %v1962
      %v1965 = vmul.f32 0.5, %v1964
      %v1966 = vsub.f32 1.5, %v1965
      %v1967 = vmul.f32 %v1962, %v1966
      %vm1968 = vweird.f32 %v1592
      %vm1969 = vweird.f32 %v1962
      %vm1970 = vmor %vm1968, %vm1969
      %v1971 = vsel %vm1970, %v1962, %v1967
      %v1972 = vrsqrt.pop %v1593
      %v1973 = vmul.f32 %v1972, %v1593
      %v1974 = vmul.f32 %v1973, %v1972
      %v1975 = vmul.f32 0.5, %v1974
      %v1976 = vsub.f32 1.5, %v1975
      %v1977 = vmul.f32 %v1972, %v1976
      %vm1978 = vweird.f32 %v1593
      %vm1979 = vweird.f32 %v1972
      %vm1980 = vmor %vm1978, %vm1979
      %v1981 = vsel %vm1980, %v1972, %v1977
      %v1982 = vrsqrt.pop %v1594
      %v1983 = vmul.f32 %v1982, %v1594
      %v1984 = vmul.f32 %v1983, %v1982
      %v1985 = vmul.f32 0.5, %v1984
      %v1986 = vsub.f32 1.5, %v1985
      %v1987 = vmul.f32 %v1982, %v1986
      %vm1988 = vweird.f32 %v1594
      %vm1989 = vweird.f32 %v1982
      %vm1990 = vmor %vm1988, %vm1989
      %v1991 = vsel %vm1990, %v1982, %v1987
      %v1992 = vrsqrt.pop %v1595
      %v1993 = vmul.f32 %v1992, %v1595
      %v1994 = vmul.f32 %v1993, %v1992
      %v1995 = vmul.f32 0.5, %v1994
      %v1996 = vsub.f32 1.5, %v1995
      %v1997 = vmul.f32 %v1992, %v1996
      %vm1998 = vweird.f32 %v1595
      %vm1999 = vweird.f32 %v1992
      %vm2000 = vmor %vm1998, %vm1999
      %v2001 = vsel %vm2000, %v1992, %v1997
      %v2002 = vrsqrt.pop %v1596
      %v2003 = vmul.f32 %v2002, %v1596
      %v2004 = vmul.f32 %v2003, %v2002
      %v2005 = vmul.f32 0.5, %v2004
      %v2006 = vsub.f32 1.5, %v2005
      %v2007 = vmul.f32 %v2002, %v2006
      %vm2008 = vweird.f32 %v1596
      %vm2009 = vweird.f32 %v2002
      %vm2010 = vmor %vm2008, %vm2009
      %v2011 = vsel %vm2010, %v2002, %v2007
      %v2012 = vrsqrt.pop %v1597
      %v2013 = vmul.f32 %v2012, %v1597
      %v2014 = vmul.f32 %v2013, %v2012
      %v2015 = vmul.f32 0.5, %v2014
      %v2016 = vsub.f32 1.5, %v2015
      %v2017 = vmul.f32 %v2012, %v2016
      %vm2018 = vweird.f32 %v1597
      %vm2019 = vweird.f32 %v2012
      %vm2020 = vmor %vm2018, %vm2019
      %v2021 = vsel %vm2020, %v2012, %v2017
      %v2022 = vrsqrt.pop %v1598
      %v2023 = vmul.f32 %v2022, %v1598
      %v2024 = vmul.f32 %v2023, %v2022
      %v2025 = vmul.f32 0.5, %v2024
      %v2026 = vsub.f32 1.5, %v2025
      %v2027 = vmul.f32 %v2022, %v2026
      %vm2028 = vweird.f32 %v1598
      %vm2029 = vweird.f32 %v2022
      %vm2030 = vmor %vm2028, %vm2029
      %v2031 = vsel %vm2030, %v2022, %v2027
      %v2032 = vrsqrt.pop %v1599
      %v2033 = vmul.f32 %v2032, %v1599
      %v2034 = vmul.f32 %v2033, %v2032
      %v2035 = vmul.f32 0.5, %v2034
      %v2036 = vsub.f32 1.5, %v2035
      %v2037 = vmul.f32 %v2032, %v2036
      %vm2038 = vweird.f32 %v1599
      %vm2039 = vweird.f32 %v2032
      %vm2040 = vmor %vm2038, %vm2039
      %v2041 = vsel %vm2040, %v2032, %v2037
      %v2042 = vrsqrt.pop %v1600
      %v2043 = vmul.f32 %v2042, %v1600
      %v2044 = vmul.f32 %v2043, %v2042
      %v2045 = vmul.f32 0.5, %v2044
      %v2046 = vsub.f32 1.5, %v2045
      %v2047 = vmul.f32 %v2042, %v2046
      %vm2048 = vweird.f32 %v1600
      %vm2049 = vweird.f32 %v2042
      %vm2050 = vmor %vm2048, %vm2049
      %v2051 = vsel %vm2050, %v2042, %v2047
      %v2052 = vrsqrt.pop %v1601
      %v2053 = vmul.f32 %v2052, %v1601
      %v2054 = vmul.f32 %v2053, %v2052
      %v2055 = vmul.f32 0.5, %v2054
      %v2056 = vsub.f32 1.5, %v2055
      %v2057 = vmul.f32 %v2052, %v2056
      %vm2058 = vweird.f32 %v1601
      %vm2059 = vweird.f32 %v2052
      %vm2060 = vmor %vm2058, %vm2059
      %v2061 = vsel %vm2060, %v2052, %v2057
      %v2062 = vrsqrt.pop %v1602
      %v2063 = vmul.f32 %v2062, %v1602
      %v2064 = vmul.f32 %v2063, %v2062
      %v2065 = vmul.f32 0.5, %v2064
      %v2066 = vsub.f32 1.5, %v2065
      %v2067 = vmul.f32 %v2062, %v2066
      %vm2068 = vweird.f32 %v1602
      %vm2069 = vweird.f32 %v2062
      %vm2070 = vmor %vm2068, %vm2069
      %v2071 = vsel %vm2070, %v2062, %v2067
      %v2072 = vrsqrt.pop %v1603
      %v2073 = vmul.f32 %v2072, %v1603
      %v2074 = vmul.f32 %v2073, %v2072
      %v2075 = vmul.f32 0.5, %v2074
      %v2076 = vsub.f32 1.5, %v2075
      %v2077 = vmul.f32 %v2072, %v2076
      %vm2078 = vweird.f32 %v1603
      %vm2079 = vweird.f32 %v2072
      %vm2080 = vmor %vm2078, %vm2079
      %v2081 = vsel %vm2080, %v2072, %v2077
      %v2082 = vrsqrt.pop %v1604
      %v2083 = vmul.f32 %v2082, %v1604
      %v2084 = vmul.f32 %v2083, %v2082
      %v2085 = vmul.f32 0.5, %v2084
      %v2086 = vsub.f32 1.5, %v2085
      %v2087 = vmul.f32 %v2082, %v2086
      %vm2088 = vweird.f32 %v1604
      %vm2089 = vweird.f32 %v2082
      %vm2090 = vmor %vm2088, %vm2089
      %v2091 = vsel %vm2090, %v2082, %v2087
      %v2092 = vrsqrt.pop %v1605
      %v2093 = vmul.f32 %v2092, %v1605
      %v2094 = vmul.f32 %v2093, %v2092
      %v2095 = vmul.f32 0.5, %v2094
      %v2096 = vsub.f32 1.5, %v2095
      %v2097 = vmul.f32 %v2092, %v2096
      %vm2098 = vweird.f32 %v1605
      %vm2099 = vweird.f32 %v2092
      %vm2100 = vmor %vm2098, %vm2099
      %v2101 = vsel %vm2100, %v2092, %v2097
      %v2102 = vrsqrt.pop %v1606
      %v2103 = vmul.f32 %v2102, %v1606
      %v2104 = vmul.f32 %v2103, %v2102
      %v2105 = vmul.f32 0.5, %v2104
      %v2106 = vsub.f32 1.5, %v2105
      %v2107 = vmul.f32 %v2102, %v2106
      %vm2108 = vweird.f32 %v1606
      %vm2109 = vweird.f32 %v2102
      %vm2110 = vmor %vm2108, %vm2109
      %v2111 = vsel %vm2110, %v2102, %v2107
      %v2112 = vrsqrt.pop %v1607
      %v2113 = vmul.f32 %v2112, %v1607
      %v2114 = vmul.f32 %v2113, %v2112
      %v2115 = vmul.f32 0.5, %v2114
      %v2116 = vsub.f32 1.5, %v2115
      %v2117 = vmul.f32 %v2112, %v2116
      %vm2118 = vweird.f32 %v1607
      %vm2119 = vweird.f32 %v2112
      %vm2120 = vmor %vm2118, %vm2119
      %v2121 = vsel %vm2120, %v2112, %v2117
      %v2122 = vrsqrt.pop %v1608
      %v2123 = vmul.f32 %v2122, %v1608
      %v2124 = vmul.f32 %v2123, %v2122
      %v2125 = vmul.f32 0.5, %v2124
      %v2126 = vsub.f32 1.5, %v2125
      %v2127 = vmul.f32 %v2122, %v2126
      %vm2128 = vweird.f32 %v1608
      %vm2129 = vweird.f32 %v2122
      %vm2130 = vmor %vm2128, %vm2129
      %v2131 = vsel %vm2130, %v2122, %v2127
      %v2132 = vrsqrt.pop %v1609
      %v2133 = vmul.f32 %v2132, %v1609
      %v2134 = vmul.f32 %v2133, %v2132
      %v2135 = vmul.f32 0.5, %v2134
      %v2136 = vsub.f32 1.5, %v2135
      %v2137 = vmul.f32 %v2132, %v2136
      %vm2138 = vweird.f32 %v1609
      %vm2139 = vweird.f32 %v2132
      %vm2140 = vmor %vm2138, %vm2139
      %v2141 = vsel %vm2140, %v2132, %v2137
      %v2142 = vrsqrt.pop %v1610
      %v2143 = vmul.f32 %v2142, %v1610
      %v2144 = vmul.f32 %v2143, %v2142
      %v2145 = vmul.f32 0.5, %v2144
      %v2146 = vsub.f32 1.5, %v2145
      %v2147 = vmul.f32 %v2142, %v2146
      %vm2148 = vweird.f32 %v1610
      %vm2149 = vweird.f32 %v2142
      %vm2150 = vmor %vm2148, %vm2149
      %v2151 = vsel %vm2150, %v2142, %v2147
      %v2152 = vrsqrt.pop %v1611
      %v2153 = vmul.f32 %v2152, %v1611
      %v2154 = vmul.f32 %v2153, %v2152
      %v2155 = vmul.f32 0.5, %v2154
      %v2156 = vsub.f32 1.5, %v2155
      %v2157 = vmul.f32 %v2152, %v2156
      %vm2158 = vweird.f32 %v1611
      %vm2159 = vweird.f32 %v2152
      %vm2160 = vmor %vm2158, %vm2159
      %v2161 = vsel %vm2160, %v2152, %v2157
      %v2162 = vrsqrt.pop %v1612
      %v2163 = vmul.f32 %v2162, %v1612
      %v2164 = vmul.f32 %v2163, %v2162
      %v2165 = vmul.f32 0.5, %v2164
      %v2166 = vsub.f32 1.5, %v2165
      %v2167 = vmul.f32 %v2162, %v2166
      %vm2168 = vweird.f32 %v1612
      %vm2169 = vweird.f32 %v2162
      %vm2170 = vmor %vm2168, %vm2169
      %v2171 = vsel %vm2170, %v2162, %v2167
      %v2172 = vrsqrt.pop %v1613
      %v2173 = vmul.f32 %v2172, %v1613
      %v2174 = vmul.f32 %v2173, %v2172
      %v2175 = vmul.f32 0.5, %v2174
      %v2176 = vsub.f32 1.5, %v2175
      %v2177 = vmul.f32 %v2172, %v2176
      %vm2178 = vweird.f32 %v1613
      %vm2179 = vweird.f32 %v2172
      %vm2180 = vmor %vm2178, %vm2179
      %v2181 = vsel %vm2180, %v2172, %v2177
      %v2182 = vrsqrt.pop %v1614
      %v2183 = vmul.f32 %v2182, %v1614
      %v2184 = vmul.f32 %v2183, %v2182
      %v2185 = vmul.f32 0.5, %v2184
      %v2186 = vsub.f32 1.5, %v2185
      %v2187 = vmul.f32 %v2182, %v2186
      %vm2188 = vweird.f32 %v1614
      %vm2189 = vweird.f32 %v2182
      %vm2190 = vmor %vm2188, %vm2189
      %v2191 = vsel %vm2190, %v2182, %v2187
      %v2192 = vrsqrt.pop %v1615
      %v2193 = vmul.f32 %v2192, %v1615
      %v2194 = vmul.f32 %v2193, %v2192
      %v2195 = vmul.f32 0.5, %v2194
      %v2196 = vsub.f32 1.5, %v2195
      %v2197 = vmul.f32 %v2192, %v2196
      %vm2198 = vweird.f32 %v1615
      %vm2199 = vweird.f32 %v2192
      %vm2200 = vmor %vm2198, %vm2199
      %v2201 = vsel %vm2200, %v2192, %v2197
      %v2202 = vrsqrt.pop %v1616
      %v2203 = vmul.f32 %v2202, %v1616
      %v2204 = vmul.f32 %v2203, %v2202
      %v2205 = vmul.f32 0.5, %v2204
      %v2206 = vsub.f32 1.5, %v2205
      %v2207 = vmul.f32 %v2202, %v2206
      %vm2208 = vweird.f32 %v1616
      %vm2209 = vweird.f32 %v2202
      %vm2210 = vmor %vm2208, %vm2209
      %v2211 = vsel %vm2210, %v2202, %v2207
      %v2212 = vrsqrt.pop %v1617
      %v2213 = vmul.f32 %v2212, %v1617
      %v2214 = vmul.f32 %v2213, %v2212
      %v2215 = vmul.f32 0.5, %v2214
      %v2216 = vsub.f32 1.5, %v2215
      %v2217 = vmul.f32 %v2212, %v2216
      %vm2218 = vweird.f32 %v1617
      %vm2219 = vweird.f32 %v2212
      %vm2220 = vmor %vm2218, %vm2219
      %v2221 = vsel %vm2220, %v2212, %v2217
      %v2222 = vrsqrt.pop %v1618
      %v2223 = vmul.f32 %v2222, %v1618
      %v2224 = vmul.f32 %v2223, %v2222
      %v2225 = vmul.f32 0.5, %v2224
      %v2226 = vsub.f32 1.5, %v2225
      %v2227 = vmul.f32 %v2222, %v2226
      %vm2228 = vweird.f32 %v1618
      %vm2229 = vweird.f32 %v2222
      %vm2230 = vmor %vm2228, %vm2229
      %v2231 = vsel %vm2230, %v2222, %v2227
      %v2232 = vrsqrt.pop %v1619
      %v2233 = vmul.f32 %v2232, %v1619
      %v2234 = vmul.f32 %v2233, %v2232
      %v2235 = vmul.f32 0.5, %v2234
      %v2236 = vsub.f32 1.5, %v2235
      %v2237 = vmul.f32 %v2232, %v2236
      %vm2238 = vweird.f32 %v1619
      %vm2239 = vweird.f32 %v2232
      %vm2240 = vmor %vm2238, %vm2239
      %v2241 = vsel %vm2240, %v2232, %v2237
      %v2242 = vrsqrt.pop %v1620
      %v2243 = vmul.f32 %v2242, %v1620
      %v2244 = vmul.f32 %v2243, %v2242
      %v2245 = vmul.f32 0.5, %v2244
      %v2246 = vsub.f32 1.5, %v2245
      %v2247 = vmul.f32 %v2242, %v2246
      %vm2248 = vweird.f32 %v1620
      %vm2249 = vweird.f32 %v2242
      %vm2250 = vmor %vm2248, %vm2249
      %v2251 = vsel %vm2250, %v2242, %v2247
      %v2252 = vrsqrt.pop %v1621
      %v2253 = vmul.f32 %v2252, %v1621
      %v2254 = vmul.f32 %v2253, %v2252
      %v2255 = vmul.f32 0.5, %v2254
      %v2256 = vsub.f32 1.5, %v2255
      %v2257 = vmul.f32 %v2252, %v2256
      %vm2258 = vweird.f32 %v1621
      %vm2259 = vweird.f32 %v2252
      %vm2260 = vmor %vm2258, %vm2259
      %v2261 = vsel %vm2260, %v2252, %v2257
      %v2262 = vmul.f32 %v1171, %v1631
      %v2263 = vmul.f32 %v1172, %v1641
      %v2264 = vmul.f32 %v1173, %v1651
      %v2265 = vmul.f32 %v1174, %v1661
      %v2266 = vmul.f32 %v1175, %v1671
      %v2267 = vmul.f32 %v1176, %v1681
      %v2268 = vmul.f32 %v1177, %v1691
      %v2269 = vmul.f32 %v1178, %v1701
      %v2270 = vmul.f32 %v1179, %v1711
      %v2271 = vmul.f32 %v1180, %v1721
      %v2272 = vmul.f32 %v1181, %v1731
      %v2273 = vmul.f32 %v1182, %v1741
      %v2274 = vmul.f32 %v1183, %v1751
      %v2275 = vmul.f32 %v1184, %v1761
      %v2276 = vmul.f32 %v1185, %v1771
      %v2277 = vmul.f32 %v1186, %v1781
      %v2278 = vmul.f32 %v1187, %v1791
      %v2279 = vmul.f32 %v1188, %v1801
      %v2280 = vmul.f32 %v1189, %v1811
      %v2281 = vmul.f32 %v1190, %v1821
      %v2282 = vmul.f32 %v1191, %v1831
      %v2283 = vmul.f32 %v1192, %v1841
      %v2284 = vmul.f32 %v1193, %v1851
      %v2285 = vmul.f32 %v1194, %v1861
      %v2286 = vmul.f32 %v1195, %v1871
      %v2287 = vmul.f32 %v1196, %v1881
      %v2288 = vmul.f32 %v1197, %v1891
      %v2289 = vmul.f32 %v1198, %v1901
      %v2290 = vmul.f32 %v1199, %v1911
      %v2291 = vmul.f32 %v1200, %v1921
      %v2292 = vmul.f32 %v1201, %v1931
      %v2293 = vmul.f32 %v1202, %v1941
      %v2294 = vmul.f32 %v1203, %v1951
      %v2295 = vmul.f32 %v1204, %v1961
      %v2296 = vmul.f32 %v1205, %v1971
      %v2297 = vmul.f32 %v1206, %v1981
      %v2298 = vmul.f32 %v1207, %v1991
      %v2299 = vmul.f32 %v1208, %v2001
      %v2300 = vmul.f32 %v1209, %v2011
      %v2301 = vmul.f32 %v1210, %v2021
      %v2302 = vmul.f32 %v1211, %v2031
      %v2303 = vmul.f32 %v1212, %v2041
      %v2304 = vmul.f32 %v1213, %v2051
      %v2305 = vmul.f32 %v1214, %v2061
      %v2306 = vmul.f32 %v1215, %v2071
      %v2307 = vmul.f32 %v1216, %v2081
      %v2308 = vmul.f32 %v1217, %v2091
      %v2309 = vmul.f32 %v1218, %v2101
      %v2310 = vmul.f32 %v1219, %v2111
      %v2311 = vmul.f32 %v1220, %v2121
      %v2312 = vmul.f32 %v1221, %v2131
      %v2313 = vmul.f32 %v1222, %v2141
      %v2314 = vmul.f32 %v1223, %v2151
      %v2315 = vmul.f32 %v1224, %v2161
      %v2316 = vmul.f32 %v1225, %v2171
      %v2317 = vmul.f32 %v1226, %v2181
      %v2318 = vmul.f32 %v1227, %v2191
      %v2319 = vmul.f32 %v1228, %v2201
      %v2320 = vmul.f32 %v1229, %v2211
      %v2321 = vmul.f32 %v1230, %v2221
      %v2322 = vmul.f32 %v1231, %v2231
      %v2323 = vmul.f32 %v1232, %v2241
      %v2324 = vmul.f32 %v1233, %v2251
      %v2325 = vmul.f32 %v1234, %v2261
      %v2326 = vld [vmem:[%s3] sm:$0x1]
      %v2328 = vperm.slane %v2326, 0
      %v2330 = vmul.f32 %v2262, %v2328
      %v2331 = vmul.f32 %v2263, %v2328
      %v2332 = vmul.f32 %v2264, %v2328
      %v2333 = vmul.f32 %v2265, %v2328
      %v2334 = vmul.f32 %v2266, %v2328
      %v2335 = vmul.f32 %v2267, %v2328
      %v2336 = vmul.f32 %v2268, %v2328
      %v2337 = vmul.f32 %v2269, %v2328
      %v2338 = vmul.f32 %v2270, %v2328
      %v2339 = vmul.f32 %v2271, %v2328
      %v2340 = vmul.f32 %v2272, %v2328
      %v2341 = vmul.f32 %v2273, %v2328
      %v2342 = vmul.f32 %v2274, %v2328
      %v2343 = vmul.f32 %v2275, %v2328
      %v2344 = vmul.f32 %v2276, %v2328
      %v2345 = vmul.f32 %v2277, %v2328
      %v2346 = vmul.f32 %v2278, %v2328
      %v2347 = vmul.f32 %v2279, %v2328
      %v2348 = vmul.f32 %v2280, %v2328
      %v2349 = vmul.f32 %v2281, %v2328
      %v2350 = vmul.f32 %v2282, %v2328
      %v2351 = vmul.f32 %v2283, %v2328
      %v2352 = vmul.f32 %v2284, %v2328
      %v2353 = vmul.f32 %v2285, %v2328
      %v2354 = vmul.f32 %v2286, %v2328
      %v2355 = vmul.f32 %v2287, %v2328
      %v2356 = vmul.f32 %v2288, %v2328
      %v2357 = vmul.f32 %v2289, %v2328
      %v2358 = vmul.f32 %v2290, %v2328
      %v2359 = vmul.f32 %v2291, %v2328
      %v2360 = vmul.f32 %v2292, %v2328
      %v2361 = vmul.f32 %v2293, %v2328
      %v2362 = vmul.f32 %v2294, %v2328
      %v2363 = vmul.f32 %v2295, %v2328
      %v2364 = vmul.f32 %v2296, %v2328
      %v2365 = vmul.f32 %v2297, %v2328
      %v2366 = vmul.f32 %v2298, %v2328
      %v2367 = vmul.f32 %v2299, %v2328
      %v2368 = vmul.f32 %v2300, %v2328
      %v2369 = vmul.f32 %v2301, %v2328
      %v2370 = vmul.f32 %v2302, %v2328
      %v2371 = vmul.f32 %v2303, %v2328
      %v2372 = vmul.f32 %v2304, %v2328
      %v2373 = vmul.f32 %v2305, %v2328
      %v2374 = vmul.f32 %v2306, %v2328
      %v2375 = vmul.f32 %v2307, %v2328
      %v2376 = vmul.f32 %v2308, %v2328
      %v2377 = vmul.f32 %v2309, %v2328
      %v2378 = vmul.f32 %v2310, %v2328
      %v2379 = vmul.f32 %v2311, %v2328
      %v2380 = vmul.f32 %v2312, %v2328
      %v2381 = vmul.f32 %v2313, %v2328
      %v2382 = vmul.f32 %v2314, %v2328
      %v2383 = vmul.f32 %v2315, %v2328
      %v2384 = vmul.f32 %v2316, %v2328
      %v2385 = vmul.f32 %v2317, %v2328
      %v2386 = vmul.f32 %v2318, %v2328
      %v2387 = vmul.f32 %v2319, %v2328
      %v2388 = vmul.f32 %v2320, %v2328
      %v2389 = vmul.f32 %v2321, %v2328
      %v2390 = vmul.f32 %v2322, %v2328
      %v2391 = vmul.f32 %v2323, %v2328
      %v2392 = vmul.f32 %v2324, %v2328
      %v2393 = vmul.f32 %v2325, %v2328
      %v2394 = vld [vmem:[%s4] sm:$0x1]
      %v2396 = vperm.slane %v2394, 0
      %v2398 = vadd.f32 %v2330, %v2396
      %v2399 = vadd.f32 %v2331, %v2396
      %v2400 = vadd.f32 %v2332, %v2396
      %v2401 = vadd.f32 %v2333, %v2396
      %v2402 = vadd.f32 %v2334, %v2396
      %v2403 = vadd.f32 %v2335, %v2396
      %v2404 = vadd.f32 %v2336, %v2396
      %v2405 = vadd.f32 %v2337, %v2396
      %v2406 = vadd.f32 %v2338, %v2396
      %v2407 = vadd.f32 %v2339, %v2396
      %v2408 = vadd.f32 %v2340, %v2396
      %v2409 = vadd.f32 %v2341, %v2396
      %v2410 = vadd.f32 %v2342, %v2396
      %v2411 = vadd.f32 %v2343, %v2396
      %v2412 = vadd.f32 %v2344, %v2396
      %v2413 = vadd.f32 %v2345, %v2396
      %v2414 = vadd.f32 %v2346, %v2396
      %v2415 = vadd.f32 %v2347, %v2396
      %v2416 = vadd.f32 %v2348, %v2396
      %v2417 = vadd.f32 %v2349, %v2396
      %v2418 = vadd.f32 %v2350, %v2396
      %v2419 = vadd.f32 %v2351, %v2396
      %v2420 = vadd.f32 %v2352, %v2396
      %v2421 = vadd.f32 %v2353, %v2396
      %v2422 = vadd.f32 %v2354, %v2396
      %v2423 = vadd.f32 %v2355, %v2396
      %v2424 = vadd.f32 %v2356, %v2396
      %v2425 = vadd.f32 %v2357, %v2396
      %v2426 = vadd.f32 %v2358, %v2396
      %v2427 = vadd.f32 %v2359, %v2396
      %v2428 = vadd.f32 %v2360, %v2396
      %v2429 = vadd.f32 %v2361, %v2396
      %v2430 = vadd.f32 %v2362, %v2396
      %v2431 = vadd.f32 %v2363, %v2396
      %v2432 = vadd.f32 %v2364, %v2396
      %v2433 = vadd.f32 %v2365, %v2396
      %v2434 = vadd.f32 %v2366, %v2396
      %v2435 = vadd.f32 %v2367, %v2396
      %v2436 = vadd.f32 %v2368, %v2396
      %v2437 = vadd.f32 %v2369, %v2396
      %v2438 = vadd.f32 %v2370, %v2396
      %v2439 = vadd.f32 %v2371, %v2396
      %v2440 = vadd.f32 %v2372, %v2396
      %v2441 = vadd.f32 %v2373, %v2396
      %v2442 = vadd.f32 %v2374, %v2396
      %v2443 = vadd.f32 %v2375, %v2396
      %v2444 = vadd.f32 %v2376, %v2396
      %v2445 = vadd.f32 %v2377, %v2396
      %v2446 = vadd.f32 %v2378, %v2396
      %v2447 = vadd.f32 %v2379, %v2396
      %v2448 = vadd.f32 %v2380, %v2396
      %v2449 = vadd.f32 %v2381, %v2396
      %v2450 = vadd.f32 %v2382, %v2396
      %v2451 = vadd.f32 %v2383, %v2396
      %v2452 = vadd.f32 %v2384, %v2396
      %v2453 = vadd.f32 %v2385, %v2396
      %v2454 = vadd.f32 %v2386, %v2396
      %v2455 = vadd.f32 %v2387, %v2396
      %v2456 = vadd.f32 %v2388, %v2396
      %v2457 = vadd.f32 %v2389, %v2396
      %v2458 = vadd.f32 %v2390, %v2396
      %v2459 = vadd.f32 %v2391, %v2396
      %v2460 = vadd.f32 %v2392, %v2396
      %v2461 = vadd.f32 %v2393, %v2396
      %v2462 = vadd.f32 %v2398, %v720
      %v2463 = vadd.f32 %v2399, %v723
      %v2464 = vadd.f32 %v2400, %v726
      %v2465 = vadd.f32 %v2401, %v729
      %v2466 = vadd.f32 %v2402, %v732
      %v2467 = vadd.f32 %v2403, %v735
      %v2468 = vadd.f32 %v2404, %v738
      %v2469 = vadd.f32 %v2405, %v741
      %v2470 = vadd.f32 %v2406, %v744
      %v2471 = vadd.f32 %v2407, %v747
      %v2472 = vadd.f32 %v2408, %v750
      %v2473 = vadd.f32 %v2409, %v753
      %v2474 = vadd.f32 %v2410, %v756
      %v2475 = vadd.f32 %v2411, %v759
      %v2476 = vadd.f32 %v2412, %v762
      %v2477 = vadd.f32 %v2413, %v765
      %v2478 = vadd.f32 %v2414, %v768
      %v2479 = vadd.f32 %v2415, %v771
      %v2480 = vadd.f32 %v2416, %v774
      %v2481 = vadd.f32 %v2417, %v777
      %v2482 = vadd.f32 %v2418, %v780
      %v2483 = vadd.f32 %v2419, %v783
      %v2484 = vadd.f32 %v2420, %v786
      %v2485 = vadd.f32 %v2421, %v789
      %v2486 = vadd.f32 %v2422, %v792
      %v2487 = vadd.f32 %v2423, %v795
      %v2488 = vadd.f32 %v2424, %v798
      %v2489 = vadd.f32 %v2425, %v801
      %v2490 = vadd.f32 %v2426, %v804
      %v2491 = vadd.f32 %v2427, %v807
      %v2492 = vadd.f32 %v2428, %v810
      %v2493 = vadd.f32 %v2429, %v813
      %v2494 = vadd.f32 %v2430, %v816
      %v2495 = vadd.f32 %v2431, %v819
      %v2496 = vadd.f32 %v2432, %v822
      %v2497 = vadd.f32 %v2433, %v825
      %v2498 = vadd.f32 %v2434, %v828
      %v2499 = vadd.f32 %v2435, %v831
      %v2500 = vadd.f32 %v2436, %v834
      %v2501 = vadd.f32 %v2437, %v837
      %v2502 = vadd.f32 %v2438, %v840
      %v2503 = vadd.f32 %v2439, %v843
      %v2504 = vadd.f32 %v2440, %v846
      %v2505 = vadd.f32 %v2441, %v849
      %v2506 = vadd.f32 %v2442, %v852
      %v2507 = vadd.f32 %v2443, %v855
      %v2508 = vadd.f32 %v2444, %v858
      %v2509 = vadd.f32 %v2445, %v861
      %v2510 = vadd.f32 %v2446, %v864
      %v2511 = vadd.f32 %v2447, %v867
      %v2512 = vadd.f32 %v2448, %v870
      %v2513 = vadd.f32 %v2449, %v873
      %v2514 = vadd.f32 %v2450, %v876
      %v2515 = vadd.f32 %v2451, %v879
      %v2516 = vadd.f32 %v2452, %v882
      %v2517 = vadd.f32 %v2453, %v885
      %v2518 = vadd.f32 %v2454, %v888
      %v2519 = vadd.f32 %v2455, %v891
      %v2520 = vadd.f32 %v2456, %v894
      %v2521 = vadd.f32 %v2457, %v897
      %v2522 = vadd.f32 %v2458, %v900
      %v2523 = vadd.f32 %v2459, %v903
      %v2524 = vadd.f32 %v2460, %v906
      %v2525 = vadd.f32 %v2461, %v909
      %v2526 = vxor.u32 %v2462, 2147483648
      %v2527 = vxor.u32 %v2463, 2147483648
      %v2528 = vxor.u32 %v2464, 2147483648
      %v2529 = vxor.u32 %v2465, 2147483648
      %v2530 = vxor.u32 %v2466, 2147483648
      %v2531 = vxor.u32 %v2467, 2147483648
      %v2532 = vxor.u32 %v2468, 2147483648
      %v2533 = vxor.u32 %v2469, 2147483648
      %v2534 = vxor.u32 %v2470, 2147483648
      %v2535 = vxor.u32 %v2471, 2147483648
      %v2536 = vxor.u32 %v2472, 2147483648
      %v2537 = vxor.u32 %v2473, 2147483648
      %v2538 = vxor.u32 %v2474, 2147483648
      %v2539 = vxor.u32 %v2475, 2147483648
      %v2540 = vxor.u32 %v2476, 2147483648
      %v2541 = vxor.u32 %v2477, 2147483648
      %v2542 = vxor.u32 %v2478, 2147483648
      %v2543 = vxor.u32 %v2479, 2147483648
      %v2544 = vxor.u32 %v2480, 2147483648
      %v2545 = vxor.u32 %v2481, 2147483648
      %v2546 = vxor.u32 %v2482, 2147483648
      %v2547 = vxor.u32 %v2483, 2147483648
      %v2548 = vxor.u32 %v2484, 2147483648
      %v2549 = vxor.u32 %v2485, 2147483648
      %v2550 = vxor.u32 %v2486, 2147483648
      %v2551 = vxor.u32 %v2487, 2147483648
      %v2552 = vxor.u32 %v2488, 2147483648
      %v2553 = vxor.u32 %v2489, 2147483648
      %v2554 = vxor.u32 %v2490, 2147483648
      %v2555 = vxor.u32 %v2491, 2147483648
      %v2556 = vxor.u32 %v2492, 2147483648
      %v2557 = vxor.u32 %v2493, 2147483648
      %v2558 = vxor.u32 %v2494, 2147483648
      %v2559 = vxor.u32 %v2495, 2147483648
      %v2560 = vxor.u32 %v2496, 2147483648
      %v2561 = vxor.u32 %v2497, 2147483648
      %v2562 = vxor.u32 %v2498, 2147483648
      %v2563 = vxor.u32 %v2499, 2147483648
      %v2564 = vxor.u32 %v2500, 2147483648
      %v2565 = vxor.u32 %v2501, 2147483648
      %v2566 = vxor.u32 %v2502, 2147483648
      %v2567 = vxor.u32 %v2503, 2147483648
      %v2568 = vxor.u32 %v2504, 2147483648
      %v2569 = vxor.u32 %v2505, 2147483648
      %v2570 = vxor.u32 %v2506, 2147483648
      %v2571 = vxor.u32 %v2507, 2147483648
      %v2572 = vxor.u32 %v2508, 2147483648
      %v2573 = vxor.u32 %v2509, 2147483648
      %v2574 = vxor.u32 %v2510, 2147483648
      %v2575 = vxor.u32 %v2511, 2147483648
      %v2576 = vxor.u32 %v2512, 2147483648
      %v2577 = vxor.u32 %v2513, 2147483648
      %v2578 = vxor.u32 %v2514, 2147483648
      %v2579 = vxor.u32 %v2515, 2147483648
      %v2580 = vxor.u32 %v2516, 2147483648
      %v2581 = vxor.u32 %v2517, 2147483648
      %v2582 = vxor.u32 %v2518, 2147483648
      %v2583 = vxor.u32 %v2519, 2147483648
      %v2584 = vxor.u32 %v2520, 2147483648
      %v2585 = vxor.u32 %v2521, 2147483648
      %v2586 = vxor.u32 %v2522, 2147483648
      %v2587 = vxor.u32 %v2523, 2147483648
      %v2588 = vxor.u32 %v2524, 2147483648
      %v2589 = vxor.u32 %v2525, 2147483648
      %v2590 = vmul.f32 %v2526, 1.442695
      %v2591 = vpow.pop %v2590
      %v2592 = vmul.f32 %v2527, 1.442695
      %v2593 = vpow.pop %v2592
      %v2594 = vmul.f32 %v2528, 1.442695
      %v2595 = vpow.pop %v2594
      %v2596 = vmul.f32 %v2529, 1.442695
      %v2597 = vpow.pop %v2596
      %v2598 = vmul.f32 %v2530, 1.442695
      %v2599 = vpow.pop %v2598
      %v2600 = vmul.f32 %v2531, 1.442695
      %v2601 = vpow.pop %v2600
      %v2602 = vmul.f32 %v2532, 1.442695
      %v2603 = vpow.pop %v2602
      %v2604 = vmul.f32 %v2533, 1.442695
      %v2605 = vpow.pop %v2604
      %v2606 = vmul.f32 %v2534, 1.442695
      %v2607 = vpow.pop %v2606
      %v2608 = vmul.f32 %v2535, 1.442695
      %v2609 = vpow.pop %v2608
      %v2610 = vmul.f32 %v2536, 1.442695
      %v2611 = vpow.pop %v2610
      %v2612 = vmul.f32 %v2537, 1.442695
      %v2613 = vpow.pop %v2612
      %v2614 = vmul.f32 %v2538, 1.442695
      %v2615 = vpow.pop %v2614
      %v2616 = vmul.f32 %v2539, 1.442695
      %v2617 = vpow.pop %v2616
      %v2618 = vmul.f32 %v2540, 1.442695
      %v2619 = vpow.pop %v2618
      %v2620 = vmul.f32 %v2541, 1.442695
      %v2621 = vpow.pop %v2620
      %v2622 = vmul.f32 %v2542, 1.442695
      %v2623 = vpow.pop %v2622
      %v2624 = vmul.f32 %v2543, 1.442695
      %v2625 = vpow.pop %v2624
      %v2626 = vmul.f32 %v2544, 1.442695
      %v2627 = vpow.pop %v2626
      %v2628 = vmul.f32 %v2545, 1.442695
      %v2629 = vpow.pop %v2628
      %v2630 = vmul.f32 %v2546, 1.442695
      %v2631 = vpow.pop %v2630
      %v2632 = vmul.f32 %v2547, 1.442695
      %v2633 = vpow.pop %v2632
      %v2634 = vmul.f32 %v2548, 1.442695
      %v2635 = vpow.pop %v2634
      %v2636 = vmul.f32 %v2549, 1.442695
      %v2637 = vpow.pop %v2636
      %v2638 = vmul.f32 %v2550, 1.442695
      %v2639 = vpow.pop %v2638
      %v2640 = vmul.f32 %v2551, 1.442695
      %v2641 = vpow.pop %v2640
      %v2642 = vmul.f32 %v2552, 1.442695
      %v2643 = vpow.pop %v2642
      %v2644 = vmul.f32 %v2553, 1.442695
      %v2645 = vpow.pop %v2644
      %v2646 = vmul.f32 %v2554, 1.442695
      %v2647 = vpow.pop %v2646
      %v2648 = vmul.f32 %v2555, 1.442695
      %v2649 = vpow.pop %v2648
      %v2650 = vmul.f32 %v2556, 1.442695
      %v2651 = vpow.pop %v2650
      %v2652 = vmul.f32 %v2557, 1.442695
      %v2653 = vpow.pop %v2652
      %v2654 = vmul.f32 %v2558, 1.442695
      %v2655 = vpow.pop %v2654
      %v2656 = vmul.f32 %v2559, 1.442695
      %v2657 = vpow.pop %v2656
      %v2658 = vmul.f32 %v2560, 1.442695
      %v2659 = vpow.pop %v2658
      %v2660 = vmul.f32 %v2561, 1.442695
      %v2661 = vpow.pop %v2660
      %v2662 = vmul.f32 %v2562, 1.442695
      %v2663 = vpow.pop %v2662
      %v2664 = vmul.f32 %v2563, 1.442695
      %v2665 = vpow.pop %v2664
      %v2666 = vmul.f32 %v2564, 1.442695
      %v2667 = vpow.pop %v2666
      %v2668 = vmul.f32 %v2565, 1.442695
      %v2669 = vpow.pop %v2668
      %v2670 = vmul.f32 %v2566, 1.442695
      %v2671 = vpow.pop %v2670
      %v2672 = vmul.f32 %v2567, 1.442695
      %v2673 = vpow.pop %v2672
      %v2674 = vmul.f32 %v2568, 1.442695
      %v2675 = vpow.pop %v2674
      %v2676 = vmul.f32 %v2569, 1.442695
      %v2677 = vpow.pop %v2676
      %v2678 = vmul.f32 %v2570, 1.442695
      %v2679 = vpow.pop %v2678
      %v2680 = vmul.f32 %v2571, 1.442695
      %v2681 = vpow.pop %v2680
      %v2682 = vmul.f32 %v2572, 1.442695
      %v2683 = vpow.pop %v2682
      %v2684 = vmul.f32 %v2573, 1.442695
      %v2685 = vpow.pop %v2684
      %v2686 = vmul.f32 %v2574, 1.442695
      %v2687 = vpow.pop %v2686
      %v2688 = vmul.f32 %v2575, 1.442695
      %v2689 = vpow.pop %v2688
      %v2690 = vmul.f32 %v2576, 1.442695
      %v2691 = vpow.pop %v2690
      %v2692 = vmul.f32 %v2577, 1.442695
      %v2693 = vpow.pop %v2692
      %v2694 = vmul.f32 %v2578, 1.442695
      %v2695 = vpow.pop %v2694
      %v2696 = vmul.f32 %v2579, 1.442695
      %v2697 = vpow.pop %v2696
      %v2698 = vmul.f32 %v2580, 1.442695
      %v2699 = vpow.pop %v2698
      %v2700 = vmul.f32 %v2581, 1.442695
      %v2701 = vpow.pop %v2700
      %v2702 = vmul.f32 %v2582, 1.442695
      %v2703 = vpow.pop %v2702
      %v2704 = vmul.f32 %v2583, 1.442695
      %v2705 = vpow.pop %v2704
      %v2706 = vmul.f32 %v2584, 1.442695
      %v2707 = vpow.pop %v2706
      %v2708 = vmul.f32 %v2585, 1.442695
      %v2709 = vpow.pop %v2708
      %v2710 = vmul.f32 %v2586, 1.442695
      %v2711 = vpow.pop %v2710
      %v2712 = vmul.f32 %v2587, 1.442695
      %v2713 = vpow.pop %v2712
      %v2714 = vmul.f32 %v2588, 1.442695
      %v2715 = vpow.pop %v2714
      %v2716 = vmul.f32 %v2589, 1.442695
      %v2717 = vpow.pop %v2716
      %v2718 = vadd.f32 %v2591, 1.0
      %v2719 = vadd.f32 %v2593, 1.0
      %v2720 = vadd.f32 %v2595, 1.0
      %v2721 = vadd.f32 %v2597, 1.0
      %v2722 = vadd.f32 %v2599, 1.0
      %v2723 = vadd.f32 %v2601, 1.0
      %v2724 = vadd.f32 %v2603, 1.0
      %v2725 = vadd.f32 %v2605, 1.0
      %v2726 = vadd.f32 %v2607, 1.0
      %v2727 = vadd.f32 %v2609, 1.0
      %v2728 = vadd.f32 %v2611, 1.0
      %v2729 = vadd.f32 %v2613, 1.0
      %v2730 = vadd.f32 %v2615, 1.0
      %v2731 = vadd.f32 %v2617, 1.0
      %v2732 = vadd.f32 %v2619, 1.0
      %v2733 = vadd.f32 %v2621, 1.0
      %v2734 = vadd.f32 %v2623, 1.0
      %v2735 = vadd.f32 %v2625, 1.0
      %v2736 = vadd.f32 %v2627, 1.0
      %v2737 = vadd.f32 %v2629, 1.0
      %v2738 = vadd.f32 %v2631, 1.0
      %v2739 = vadd.f32 %v2633, 1.0
      %v2740 = vadd.f32 %v2635, 1.0
      %v2741 = vadd.f32 %v2637, 1.0
      %v2742 = vadd.f32 %v2639, 1.0
      %v2743 = vadd.f32 %v2641, 1.0
      %v2744 = vadd.f32 %v2643, 1.0
      %v2745 = vadd.f32 %v2645, 1.0
      %v2746 = vadd.f32 %v2647, 1.0
      %v2747 = vadd.f32 %v2649, 1.0
      %v2748 = vadd.f32 %v2651, 1.0
      %v2749 = vadd.f32 %v2653, 1.0
      %v2750 = vadd.f32 %v2655, 1.0
      %v2751 = vadd.f32 %v2657, 1.0
      %v2752 = vadd.f32 %v2659, 1.0
      %v2753 = vadd.f32 %v2661, 1.0
      %v2754 = vadd.f32 %v2663, 1.0
      %v2755 = vadd.f32 %v2665, 1.0
      %v2756 = vadd.f32 %v2667, 1.0
      %v2757 = vadd.f32 %v2669, 1.0
      %v2758 = vadd.f32 %v2671, 1.0
      %v2759 = vadd.f32 %v2673, 1.0
      %v2760 = vadd.f32 %v2675, 1.0
      %v2761 = vadd.f32 %v2677, 1.0
      %v2762 = vadd.f32 %v2679, 1.0
      %v2763 = vadd.f32 %v2681, 1.0
      %v2764 = vadd.f32 %v2683, 1.0
      %v2765 = vadd.f32 %v2685, 1.0
      %v2766 = vadd.f32 %v2687, 1.0
      %v2767 = vadd.f32 %v2689, 1.0
      %v2768 = vadd.f32 %v2691, 1.0
      %v2769 = vadd.f32 %v2693, 1.0
      %v2770 = vadd.f32 %v2695, 1.0
      %v2771 = vadd.f32 %v2697, 1.0
      %v2772 = vadd.f32 %v2699, 1.0
      %v2773 = vadd.f32 %v2701, 1.0
      %v2774 = vadd.f32 %v2703, 1.0
      %v2775 = vadd.f32 %v2705, 1.0
      %v2776 = vadd.f32 %v2707, 1.0
      %v2777 = vadd.f32 %v2709, 1.0
      %v2778 = vadd.f32 %v2711, 1.0
      %v2779 = vadd.f32 %v2713, 1.0
      %v2780 = vadd.f32 %v2715, 1.0
      %v2781 = vadd.f32 %v2717, 1.0
      %v2782 = vrcp.pop %v2718
      %v2783 = vmul.f32 %v2718, %v2782
      %v2784 = vsub.f32 1.0, %v2783
      %v2785 = vmul.f32 %v2782, %v2784
      %v2786 = vadd.f32 %v2782, %v2785
      %vm2787 = vweird.f32 %v2718
      %vm2788 = vweird.f32 %v2782
      %vm2789 = vmor %vm2787, %vm2788
      %v2790 = vsel %vm2789, %v2782, %v2786
      %v2791 = vand.u32 2147483647, %v2718
      %vm2792 = vcmp.eq.f32.partialorder %v2791, 8.507059e+37
      %v2793 = vand.u32 %v2718, 2147483648
      %v2794 = vor.u32 1.1754944e-38, %v2793
      %v2795 = vsel %vm2792, %v2794, %v2790
      %v2796 = vmul.f32 1.0, %v2795
      %v2797 = vrcp.pop %v2719
      %v2798 = vmul.f32 %v2719, %v2797
      %v2799 = vsub.f32 1.0, %v2798
      %v2800 = vmul.f32 %v2797, %v2799
      %v2801 = vadd.f32 %v2797, %v2800
      %vm2802 = vweird.f32 %v2719
      %vm2803 = vweird.f32 %v2797
      %vm2804 = vmor %vm2802, %vm2803
      %v2805 = vsel %vm2804, %v2797, %v2801
      %v2806 = vand.u32 2147483647, %v2719
      %vm2807 = vcmp.eq.f32.partialorder %v2806, 8.507059e+37
      %v2808 = vand.u32 %v2719, 2147483648
      %v2809 = vor.u32 1.1754944e-38, %v2808
      %v2810 = vsel %vm2807, %v2809, %v2805
      %v2811 = vmul.f32 1.0, %v2810
      %v2812 = vrcp.pop %v2720
      %v2813 = vmul.f32 %v2720, %v2812
      %v2814 = vsub.f32 1.0, %v2813
      %v2815 = vmul.f32 %v2812, %v2814
      %v2816 = vadd.f32 %v2812, %v2815
      %vm2817 = vweird.f32 %v2720
      %vm2818 = vweird.f32 %v2812
      %vm2819 = vmor %vm2817, %vm2818
      %v2820 = vsel %vm2819, %v2812, %v2816
      %v2821 = vand.u32 2147483647, %v2720
      %vm2822 = vcmp.eq.f32.partialorder %v2821, 8.507059e+37
      %v2823 = vand.u32 %v2720, 2147483648
      %v2824 = vor.u32 1.1754944e-38, %v2823
      %v2825 = vsel %vm2822, %v2824, %v2820
      %v2826 = vmul.f32 1.0, %v2825
      %v2827 = vrcp.pop %v2721
      %v2828 = vmul.f32 %v2721, %v2827
      %v2829 = vsub.f32 1.0, %v2828
      %v2830 = vmul.f32 %v2827, %v2829
      %v2831 = vadd.f32 %v2827, %v2830
      %vm2832 = vweird.f32 %v2721
      %vm2833 = vweird.f32 %v2827
      %vm2834 = vmor %vm2832, %vm2833
      %v2835 = vsel %vm2834, %v2827, %v2831
      %v2836 = vand.u32 2147483647, %v2721
      %vm2837 = vcmp.eq.f32.partialorder %v2836, 8.507059e+37
      %v2838 = vand.u32 %v2721, 2147483648
      %v2839 = vor.u32 1.1754944e-38, %v2838
      %v2840 = vsel %vm2837, %v2839, %v2835
      %v2841 = vmul.f32 1.0, %v2840
      %v2842 = vrcp.pop %v2722
      %v2843 = vmul.f32 %v2722, %v2842
      %v2844 = vsub.f32 1.0, %v2843
      %v2845 = vmul.f32 %v2842, %v2844
      %v2846 = vadd.f32 %v2842, %v2845
      %vm2847 = vweird.f32 %v2722
      %vm2848 = vweird.f32 %v2842
      %vm2849 = vmor %vm2847, %vm2848
      %v2850 = vsel %vm2849, %v2842, %v2846
      %v2851 = vand.u32 2147483647, %v2722
      %vm2852 = vcmp.eq.f32.partialorder %v2851, 8.507059e+37
      %v2853 = vand.u32 %v2722, 2147483648
      %v2854 = vor.u32 1.1754944e-38, %v2853
      %v2855 = vsel %vm2852, %v2854, %v2850
      %v2856 = vmul.f32 1.0, %v2855
      %v2857 = vrcp.pop %v2723
      %v2858 = vmul.f32 %v2723, %v2857
      %v2859 = vsub.f32 1.0, %v2858
      %v2860 = vmul.f32 %v2857, %v2859
      %v2861 = vadd.f32 %v2857, %v2860
      %vm2862 = vweird.f32 %v2723
      %vm2863 = vweird.f32 %v2857
      %vm2864 = vmor %vm2862, %vm2863
      %v2865 = vsel %vm2864, %v2857, %v2861
      %v2866 = vand.u32 2147483647, %v2723
      %vm2867 = vcmp.eq.f32.partialorder %v2866, 8.507059e+37
      %v2868 = vand.u32 %v2723, 2147483648
      %v2869 = vor.u32 1.1754944e-38, %v2868
      %v2870 = vsel %vm2867, %v2869, %v2865
      %v2871 = vmul.f32 1.0, %v2870
      %v2872 = vrcp.pop %v2724
      %v2873 = vmul.f32 %v2724, %v2872
      %v2874 = vsub.f32 1.0, %v2873
      %v2875 = vmul.f32 %v2872, %v2874
      %v2876 = vadd.f32 %v2872, %v2875
      %vm2877 = vweird.f32 %v2724
      %vm2878 = vweird.f32 %v2872
      %vm2879 = vmor %vm2877, %vm2878
      %v2880 = vsel %vm2879, %v2872, %v2876
      %v2881 = vand.u32 2147483647, %v2724
      %vm2882 = vcmp.eq.f32.partialorder %v2881, 8.507059e+37
      %v2883 = vand.u32 %v2724, 2147483648
      %v2884 = vor.u32 1.1754944e-38, %v2883
      %v2885 = vsel %vm2882, %v2884, %v2880
      %v2886 = vmul.f32 1.0, %v2885
      %v2887 = vrcp.pop %v2725
      %v2888 = vmul.f32 %v2725, %v2887
      %v2889 = vsub.f32 1.0, %v2888
      %v2890 = vmul.f32 %v2887, %v2889
      %v2891 = vadd.f32 %v2887, %v2890
      %vm2892 = vweird.f32 %v2725
      %vm2893 = vweird.f32 %v2887
      %vm2894 = vmor %vm2892, %vm2893
      %v2895 = vsel %vm2894, %v2887, %v2891
      %v2896 = vand.u32 2147483647, %v2725
      %vm2897 = vcmp.eq.f32.partialorder %v2896, 8.507059e+37
      %v2898 = vand.u32 %v2725, 2147483648
      %v2899 = vor.u32 1.1754944e-38, %v2898
      %v2900 = vsel %vm2897, %v2899, %v2895
      %v2901 = vmul.f32 1.0, %v2900
      %v2902 = vrcp.pop %v2726
      %v2903 = vmul.f32 %v2726, %v2902
      %v2904 = vsub.f32 1.0, %v2903
      %v2905 = vmul.f32 %v2902, %v2904
      %v2906 = vadd.f32 %v2902, %v2905
      %vm2907 = vweird.f32 %v2726
      %vm2908 = vweird.f32 %v2902
      %vm2909 = vmor %vm2907, %vm2908
      %v2910 = vsel %vm2909, %v2902, %v2906
      %v2911 = vand.u32 2147483647, %v2726
      %vm2912 = vcmp.eq.f32.partialorder %v2911, 8.507059e+37
      %v2913 = vand.u32 %v2726, 2147483648
      %v2914 = vor.u32 1.1754944e-38, %v2913
      %v2915 = vsel %vm2912, %v2914, %v2910
      %v2916 = vmul.f32 1.0, %v2915
      %v2917 = vrcp.pop %v2727
      %v2918 = vmul.f32 %v2727, %v2917
      %v2919 = vsub.f32 1.0, %v2918
      %v2920 = vmul.f32 %v2917, %v2919
      %v2921 = vadd.f32 %v2917, %v2920
      %vm2922 = vweird.f32 %v2727
      %vm2923 = vweird.f32 %v2917
      %vm2924 = vmor %vm2922, %vm2923
      %v2925 = vsel %vm2924, %v2917, %v2921
      %v2926 = vand.u32 2147483647, %v2727
      %vm2927 = vcmp.eq.f32.partialorder %v2926, 8.507059e+37
      %v2928 = vand.u32 %v2727, 2147483648
      %v2929 = vor.u32 1.1754944e-38, %v2928
      %v2930 = vsel %vm2927, %v2929, %v2925
      %v2931 = vmul.f32 1.0, %v2930
      %v2932 = vrcp.pop %v2728
      %v2933 = vmul.f32 %v2728, %v2932
      %v2934 = vsub.f32 1.0, %v2933
      %v2935 = vmul.f32 %v2932, %v2934
      %v2936 = vadd.f32 %v2932, %v2935
      %vm2937 = vweird.f32 %v2728
      %vm2938 = vweird.f32 %v2932
      %vm2939 = vmor %vm2937, %vm2938
      %v2940 = vsel %vm2939, %v2932, %v2936
      %v2941 = vand.u32 2147483647, %v2728
      %vm2942 = vcmp.eq.f32.partialorder %v2941, 8.507059e+37
      %v2943 = vand.u32 %v2728, 2147483648
      %v2944 = vor.u32 1.1754944e-38, %v2943
      %v2945 = vsel %vm2942, %v2944, %v2940
      %v2946 = vmul.f32 1.0, %v2945
      %v2947 = vrcp.pop %v2729
      %v2948 = vmul.f32 %v2729, %v2947
      %v2949 = vsub.f32 1.0, %v2948
      %v2950 = vmul.f32 %v2947, %v2949
      %v2951 = vadd.f32 %v2947, %v2950
      %vm2952 = vweird.f32 %v2729
      %vm2953 = vweird.f32 %v2947
      %vm2954 = vmor %vm2952, %vm2953
      %v2955 = vsel %vm2954, %v2947, %v2951
      %v2956 = vand.u32 2147483647, %v2729
      %vm2957 = vcmp.eq.f32.partialorder %v2956, 8.507059e+37
      %v2958 = vand.u32 %v2729, 2147483648
      %v2959 = vor.u32 1.1754944e-38, %v2958
      %v2960 = vsel %vm2957, %v2959, %v2955
      %v2961 = vmul.f32 1.0, %v2960
      %v2962 = vrcp.pop %v2730
      %v2963 = vmul.f32 %v2730, %v2962
      %v2964 = vsub.f32 1.0, %v2963
      %v2965 = vmul.f32 %v2962, %v2964
      %v2966 = vadd.f32 %v2962, %v2965
      %vm2967 = vweird.f32 %v2730
      %vm2968 = vweird.f32 %v2962
      %vm2969 = vmor %vm2967, %vm2968
      %v2970 = vsel %vm2969, %v2962, %v2966
      %v2971 = vand.u32 2147483647, %v2730
      %vm2972 = vcmp.eq.f32.partialorder %v2971, 8.507059e+37
      %v2973 = vand.u32 %v2730, 2147483648
      %v2974 = vor.u32 1.1754944e-38, %v2973
      %v2975 = vsel %vm2972, %v2974, %v2970
      %v2976 = vmul.f32 1.0, %v2975
      %v2977 = vrcp.pop %v2731
      %v2978 = vmul.f32 %v2731, %v2977
      %v2979 = vsub.f32 1.0, %v2978
      %v2980 = vmul.f32 %v2977, %v2979
      %v2981 = vadd.f32 %v2977, %v2980
      %vm2982 = vweird.f32 %v2731
      %vm2983 = vweird.f32 %v2977
      %vm2984 = vmor %vm2982, %vm2983
      %v2985 = vsel %vm2984, %v2977, %v2981
      %v2986 = vand.u32 2147483647, %v2731
      %vm2987 = vcmp.eq.f32.partialorder %v2986, 8.507059e+37
      %v2988 = vand.u32 %v2731, 2147483648
      %v2989 = vor.u32 1.1754944e-38, %v2988
      %v2990 = vsel %vm2987, %v2989, %v2985
      %v2991 = vmul.f32 1.0, %v2990
      %v2992 = vrcp.pop %v2732
      %v2993 = vmul.f32 %v2732, %v2992
      %v2994 = vsub.f32 1.0, %v2993
      %v2995 = vmul.f32 %v2992, %v2994
      %v2996 = vadd.f32 %v2992, %v2995
      %vm2997 = vweird.f32 %v2732
      %vm2998 = vweird.f32 %v2992
      %vm2999 = vmor %vm2997, %vm2998
      %v3000 = vsel %vm2999, %v2992, %v2996
      %v3001 = vand.u32 2147483647, %v2732
      %vm3002 = vcmp.eq.f32.partialorder %v3001, 8.507059e+37
      %v3003 = vand.u32 %v2732, 2147483648
      %v3004 = vor.u32 1.1754944e-38, %v3003
      %v3005 = vsel %vm3002, %v3004, %v3000
      %v3006 = vmul.f32 1.0, %v3005
      %v3007 = vrcp.pop %v2733
      %v3008 = vmul.f32 %v2733, %v3007
      %v3009 = vsub.f32 1.0, %v3008
      %v3010 = vmul.f32 %v3007, %v3009
      %v3011 = vadd.f32 %v3007, %v3010
      %vm3012 = vweird.f32 %v2733
      %vm3013 = vweird.f32 %v3007
      %vm3014 = vmor %vm3012, %vm3013
      %v3015 = vsel %vm3014, %v3007, %v3011
      %v3016 = vand.u32 2147483647, %v2733
      %vm3017 = vcmp.eq.f32.partialorder %v3016, 8.507059e+37
      %v3018 = vand.u32 %v2733, 2147483648
      %v3019 = vor.u32 1.1754944e-38, %v3018
      %v3020 = vsel %vm3017, %v3019, %v3015
      %v3021 = vmul.f32 1.0, %v3020
      %v3022 = vrcp.pop %v2734
      %v3023 = vmul.f32 %v2734, %v3022
      %v3024 = vsub.f32 1.0, %v3023
      %v3025 = vmul.f32 %v3022, %v3024
      %v3026 = vadd.f32 %v3022, %v3025
      %vm3027 = vweird.f32 %v2734
      %vm3028 = vweird.f32 %v3022
      %vm3029 = vmor %vm3027, %vm3028
      %v3030 = vsel %vm3029, %v3022, %v3026
      %v3031 = vand.u32 2147483647, %v2734
      %vm3032 = vcmp.eq.f32.partialorder %v3031, 8.507059e+37
      %v3033 = vand.u32 %v2734, 2147483648
      %v3034 = vor.u32 1.1754944e-38, %v3033
      %v3035 = vsel %vm3032, %v3034, %v3030
      %v3036 = vmul.f32 1.0, %v3035
      %v3037 = vrcp.pop %v2735
      %v3038 = vmul.f32 %v2735, %v3037
      %v3039 = vsub.f32 1.0, %v3038
      %v3040 = vmul.f32 %v3037, %v3039
      %v3041 = vadd.f32 %v3037, %v3040
      %vm3042 = vweird.f32 %v2735
      %vm3043 = vweird.f32 %v3037
      %vm3044 = vmor %vm3042, %vm3043
      %v3045 = vsel %vm3044, %v3037, %v3041
      %v3046 = vand.u32 2147483647, %v2735
      %vm3047 = vcmp.eq.f32.partialorder %v3046, 8.507059e+37
      %v3048 = vand.u32 %v2735, 2147483648
      %v3049 = vor.u32 1.1754944e-38, %v3048
      %v3050 = vsel %vm3047, %v3049, %v3045
      %v3051 = vmul.f32 1.0, %v3050
      %v3052 = vrcp.pop %v2736
      %v3053 = vmul.f32 %v2736, %v3052
      %v3054 = vsub.f32 1.0, %v3053
      %v3055 = vmul.f32 %v3052, %v3054
      %v3056 = vadd.f32 %v3052, %v3055
      %vm3057 = vweird.f32 %v2736
      %vm3058 = vweird.f32 %v3052
      %vm3059 = vmor %vm3057, %vm3058
      %v3060 = vsel %vm3059, %v3052, %v3056
      %v3061 = vand.u32 2147483647, %v2736
      %vm3062 = vcmp.eq.f32.partialorder %v3061, 8.507059e+37
      %v3063 = vand.u32 %v2736, 2147483648
      %v3064 = vor.u32 1.1754944e-38, %v3063
      %v3065 = vsel %vm3062, %v3064, %v3060
      %v3066 = vmul.f32 1.0, %v3065
      %v3067 = vrcp.pop %v2737
      %v3068 = vmul.f32 %v2737, %v3067
      %v3069 = vsub.f32 1.0, %v3068
      %v3070 = vmul.f32 %v3067, %v3069
      %v3071 = vadd.f32 %v3067, %v3070
      %vm3072 = vweird.f32 %v2737
      %vm3073 = vweird.f32 %v3067
      %vm3074 = vmor %vm3072, %vm3073
      %v3075 = vsel %vm3074, %v3067, %v3071
      %v3076 = vand.u32 2147483647, %v2737
      %vm3077 = vcmp.eq.f32.partialorder %v3076, 8.507059e+37
      %v3078 = vand.u32 %v2737, 2147483648
      %v3079 = vor.u32 1.1754944e-38, %v3078
      %v3080 = vsel %vm3077, %v3079, %v3075
      %v3081 = vmul.f32 1.0, %v3080
      %v3082 = vrcp.pop %v2738
      %v3083 = vmul.f32 %v2738, %v3082
      %v3084 = vsub.f32 1.0, %v3083
      %v3085 = vmul.f32 %v3082, %v3084
      %v3086 = vadd.f32 %v3082, %v3085
      %vm3087 = vweird.f32 %v2738
      %vm3088 = vweird.f32 %v3082
      %vm3089 = vmor %vm3087, %vm3088
      %v3090 = vsel %vm3089, %v3082, %v3086
      %v3091 = vand.u32 2147483647, %v2738
      %vm3092 = vcmp.eq.f32.partialorder %v3091, 8.507059e+37
      %v3093 = vand.u32 %v2738, 2147483648
      %v3094 = vor.u32 1.1754944e-38, %v3093
      %v3095 = vsel %vm3092, %v3094, %v3090
      %v3096 = vmul.f32 1.0, %v3095
      %v3097 = vrcp.pop %v2739
      %v3098 = vmul.f32 %v2739, %v3097
      %v3099 = vsub.f32 1.0, %v3098
      %v3100 = vmul.f32 %v3097, %v3099
      %v3101 = vadd.f32 %v3097, %v3100
      %vm3102 = vweird.f32 %v2739
      %vm3103 = vweird.f32 %v3097
      %vm3104 = vmor %vm3102, %vm3103
      %v3105 = vsel %vm3104, %v3097, %v3101
      %v3106 = vand.u32 2147483647, %v2739
      %vm3107 = vcmp.eq.f32.partialorder %v3106, 8.507059e+37
      %v3108 = vand.u32 %v2739, 2147483648
      %v3109 = vor.u32 1.1754944e-38, %v3108
      %v3110 = vsel %vm3107, %v3109, %v3105
      %v3111 = vmul.f32 1.0, %v3110
      %v3112 = vrcp.pop %v2740
      %v3113 = vmul.f32 %v2740, %v3112
      %v3114 = vsub.f32 1.0, %v3113
      %v3115 = vmul.f32 %v3112, %v3114
      %v3116 = vadd.f32 %v3112, %v3115
      %vm3117 = vweird.f32 %v2740
      %vm3118 = vweird.f32 %v3112
      %vm3119 = vmor %vm3117, %vm3118
      %v3120 = vsel %vm3119, %v3112, %v3116
      %v3121 = vand.u32 2147483647, %v2740
      %vm3122 = vcmp.eq.f32.partialorder %v3121, 8.507059e+37
      %v3123 = vand.u32 %v2740, 2147483648
      %v3124 = vor.u32 1.1754944e-38, %v3123
      %v3125 = vsel %vm3122, %v3124, %v3120
      %v3126 = vmul.f32 1.0, %v3125
      %v3127 = vrcp.pop %v2741
      %v3128 = vmul.f32 %v2741, %v3127
      %v3129 = vsub.f32 1.0, %v3128
      %v3130 = vmul.f32 %v3127, %v3129
      %v3131 = vadd.f32 %v3127, %v3130
      %vm3132 = vweird.f32 %v2741
      %vm3133 = vweird.f32 %v3127
      %vm3134 = vmor %vm3132, %vm3133
      %v3135 = vsel %vm3134, %v3127, %v3131
      %v3136 = vand.u32 2147483647, %v2741
      %vm3137 = vcmp.eq.f32.partialorder %v3136, 8.507059e+37
      %v3138 = vand.u32 %v2741, 2147483648
      %v3139 = vor.u32 1.1754944e-38, %v3138
      %v3140 = vsel %vm3137, %v3139, %v3135
      %v3141 = vmul.f32 1.0, %v3140
      %v3142 = vrcp.pop %v2742
      %v3143 = vmul.f32 %v2742, %v3142
      %v3144 = vsub.f32 1.0, %v3143
      %v3145 = vmul.f32 %v3142, %v3144
      %v3146 = vadd.f32 %v3142, %v3145
      %vm3147 = vweird.f32 %v2742
      %vm3148 = vweird.f32 %v3142
      %vm3149 = vmor %vm3147, %vm3148
      %v3150 = vsel %vm3149, %v3142, %v3146
      %v3151 = vand.u32 2147483647, %v2742
      %vm3152 = vcmp.eq.f32.partialorder %v3151, 8.507059e+37
      %v3153 = vand.u32 %v2742, 2147483648
      %v3154 = vor.u32 1.1754944e-38, %v3153
      %v3155 = vsel %vm3152, %v3154, %v3150
      %v3156 = vmul.f32 1.0, %v3155
      %v3157 = vrcp.pop %v2743
      %v3158 = vmul.f32 %v2743, %v3157
      %v3159 = vsub.f32 1.0, %v3158
      %v3160 = vmul.f32 %v3157, %v3159
      %v3161 = vadd.f32 %v3157, %v3160
      %vm3162 = vweird.f32 %v2743
      %vm3163 = vweird.f32 %v3157
      %vm3164 = vmor %vm3162, %vm3163
      %v3165 = vsel %vm3164, %v3157, %v3161
      %v3166 = vand.u32 2147483647, %v2743
      %vm3167 = vcmp.eq.f32.partialorder %v3166, 8.507059e+37
      %v3168 = vand.u32 %v2743, 2147483648
      %v3169 = vor.u32 1.1754944e-38, %v3168
      %v3170 = vsel %vm3167, %v3169, %v3165
      %v3171 = vmul.f32 1.0, %v3170
      %v3172 = vrcp.pop %v2744
      %v3173 = vmul.f32 %v2744, %v3172
      %v3174 = vsub.f32 1.0, %v3173
      %v3175 = vmul.f32 %v3172, %v3174
      %v3176 = vadd.f32 %v3172, %v3175
      %vm3177 = vweird.f32 %v2744
      %vm3178 = vweird.f32 %v3172
      %vm3179 = vmor %vm3177, %vm3178
      %v3180 = vsel %vm3179, %v3172, %v3176
      %v3181 = vand.u32 2147483647, %v2744
      %vm3182 = vcmp.eq.f32.partialorder %v3181, 8.507059e+37
      %v3183 = vand.u32 %v2744, 2147483648
      %v3184 = vor.u32 1.1754944e-38, %v3183
      %v3185 = vsel %vm3182, %v3184, %v3180
      %v3186 = vmul.f32 1.0, %v3185
      %v3187 = vrcp.pop %v2745
      %v3188 = vmul.f32 %v2745, %v3187
      %v3189 = vsub.f32 1.0, %v3188
      %v3190 = vmul.f32 %v3187, %v3189
      %v3191 = vadd.f32 %v3187, %v3190
      %vm3192 = vweird.f32 %v2745
      %vm3193 = vweird.f32 %v3187
      %vm3194 = vmor %vm3192, %vm3193
      %v3195 = vsel %vm3194, %v3187, %v3191
      %v3196 = vand.u32 2147483647, %v2745
      %vm3197 = vcmp.eq.f32.partialorder %v3196, 8.507059e+37
      %v3198 = vand.u32 %v2745, 2147483648
      %v3199 = vor.u32 1.1754944e-38, %v3198
      %v3200 = vsel %vm3197, %v3199, %v3195
      %v3201 = vmul.f32 1.0, %v3200
      %v3202 = vrcp.pop %v2746
      %v3203 = vmul.f32 %v2746, %v3202
      %v3204 = vsub.f32 1.0, %v3203
      %v3205 = vmul.f32 %v3202, %v3204
      %v3206 = vadd.f32 %v3202, %v3205
      %vm3207 = vweird.f32 %v2746
      %vm3208 = vweird.f32 %v3202
      %vm3209 = vmor %vm3207, %vm3208
      %v3210 = vsel %vm3209, %v3202, %v3206
      %v3211 = vand.u32 2147483647, %v2746
      %vm3212 = vcmp.eq.f32.partialorder %v3211, 8.507059e+37
      %v3213 = vand.u32 %v2746, 2147483648
      %v3214 = vor.u32 1.1754944e-38, %v3213
      %v3215 = vsel %vm3212, %v3214, %v3210
      %v3216 = vmul.f32 1.0, %v3215
      %v3217 = vrcp.pop %v2747
      %v3218 = vmul.f32 %v2747, %v3217
      %v3219 = vsub.f32 1.0, %v3218
      %v3220 = vmul.f32 %v3217, %v3219
      %v3221 = vadd.f32 %v3217, %v3220
      %vm3222 = vweird.f32 %v2747
      %vm3223 = vweird.f32 %v3217
      %vm3224 = vmor %vm3222, %vm3223
      %v3225 = vsel %vm3224, %v3217, %v3221
      %v3226 = vand.u32 2147483647, %v2747
      %vm3227 = vcmp.eq.f32.partialorder %v3226, 8.507059e+37
      %v3228 = vand.u32 %v2747, 2147483648
      %v3229 = vor.u32 1.1754944e-38, %v3228
      %v3230 = vsel %vm3227, %v3229, %v3225
      %v3231 = vmul.f32 1.0, %v3230
      %v3232 = vrcp.pop %v2748
      %v3233 = vmul.f32 %v2748, %v3232
      %v3234 = vsub.f32 1.0, %v3233
      %v3235 = vmul.f32 %v3232, %v3234
      %v3236 = vadd.f32 %v3232, %v3235
      %vm3237 = vweird.f32 %v2748
      %vm3238 = vweird.f32 %v3232
      %vm3239 = vmor %vm3237, %vm3238
      %v3240 = vsel %vm3239, %v3232, %v3236
      %v3241 = vand.u32 2147483647, %v2748
      %vm3242 = vcmp.eq.f32.partialorder %v3241, 8.507059e+37
      %v3243 = vand.u32 %v2748, 2147483648
      %v3244 = vor.u32 1.1754944e-38, %v3243
      %v3245 = vsel %vm3242, %v3244, %v3240
      %v3246 = vmul.f32 1.0, %v3245
      %v3247 = vrcp.pop %v2749
      %v3248 = vmul.f32 %v2749, %v3247
      %v3249 = vsub.f32 1.0, %v3248
      %v3250 = vmul.f32 %v3247, %v3249
      %v3251 = vadd.f32 %v3247, %v3250
      %vm3252 = vweird.f32 %v2749
      %vm3253 = vweird.f32 %v3247
      %vm3254 = vmor %vm3252, %vm3253
      %v3255 = vsel %vm3254, %v3247, %v3251
      %v3256 = vand.u32 2147483647, %v2749
      %vm3257 = vcmp.eq.f32.partialorder %v3256, 8.507059e+37
      %v3258 = vand.u32 %v2749, 2147483648
      %v3259 = vor.u32 1.1754944e-38, %v3258
      %v3260 = vsel %vm3257, %v3259, %v3255
      %v3261 = vmul.f32 1.0, %v3260
      %v3262 = vrcp.pop %v2750
      %v3263 = vmul.f32 %v2750, %v3262
      %v3264 = vsub.f32 1.0, %v3263
      %v3265 = vmul.f32 %v3262, %v3264
      %v3266 = vadd.f32 %v3262, %v3265
      %vm3267 = vweird.f32 %v2750
      %vm3268 = vweird.f32 %v3262
      %vm3269 = vmor %vm3267, %vm3268
      %v3270 = vsel %vm3269, %v3262, %v3266
      %v3271 = vand.u32 2147483647, %v2750
      %vm3272 = vcmp.eq.f32.partialorder %v3271, 8.507059e+37
      %v3273 = vand.u32 %v2750, 2147483648
      %v3274 = vor.u32 1.1754944e-38, %v3273
      %v3275 = vsel %vm3272, %v3274, %v3270
      %v3276 = vmul.f32 1.0, %v3275
      %v3277 = vrcp.pop %v2751
      %v3278 = vmul.f32 %v2751, %v3277
      %v3279 = vsub.f32 1.0, %v3278
      %v3280 = vmul.f32 %v3277, %v3279
      %v3281 = vadd.f32 %v3277, %v3280
      %vm3282 = vweird.f32 %v2751
      %vm3283 = vweird.f32 %v3277
      %vm3284 = vmor %vm3282, %vm3283
      %v3285 = vsel %vm3284, %v3277, %v3281
      %v3286 = vand.u32 2147483647, %v2751
      %vm3287 = vcmp.eq.f32.partialorder %v3286, 8.507059e+37
      %v3288 = vand.u32 %v2751, 2147483648
      %v3289 = vor.u32 1.1754944e-38, %v3288
      %v3290 = vsel %vm3287, %v3289, %v3285
      %v3291 = vmul.f32 1.0, %v3290
      %v3292 = vrcp.pop %v2752
      %v3293 = vmul.f32 %v2752, %v3292
      %v3294 = vsub.f32 1.0, %v3293
      %v3295 = vmul.f32 %v3292, %v3294
      %v3296 = vadd.f32 %v3292, %v3295
      %vm3297 = vweird.f32 %v2752
      %vm3298 = vweird.f32 %v3292
      %vm3299 = vmor %vm3297, %vm3298
      %v3300 = vsel %vm3299, %v3292, %v3296
      %v3301 = vand.u32 2147483647, %v2752
      %vm3302 = vcmp.eq.f32.partialorder %v3301, 8.507059e+37
      %v3303 = vand.u32 %v2752, 2147483648
      %v3304 = vor.u32 1.1754944e-38, %v3303
      %v3305 = vsel %vm3302, %v3304, %v3300
      %v3306 = vmul.f32 1.0, %v3305
      %v3307 = vrcp.pop %v2753
      %v3308 = vmul.f32 %v2753, %v3307
      %v3309 = vsub.f32 1.0, %v3308
      %v3310 = vmul.f32 %v3307, %v3309
      %v3311 = vadd.f32 %v3307, %v3310
      %vm3312 = vweird.f32 %v2753
      %vm3313 = vweird.f32 %v3307
      %vm3314 = vmor %vm3312, %vm3313
      %v3315 = vsel %vm3314, %v3307, %v3311
      %v3316 = vand.u32 2147483647, %v2753
      %vm3317 = vcmp.eq.f32.partialorder %v3316, 8.507059e+37
      %v3318 = vand.u32 %v2753, 2147483648
      %v3319 = vor.u32 1.1754944e-38, %v3318
      %v3320 = vsel %vm3317, %v3319, %v3315
      %v3321 = vmul.f32 1.0, %v3320
      %v3322 = vrcp.pop %v2754
      %v3323 = vmul.f32 %v2754, %v3322
      %v3324 = vsub.f32 1.0, %v3323
      %v3325 = vmul.f32 %v3322, %v3324
      %v3326 = vadd.f32 %v3322, %v3325
      %vm3327 = vweird.f32 %v2754
      %vm3328 = vweird.f32 %v3322
      %vm3329 = vmor %vm3327, %vm3328
      %v3330 = vsel %vm3329, %v3322, %v3326
      %v3331 = vand.u32 2147483647, %v2754
      %vm3332 = vcmp.eq.f32.partialorder %v3331, 8.507059e+37
      %v3333 = vand.u32 %v2754, 2147483648
      %v3334 = vor.u32 1.1754944e-38, %v3333
      %v3335 = vsel %vm3332, %v3334, %v3330
      %v3336 = vmul.f32 1.0, %v3335
      %v3337 = vrcp.pop %v2755
      %v3338 = vmul.f32 %v2755, %v3337
      %v3339 = vsub.f32 1.0, %v3338
      %v3340 = vmul.f32 %v3337, %v3339
      %v3341 = vadd.f32 %v3337, %v3340
      %vm3342 = vweird.f32 %v2755
      %vm3343 = vweird.f32 %v3337
      %vm3344 = vmor %vm3342, %vm3343
      %v3345 = vsel %vm3344, %v3337, %v3341
      %v3346 = vand.u32 2147483647, %v2755
      %vm3347 = vcmp.eq.f32.partialorder %v3346, 8.507059e+37
      %v3348 = vand.u32 %v2755, 2147483648
      %v3349 = vor.u32 1.1754944e-38, %v3348
      %v3350 = vsel %vm3347, %v3349, %v3345
      %v3351 = vmul.f32 1.0, %v3350
      %v3352 = vrcp.pop %v2756
      %v3353 = vmul.f32 %v2756, %v3352
      %v3354 = vsub.f32 1.0, %v3353
      %v3355 = vmul.f32 %v3352, %v3354
      %v3356 = vadd.f32 %v3352, %v3355
      %vm3357 = vweird.f32 %v2756
      %vm3358 = vweird.f32 %v3352
      %vm3359 = vmor %vm3357, %vm3358
      %v3360 = vsel %vm3359, %v3352, %v3356
      %v3361 = vand.u32 2147483647, %v2756
      %vm3362 = vcmp.eq.f32.partialorder %v3361, 8.507059e+37
      %v3363 = vand.u32 %v2756, 2147483648
      %v3364 = vor.u32 1.1754944e-38, %v3363
      %v3365 = vsel %vm3362, %v3364, %v3360
      %v3366 = vmul.f32 1.0, %v3365
      %v3367 = vrcp.pop %v2757
      %v3368 = vmul.f32 %v2757, %v3367
      %v3369 = vsub.f32 1.0, %v3368
      %v3370 = vmul.f32 %v3367, %v3369
      %v3371 = vadd.f32 %v3367, %v3370
      %vm3372 = vweird.f32 %v2757
      %vm3373 = vweird.f32 %v3367
      %vm3374 = vmor %vm3372, %vm3373
      %v3375 = vsel %vm3374, %v3367, %v3371
      %v3376 = vand.u32 2147483647, %v2757
      %vm3377 = vcmp.eq.f32.partialorder %v3376, 8.507059e+37
      %v3378 = vand.u32 %v2757, 2147483648
      %v3379 = vor.u32 1.1754944e-38, %v3378
      %v3380 = vsel %vm3377, %v3379, %v3375
      %v3381 = vmul.f32 1.0, %v3380
      %v3382 = vrcp.pop %v2758
      %v3383 = vmul.f32 %v2758, %v3382
      %v3384 = vsub.f32 1.0, %v3383
      %v3385 = vmul.f32 %v3382, %v3384
      %v3386 = vadd.f32 %v3382, %v3385
      %vm3387 = vweird.f32 %v2758
      %vm3388 = vweird.f32 %v3382
      %vm3389 = vmor %vm3387, %vm3388
      %v3390 = vsel %vm3389, %v3382, %v3386
      %v3391 = vand.u32 2147483647, %v2758
      %vm3392 = vcmp.eq.f32.partialorder %v3391, 8.507059e+37
      %v3393 = vand.u32 %v2758, 2147483648
      %v3394 = vor.u32 1.1754944e-38, %v3393
      %v3395 = vsel %vm3392, %v3394, %v3390
      %v3396 = vmul.f32 1.0, %v3395
      %v3397 = vrcp.pop %v2759
      %v3398 = vmul.f32 %v2759, %v3397
      %v3399 = vsub.f32 1.0, %v3398
      %v3400 = vmul.f32 %v3397, %v3399
      %v3401 = vadd.f32 %v3397, %v3400
      %vm3402 = vweird.f32 %v2759
      %vm3403 = vweird.f32 %v3397
      %vm3404 = vmor %vm3402, %vm3403
      %v3405 = vsel %vm3404, %v3397, %v3401
      %v3406 = vand.u32 2147483647, %v2759
      %vm3407 = vcmp.eq.f32.partialorder %v3406, 8.507059e+37
      %v3408 = vand.u32 %v2759, 2147483648
      %v3409 = vor.u32 1.1754944e-38, %v3408
      %v3410 = vsel %vm3407, %v3409, %v3405
      %v3411 = vmul.f32 1.0, %v3410
      %v3412 = vrcp.pop %v2760
      %v3413 = vmul.f32 %v2760, %v3412
      %v3414 = vsub.f32 1.0, %v3413
      %v3415 = vmul.f32 %v3412, %v3414
      %v3416 = vadd.f32 %v3412, %v3415
      %vm3417 = vweird.f32 %v2760
      %vm3418 = vweird.f32 %v3412
      %vm3419 = vmor %vm3417, %vm3418
      %v3420 = vsel %vm3419, %v3412, %v3416
      %v3421 = vand.u32 2147483647, %v2760
      %vm3422 = vcmp.eq.f32.partialorder %v3421, 8.507059e+37
      %v3423 = vand.u32 %v2760, 2147483648
      %v3424 = vor.u32 1.1754944e-38, %v3423
      %v3425 = vsel %vm3422, %v3424, %v3420
      %v3426 = vmul.f32 1.0, %v3425
      %v3427 = vrcp.pop %v2761
      %v3428 = vmul.f32 %v2761, %v3427
      %v3429 = vsub.f32 1.0, %v3428
      %v3430 = vmul.f32 %v3427, %v3429
      %v3431 = vadd.f32 %v3427, %v3430
      %vm3432 = vweird.f32 %v2761
      %vm3433 = vweird.f32 %v3427
      %vm3434 = vmor %vm3432, %vm3433
      %v3435 = vsel %vm3434, %v3427, %v3431
      %v3436 = vand.u32 2147483647, %v2761
      %vm3437 = vcmp.eq.f32.partialorder %v3436, 8.507059e+37
      %v3438 = vand.u32 %v2761, 2147483648
      %v3439 = vor.u32 1.1754944e-38, %v3438
      %v3440 = vsel %vm3437, %v3439, %v3435
      %v3441 = vmul.f32 1.0, %v3440
      %v3442 = vrcp.pop %v2762
      %v3443 = vmul.f32 %v2762, %v3442
      %v3444 = vsub.f32 1.0, %v3443
      %v3445 = vmul.f32 %v3442, %v3444
      %v3446 = vadd.f32 %v3442, %v3445
      %vm3447 = vweird.f32 %v2762
      %vm3448 = vweird.f32 %v3442
      %vm3449 = vmor %vm3447, %vm3448
      %v3450 = vsel %vm3449, %v3442, %v3446
      %v3451 = vand.u32 2147483647, %v2762
      %vm3452 = vcmp.eq.f32.partialorder %v3451, 8.507059e+37
      %v3453 = vand.u32 %v2762, 2147483648
      %v3454 = vor.u32 1.1754944e-38, %v3453
      %v3455 = vsel %vm3452, %v3454, %v3450
      %v3456 = vmul.f32 1.0, %v3455
      %v3457 = vrcp.pop %v2763
      %v3458 = vmul.f32 %v2763, %v3457
      %v3459 = vsub.f32 1.0, %v3458
      %v3460 = vmul.f32 %v3457, %v3459
      %v3461 = vadd.f32 %v3457, %v3460
      %vm3462 = vweird.f32 %v2763
      %vm3463 = vweird.f32 %v3457
      %vm3464 = vmor %vm3462, %vm3463
      %v3465 = vsel %vm3464, %v3457, %v3461
      %v3466 = vand.u32 2147483647, %v2763
      %vm3467 = vcmp.eq.f32.partialorder %v3466, 8.507059e+37
      %v3468 = vand.u32 %v2763, 2147483648
      %v3469 = vor.u32 1.1754944e-38, %v3468
      %v3470 = vsel %vm3467, %v3469, %v3465
      %v3471 = vmul.f32 1.0, %v3470
      %v3472 = vrcp.pop %v2764
      %v3473 = vmul.f32 %v2764, %v3472
      %v3474 = vsub.f32 1.0, %v3473
      %v3475 = vmul.f32 %v3472, %v3474
      %v3476 = vadd.f32 %v3472, %v3475
      %vm3477 = vweird.f32 %v2764
      %vm3478 = vweird.f32 %v3472
      %vm3479 = vmor %vm3477, %vm3478
      %v3480 = vsel %vm3479, %v3472, %v3476
      %v3481 = vand.u32 2147483647, %v2764
      %vm3482 = vcmp.eq.f32.partialorder %v3481, 8.507059e+37
      %v3483 = vand.u32 %v2764, 2147483648
      %v3484 = vor.u32 1.1754944e-38, %v3483
      %v3485 = vsel %vm3482, %v3484, %v3480
      %v3486 = vmul.f32 1.0, %v3485
      %v3487 = vrcp.pop %v2765
      %v3488 = vmul.f32 %v2765, %v3487
      %v3489 = vsub.f32 1.0, %v3488
      %v3490 = vmul.f32 %v3487, %v3489
      %v3491 = vadd.f32 %v3487, %v3490
      %vm3492 = vweird.f32 %v2765
      %vm3493 = vweird.f32 %v3487
      %vm3494 = vmor %vm3492, %vm3493
      %v3495 = vsel %vm3494, %v3487, %v3491
      %v3496 = vand.u32 2147483647, %v2765
      %vm3497 = vcmp.eq.f32.partialorder %v3496, 8.507059e+37
      %v3498 = vand.u32 %v2765, 2147483648
      %v3499 = vor.u32 1.1754944e-38, %v3498
      %v3500 = vsel %vm3497, %v3499, %v3495
      %v3501 = vmul.f32 1.0, %v3500
      %v3502 = vrcp.pop %v2766
      %v3503 = vmul.f32 %v2766, %v3502
      %v3504 = vsub.f32 1.0, %v3503
      %v3505 = vmul.f32 %v3502, %v3504
      %v3506 = vadd.f32 %v3502, %v3505
      %vm3507 = vweird.f32 %v2766
      %vm3508 = vweird.f32 %v3502
      %vm3509 = vmor %vm3507, %vm3508
      %v3510 = vsel %vm3509, %v3502, %v3506
      %v3511 = vand.u32 2147483647, %v2766
      %vm3512 = vcmp.eq.f32.partialorder %v3511, 8.507059e+37
      %v3513 = vand.u32 %v2766, 2147483648
      %v3514 = vor.u32 1.1754944e-38, %v3513
      %v3515 = vsel %vm3512, %v3514, %v3510
      %v3516 = vmul.f32 1.0, %v3515
      %v3517 = vrcp.pop %v2767
      %v3518 = vmul.f32 %v2767, %v3517
      %v3519 = vsub.f32 1.0, %v3518
      %v3520 = vmul.f32 %v3517, %v3519
      %v3521 = vadd.f32 %v3517, %v3520
      %vm3522 = vweird.f32 %v2767
      %vm3523 = vweird.f32 %v3517
      %vm3524 = vmor %vm3522, %vm3523
      %v3525 = vsel %vm3524, %v3517, %v3521
      %v3526 = vand.u32 2147483647, %v2767
      %vm3527 = vcmp.eq.f32.partialorder %v3526, 8.507059e+37
      %v3528 = vand.u32 %v2767, 2147483648
      %v3529 = vor.u32 1.1754944e-38, %v3528
      %v3530 = vsel %vm3527, %v3529, %v3525
      %v3531 = vmul.f32 1.0, %v3530
      %v3532 = vrcp.pop %v2768
      %v3533 = vmul.f32 %v2768, %v3532
      %v3534 = vsub.f32 1.0, %v3533
      %v3535 = vmul.f32 %v3532, %v3534
      %v3536 = vadd.f32 %v3532, %v3535
      %vm3537 = vweird.f32 %v2768
      %vm3538 = vweird.f32 %v3532
      %vm3539 = vmor %vm3537, %vm3538
      %v3540 = vsel %vm3539, %v3532, %v3536
      %v3541 = vand.u32 2147483647, %v2768
      %vm3542 = vcmp.eq.f32.partialorder %v3541, 8.507059e+37
      %v3543 = vand.u32 %v2768, 2147483648
      %v3544 = vor.u32 1.1754944e-38, %v3543
      %v3545 = vsel %vm3542, %v3544, %v3540
      %v3546 = vmul.f32 1.0, %v3545
      %v3547 = vrcp.pop %v2769
      %v3548 = vmul.f32 %v2769, %v3547
      %v3549 = vsub.f32 1.0, %v3548
      %v3550 = vmul.f32 %v3547, %v3549
      %v3551 = vadd.f32 %v3547, %v3550
      %vm3552 = vweird.f32 %v2769
      %vm3553 = vweird.f32 %v3547
      %vm3554 = vmor %vm3552, %vm3553
      %v3555 = vsel %vm3554, %v3547, %v3551
      %v3556 = vand.u32 2147483647, %v2769
      %vm3557 = vcmp.eq.f32.partialorder %v3556, 8.507059e+37
      %v3558 = vand.u32 %v2769, 2147483648
      %v3559 = vor.u32 1.1754944e-38, %v3558
      %v3560 = vsel %vm3557, %v3559, %v3555
      %v3561 = vmul.f32 1.0, %v3560
      %v3562 = vrcp.pop %v2770
      %v3563 = vmul.f32 %v2770, %v3562
      %v3564 = vsub.f32 1.0, %v3563
      %v3565 = vmul.f32 %v3562, %v3564
      %v3566 = vadd.f32 %v3562, %v3565
      %vm3567 = vweird.f32 %v2770
      %vm3568 = vweird.f32 %v3562
      %vm3569 = vmor %vm3567, %vm3568
      %v3570 = vsel %vm3569, %v3562, %v3566
      %v3571 = vand.u32 2147483647, %v2770
      %vm3572 = vcmp.eq.f32.partialorder %v3571, 8.507059e+37
      %v3573 = vand.u32 %v2770, 2147483648
      %v3574 = vor.u32 1.1754944e-38, %v3573
      %v3575 = vsel %vm3572, %v3574, %v3570
      %v3576 = vmul.f32 1.0, %v3575
      %v3577 = vrcp.pop %v2771
      %v3578 = vmul.f32 %v2771, %v3577
      %v3579 = vsub.f32 1.0, %v3578
      %v3580 = vmul.f32 %v3577, %v3579
      %v3581 = vadd.f32 %v3577, %v3580
      %vm3582 = vweird.f32 %v2771
      %vm3583 = vweird.f32 %v3577
      %vm3584 = vmor %vm3582, %vm3583
      %v3585 = vsel %vm3584, %v3577, %v3581
      %v3586 = vand.u32 2147483647, %v2771
      %vm3587 = vcmp.eq.f32.partialorder %v3586, 8.507059e+37
      %v3588 = vand.u32 %v2771, 2147483648
      %v3589 = vor.u32 1.1754944e-38, %v3588
      %v3590 = vsel %vm3587, %v3589, %v3585
      %v3591 = vmul.f32 1.0, %v3590
      %v3592 = vrcp.pop %v2772
      %v3593 = vmul.f32 %v2772, %v3592
      %v3594 = vsub.f32 1.0, %v3593
      %v3595 = vmul.f32 %v3592, %v3594
      %v3596 = vadd.f32 %v3592, %v3595
      %vm3597 = vweird.f32 %v2772
      %vm3598 = vweird.f32 %v3592
      %vm3599 = vmor %vm3597, %vm3598
      %v3600 = vsel %vm3599, %v3592, %v3596
      %v3601 = vand.u32 2147483647, %v2772
      %vm3602 = vcmp.eq.f32.partialorder %v3601, 8.507059e+37
      %v3603 = vand.u32 %v2772, 2147483648
      %v3604 = vor.u32 1.1754944e-38, %v3603
      %v3605 = vsel %vm3602, %v3604, %v3600
      %v3606 = vmul.f32 1.0, %v3605
      %v3607 = vrcp.pop %v2773
      %v3608 = vmul.f32 %v2773, %v3607
      %v3609 = vsub.f32 1.0, %v3608
      %v3610 = vmul.f32 %v3607, %v3609
      %v3611 = vadd.f32 %v3607, %v3610
      %vm3612 = vweird.f32 %v2773
      %vm3613 = vweird.f32 %v3607
      %vm3614 = vmor %vm3612, %vm3613
      %v3615 = vsel %vm3614, %v3607, %v3611
      %v3616 = vand.u32 2147483647, %v2773
      %vm3617 = vcmp.eq.f32.partialorder %v3616, 8.507059e+37
      %v3618 = vand.u32 %v2773, 2147483648
      %v3619 = vor.u32 1.1754944e-38, %v3618
      %v3620 = vsel %vm3617, %v3619, %v3615
      %v3621 = vmul.f32 1.0, %v3620
      %v3622 = vrcp.pop %v2774
      %v3623 = vmul.f32 %v2774, %v3622
      %v3624 = vsub.f32 1.0, %v3623
      %v3625 = vmul.f32 %v3622, %v3624
      %v3626 = vadd.f32 %v3622, %v3625
      %vm3627 = vweird.f32 %v2774
      %vm3628 = vweird.f32 %v3622
      %vm3629 = vmor %vm3627, %vm3628
      %v3630 = vsel %vm3629, %v3622, %v3626
      %v3631 = vand.u32 2147483647, %v2774
      %vm3632 = vcmp.eq.f32.partialorder %v3631, 8.507059e+37
      %v3633 = vand.u32 %v2774, 2147483648
      %v3634 = vor.u32 1.1754944e-38, %v3633
      %v3635 = vsel %vm3632, %v3634, %v3630
      %v3636 = vmul.f32 1.0, %v3635
      %v3637 = vrcp.pop %v2775
      %v3638 = vmul.f32 %v2775, %v3637
      %v3639 = vsub.f32 1.0, %v3638
      %v3640 = vmul.f32 %v3637, %v3639
      %v3641 = vadd.f32 %v3637, %v3640
      %vm3642 = vweird.f32 %v2775
      %vm3643 = vweird.f32 %v3637
      %vm3644 = vmor %vm3642, %vm3643
      %v3645 = vsel %vm3644, %v3637, %v3641
      %v3646 = vand.u32 2147483647, %v2775
      %vm3647 = vcmp.eq.f32.partialorder %v3646, 8.507059e+37
      %v3648 = vand.u32 %v2775, 2147483648
      %v3649 = vor.u32 1.1754944e-38, %v3648
      %v3650 = vsel %vm3647, %v3649, %v3645
      %v3651 = vmul.f32 1.0, %v3650
      %v3652 = vrcp.pop %v2776
      %v3653 = vmul.f32 %v2776, %v3652
      %v3654 = vsub.f32 1.0, %v3653
      %v3655 = vmul.f32 %v3652, %v3654
      %v3656 = vadd.f32 %v3652, %v3655
      %vm3657 = vweird.f32 %v2776
      %vm3658 = vweird.f32 %v3652
      %vm3659 = vmor %vm3657, %vm3658
      %v3660 = vsel %vm3659, %v3652, %v3656
      %v3661 = vand.u32 2147483647, %v2776
      %vm3662 = vcmp.eq.f32.partialorder %v3661, 8.507059e+37
      %v3663 = vand.u32 %v2776, 2147483648
      %v3664 = vor.u32 1.1754944e-38, %v3663
      %v3665 = vsel %vm3662, %v3664, %v3660
      %v3666 = vmul.f32 1.0, %v3665
      %v3667 = vrcp.pop %v2777
      %v3668 = vmul.f32 %v2777, %v3667
      %v3669 = vsub.f32 1.0, %v3668
      %v3670 = vmul.f32 %v3667, %v3669
      %v3671 = vadd.f32 %v3667, %v3670
      %vm3672 = vweird.f32 %v2777
      %vm3673 = vweird.f32 %v3667
      %vm3674 = vmor %vm3672, %vm3673
      %v3675 = vsel %vm3674, %v3667, %v3671
      %v3676 = vand.u32 2147483647, %v2777
      %vm3677 = vcmp.eq.f32.partialorder %v3676, 8.507059e+37
      %v3678 = vand.u32 %v2777, 2147483648
      %v3679 = vor.u32 1.1754944e-38, %v3678
      %v3680 = vsel %vm3677, %v3679, %v3675
      %v3681 = vmul.f32 1.0, %v3680
      %v3682 = vrcp.pop %v2778
      %v3683 = vmul.f32 %v2778, %v3682
      %v3684 = vsub.f32 1.0, %v3683
      %v3685 = vmul.f32 %v3682, %v3684
      %v3686 = vadd.f32 %v3682, %v3685
      %vm3687 = vweird.f32 %v2778
      %vm3688 = vweird.f32 %v3682
      %vm3689 = vmor %vm3687, %vm3688
      %v3690 = vsel %vm3689, %v3682, %v3686
      %v3691 = vand.u32 2147483647, %v2778
      %vm3692 = vcmp.eq.f32.partialorder %v3691, 8.507059e+37
      %v3693 = vand.u32 %v2778, 2147483648
      %v3694 = vor.u32 1.1754944e-38, %v3693
      %v3695 = vsel %vm3692, %v3694, %v3690
      %v3696 = vmul.f32 1.0, %v3695
      %v3697 = vrcp.pop %v2779
      %v3698 = vmul.f32 %v2779, %v3697
      %v3699 = vsub.f32 1.0, %v3698
      %v3700 = vmul.f32 %v3697, %v3699
      %v3701 = vadd.f32 %v3697, %v3700
      %vm3702 = vweird.f32 %v2779
      %vm3703 = vweird.f32 %v3697
      %vm3704 = vmor %vm3702, %vm3703
      %v3705 = vsel %vm3704, %v3697, %v3701
      %v3706 = vand.u32 2147483647, %v2779
      %vm3707 = vcmp.eq.f32.partialorder %v3706, 8.507059e+37
      %v3708 = vand.u32 %v2779, 2147483648
      %v3709 = vor.u32 1.1754944e-38, %v3708
      %v3710 = vsel %vm3707, %v3709, %v3705
      %v3711 = vmul.f32 1.0, %v3710
      %v3712 = vrcp.pop %v2780
      %v3713 = vmul.f32 %v2780, %v3712
      %v3714 = vsub.f32 1.0, %v3713
      %v3715 = vmul.f32 %v3712, %v3714
      %v3716 = vadd.f32 %v3712, %v3715
      %vm3717 = vweird.f32 %v2780
      %vm3718 = vweird.f32 %v3712
      %vm3719 = vmor %vm3717, %vm3718
      %v3720 = vsel %vm3719, %v3712, %v3716
      %v3721 = vand.u32 2147483647, %v2780
      %vm3722 = vcmp.eq.f32.partialorder %v3721, 8.507059e+37
      %v3723 = vand.u32 %v2780, 2147483648
      %v3724 = vor.u32 1.1754944e-38, %v3723
      %v3725 = vsel %vm3722, %v3724, %v3720
      %v3726 = vmul.f32 1.0, %v3725
      %v3727 = vrcp.pop %v2781
      %v3728 = vmul.f32 %v2781, %v3727
      %v3729 = vsub.f32 1.0, %v3728
      %v3730 = vmul.f32 %v3727, %v3729
      %v3731 = vadd.f32 %v3727, %v3730
      %vm3732 = vweird.f32 %v2781
      %vm3733 = vweird.f32 %v3727
      %vm3734 = vmor %vm3732, %vm3733
      %v3735 = vsel %vm3734, %v3727, %v3731
      %v3736 = vand.u32 2147483647, %v2781
      %vm3737 = vcmp.eq.f32.partialorder %v3736, 8.507059e+37
      %v3738 = vand.u32 %v2781, 2147483648
      %v3739 = vor.u32 1.1754944e-38, %v3738
      %v3740 = vsel %vm3737, %v3739, %v3735
      %v3741 = vmul.f32 1.0, %v3740
      %v3742 = vmul.f32 %v2462, %v2796
      %v3743 = vmul.f32 %v2463, %v2811
      %v3744 = vmul.f32 %v2464, %v2826
      %v3745 = vmul.f32 %v2465, %v2841
      %v3746 = vmul.f32 %v2466, %v2856
      %v3747 = vmul.f32 %v2467, %v2871
      %v3748 = vmul.f32 %v2468, %v2886
      %v3749 = vmul.f32 %v2469, %v2901
      %v3750 = vmul.f32 %v2470, %v2916
      %v3751 = vmul.f32 %v2471, %v2931
      %v3752 = vmul.f32 %v2472, %v2946
      %v3753 = vmul.f32 %v2473, %v2961
      %v3754 = vmul.f32 %v2474, %v2976
      %v3755 = vmul.f32 %v2475, %v2991
      %v3756 = vmul.f32 %v2476, %v3006
      %v3757 = vmul.f32 %v2477, %v3021
      %v3758 = vmul.f32 %v2478, %v3036
      %v3759 = vmul.f32 %v2479, %v3051
      %v3760 = vmul.f32 %v2480, %v3066
      %v3761 = vmul.f32 %v2481, %v3081
      %v3762 = vmul.f32 %v2482, %v3096
      %v3763 = vmul.f32 %v2483, %v3111
      %v3764 = vmul.f32 %v2484, %v3126
      %v3765 = vmul.f32 %v2485, %v3141
      %v3766 = vmul.f32 %v2486, %v3156
      %v3767 = vmul.f32 %v2487, %v3171
      %v3768 = vmul.f32 %v2488, %v3186
      %v3769 = vmul.f32 %v2489, %v3201
      %v3770 = vmul.f32 %v2490, %v3216
      %v3771 = vmul.f32 %v2491, %v3231
      %v3772 = vmul.f32 %v2492, %v3246
      %v3773 = vmul.f32 %v2493, %v3261
      %v3774 = vmul.f32 %v2494, %v3276
      %v3775 = vmul.f32 %v2495, %v3291
      %v3776 = vmul.f32 %v2496, %v3306
      %v3777 = vmul.f32 %v2497, %v3321
      %v3778 = vmul.f32 %v2498, %v3336
      %v3779 = vmul.f32 %v2499, %v3351
      %v3780 = vmul.f32 %v2500, %v3366
      %v3781 = vmul.f32 %v2501, %v3381
      %v3782 = vmul.f32 %v2502, %v3396
      %v3783 = vmul.f32 %v2503, %v3411
      %v3784 = vmul.f32 %v2504, %v3426
      %v3785 = vmul.f32 %v2505, %v3441
      %v3786 = vmul.f32 %v2506, %v3456
      %v3787 = vmul.f32 %v2507, %v3471
      %v3788 = vmul.f32 %v2508, %v3486
      %v3789 = vmul.f32 %v2509, %v3501
      %v3790 = vmul.f32 %v2510, %v3516
      %v3791 = vmul.f32 %v2511, %v3531
      %v3792 = vmul.f32 %v2512, %v3546
      %v3793 = vmul.f32 %v2513, %v3561
      %v3794 = vmul.f32 %v2514, %v3576
      %v3795 = vmul.f32 %v2515, %v3591
      %v3796 = vmul.f32 %v2516, %v3606
      %v3797 = vmul.f32 %v2517, %v3621
      %v3798 = vmul.f32 %v2518, %v3636
      %v3799 = vmul.f32 %v2519, %v3651
      %v3800 = vmul.f32 %v2520, %v3666
      %v3801 = vmul.f32 %v2521, %v3681
      %v3802 = vmul.f32 %v2522, %v3696
      %v3803 = vmul.f32 %v2523, %v3711
      %v3804 = vmul.f32 %v2524, %v3726
      %v3805 = vmul.f32 %v2525, %v3741
      %vm3806 = vcmask 523264
      %3807 = vst.msk [vmem:[%s226] sm:$0xff] %vm3806, %v3742
      %3808 = vst.msk [vmem:[%s226 + $0x8] sm:$0xff] %vm3806, %v3743
      %3809 = vst.msk [vmem:[%s226 + $0x10] sm:$0xff] %vm3806, %v3744
      %3810 = vst.msk [vmem:[%s226 + $0x18] sm:$0xff] %vm3806, %v3745
      %3811 = vst.msk [vmem:[%s226 + $0x20] sm:$0xff] %vm3806, %v3746
      %3812 = vst.msk [vmem:[%s226 + $0x28] sm:$0xff] %vm3806, %v3747
      %3813 = vst.msk [vmem:[%s226 + $0x30] sm:$0xff] %vm3806, %v3748
      %3814 = vst.msk [vmem:[%s226 + $0x38] sm:$0xff] %vm3806, %v3749
      %3815 = vst.msk [vmem:[%s226 + $0x40] sm:$0xff] %vm3806, %v3750
      %3816 = vst.msk [vmem:[%s226 + $0x48] sm:$0xff] %vm3806, %v3751
      %3817 = vst.msk [vmem:[%s226 + $0x50] sm:$0xff] %vm3806, %v3752
      %3818 = vst.msk [vmem:[%s226 + $0x58] sm:$0xff] %vm3806, %v3753
      %3819 = vst.msk [vmem:[%s226 + $0x60] sm:$0xff] %vm3806, %v3754
      %3820 = vst.msk [vmem:[%s226 + $0x68] sm:$0xff] %vm3806, %v3755
      %3821 = vst.msk [vmem:[%s226 + $0x70] sm:$0xff] %vm3806, %v3756
      %3822 = vst.msk [vmem:[%s226 + $0x78] sm:$0xff] %vm3806, %v3757
      %3823 = vst.msk [vmem:[%s226 + $0x80] sm:$0xff] %vm3806, %v3758
      %3824 = vst.msk [vmem:[%s226 + $0x88] sm:$0xff] %vm3806, %v3759
      %3825 = vst.msk [vmem:[%s226 + $0x90] sm:$0xff] %vm3806, %v3760
      %3826 = vst.msk [vmem:[%s226 + $0x98] sm:$0xff] %vm3806, %v3761
      %3827 = vst.msk [vmem:[%s226 + $0xa0] sm:$0xff] %vm3806, %v3762
      %3828 = vst.msk [vmem:[%s226 + $0xa8] sm:$0xff] %vm3806, %v3763
      %3829 = vst.msk [vmem:[%s226 + $0xb0] sm:$0xff] %vm3806, %v3764
      %3830 = vst.msk [vmem:[%s226 + $0xb8] sm:$0xff] %vm3806, %v3765
      %3831 = vst.msk [vmem:[%s226 + $0xc0] sm:$0xff] %vm3806, %v3766
      %3832 = vst.msk [vmem:[%s226 + $0xc8] sm:$0xff] %vm3806, %v3767
      %3833 = vst.msk [vmem:[%s226 + $0xd0] sm:$0xff] %vm3806, %v3768
      %3834 = vst.msk [vmem:[%s226 + $0xd8] sm:$0xff] %vm3806, %v3769
      %3835 = vst.msk [vmem:[%s226 + $0xe0] sm:$0xff] %vm3806, %v3770
      %3836 = vst.msk [vmem:[%s226 + $0xe8] sm:$0xff] %vm3806, %v3771
      %3837 = vst.msk [vmem:[%s226 + $0xf0] sm:$0xff] %vm3806, %v3772
      %3838 = vst.msk [vmem:[%s226 + $0xf8] sm:$0xff] %vm3806, %v3773
      %3839 = vst.msk [vmem:[%s226 + $0x100] sm:$0xff] %vm3806, %v3774
      %3840 = vst.msk [vmem:[%s226 + $0x108] sm:$0xff] %vm3806, %v3775
      %3841 = vst.msk [vmem:[%s226 + $0x110] sm:$0xff] %vm3806, %v3776
      %3842 = vst.msk [vmem:[%s226 + $0x118] sm:$0xff] %vm3806, %v3777
      %3843 = vst.msk [vmem:[%s226 + $0x120] sm:$0xff] %vm3806, %v3778
      %3844 = vst.msk [vmem:[%s226 + $0x128] sm:$0xff] %vm3806, %v3779
      %3845 = vst.msk [vmem:[%s226 + $0x130] sm:$0xff] %vm3806, %v3780
      %3846 = vst.msk [vmem:[%s226 + $0x138] sm:$0xff] %vm3806, %v3781
      %3847 = vst.msk [vmem:[%s226 + $0x140] sm:$0xff] %vm3806, %v3782
      %3848 = vst.msk [vmem:[%s226 + $0x148] sm:$0xff] %vm3806, %v3783
      %3849 = vst.msk [vmem:[%s226 + $0x150] sm:$0xff] %vm3806, %v3784
      %3850 = vst.msk [vmem:[%s226 + $0x158] sm:$0xff] %vm3806, %v3785
      %3851 = vst.msk [vmem:[%s226 + $0x160] sm:$0xff] %vm3806, %v3786
      %3852 = vst.msk [vmem:[%s226 + $0x168] sm:$0xff] %vm3806, %v3787
      %3853 = vst.msk [vmem:[%s226 + $0x170] sm:$0xff] %vm3806, %v3788
      %3854 = vst.msk [vmem:[%s226 + $0x178] sm:$0xff] %vm3806, %v3789
      %3855 = vst.msk [vmem:[%s226 + $0x180] sm:$0xff] %vm3806, %v3790
      %3856 = vst.msk [vmem:[%s226 + $0x188] sm:$0xff] %vm3806, %v3791
      %3857 = vst.msk [vmem:[%s226 + $0x190] sm:$0xff] %vm3806, %v3792
      %3858 = vst.msk [vmem:[%s226 + $0x198] sm:$0xff] %vm3806, %v3793
      %3859 = vst.msk [vmem:[%s226 + $0x1a0] sm:$0xff] %vm3806, %v3794
      %3860 = vst.msk [vmem:[%s226 + $0x1a8] sm:$0xff] %vm3806, %v3795
      %3861 = vst.msk [vmem:[%s226 + $0x1b0] sm:$0xff] %vm3806, %v3796
      %3862 = vst.msk [vmem:[%s226 + $0x1b8] sm:$0xff] %vm3806, %v3797
      %3863 = vst.msk [vmem:[%s226 + $0x1c0] sm:$0xff] %vm3806, %v3798
      %3864 = vst.msk [vmem:[%s226 + $0x1c8] sm:$0xff] %vm3806, %v3799
      %3865 = vst.msk [vmem:[%s226 + $0x1d0] sm:$0xff] %vm3806, %v3800
      %3866 = vst.msk [vmem:[%s226 + $0x1d8] sm:$0xff] %vm3806, %v3801
      %3867 = vst.msk [vmem:[%s226 + $0x1e0] sm:$0xff] %vm3806, %v3802
      %3868 = vst.msk [vmem:[%s226 + $0x1e8] sm:$0xff] %vm3806, %v3803
      %3869 = vst.msk [vmem:[%s226 + $0x1f0] sm:$0xff] %vm3806, %v3804
      %3870 = vst.msk [vmem:[%s226 + $0x1f8] sm:$0xff] %vm3806, %v3805
      %s3871 = smul.u32 64, %s16
      %p3872 = scmp.lt.s32.totalorder %s3871, 127
      %s3873 = scalar_select %p3872, %s3871, 127
      %s3874 = smul.addr %s3873, 8
      %s3875 = scalar_lea.vmem %s5, %s3874
      // Predicated region
      $region41: #{_resblock_call.1} parent=39 // pred_check
        %p3876 = pneg %p144
      $region42: #{_resblock_call.1} parent=39 // pred_check_branch
        %3878 = sbr.rel (%p3876) target = $region44
      $region43: #{_resblock_call.1} parent=39 // pred_region
        %s3879 = smul.u32 64, %s16
      $region44: #{_resblock_call.1} parent=39 // pred_fallthru
        _
    $region40: #{_resblock_call.1} parent=5 // pred_fallthru
      _
    %p3880 = scmp.le.s32.totalorder 2, %s11
    // Predicated region
    $region45: #{_resblock_call.1} parent=5 // pred_check
      %p3881 = pneg %p3880
    $region46: #{_resblock_call.1} parent=5 // pred_check_branch
      %3883 = sbr.rel (%p3881) target = $region48
    $region47: #{_resblock_call.1} parent=5 // pred_region
      %s3884 = ssub.s32 %s11, 2
      // Predicated region
      $region49: #{_resblock_call.1} parent=47 // pred_check
        %p3885 = pneg %p150
      $region50: #{_resblock_call.1} parent=47 // pred_check_branch
        %3887 = sbr.rel (%p3885) target = $region52
      $region51: #{_resblock_call.1} parent=47 // pred_region
        %s3888 = smul.u32 64, %s17
        %p3889 = scmp.lt.s32.totalorder %s3888, 127
        %s3890 = scalar_select %p3889, %s3888, 127
        %s3891 = smul.addr %s3890, 8
        %s3892 = scalar_lea.vmem %s5, %s3891
      $region52: #{_resblock_call.1} parent=47 // pred_fallthru
        _
    $region48: #{_resblock_call.1} parent=5 // pred_fallthru
      _
  $region6: #{_resblock_call.1} parent=0 // loop_footer
    %s15 = sadd.s32 1, %s11
  $region7: #{_resblock_call.1} parent=0 // loop_footer_branch
    %10 = sbr.rel target = $region3
  $region8: #{_resblock_call.1} parent=0 // loop_exit
    _

</llo_original>
